<compile_context>
chip_gen: v5e
topology: v5e:2x2
jax: 0.10.0
libtpu: 0.0.40
codegen_flags: <defaults>
</compile_context>

<pallas_src>
import functools

import jax
import jax.numpy as jnp
from jax import lax
from jax.experimental import pallas as pl
from jax.experimental.pallas import tpu as pltpu

# ---- Shapes implied by the PyTorch module -----------------------------------
# fc1 = Linear(6144, 64) with two valid k=3 convs and 64 final channels
#   =>  64 * (SEQ - 4) = 6144  =>  SEQ = 100.
C_IN = 8                    # nn.Conv1d in_channels (train_data.shape[2])
SEQ  = 100                  # sequence length fixed by fc1's 6144 in_features
C1   = 128                  # conv1 out channels
C2   = 64                   # conv2 out channels
K    = 3                    # kernel size
L1   = SEQ - K + 1          # 98
L2   = L1 - K + 1           # 96
FLAT = C2 * L2              # 6144
H    = 64                   # fc1 out features
MAX_TB = 32                 # samples per grid step (multiple of 8, VMEM-sized)


def mycnn_kernel(x_ref, w1_ref, b1_ref, w2_ref, b2_ref, w3_ref, b3_ref,
                 w4_ref, b4_ref, o_ref, *, tb):
    x2 = x_ref[0]                                           # (SEQ*TB, C_IN)

    # ---- conv1: K accumulated MXU dots, rows = (l, b) ------------------------
    y1 = jnp.dot(x2[0:L1 * tb, :], w1_ref[0],
                 preferred_element_type=jnp.float32)
    for k in range(1, K):
        y1 = y1 + jnp.dot(x2[k * tb:k * tb + L1 * tb, :], w1_ref[k],
                          preferred_element_type=jnp.float32)
    a1 = jnp.maximum(y1 + b1_ref[...], 0.0)                 # (L1*TB, C1)

    # ---- conv2: K accumulated MXU dots (contraction depth 128) ---------------
    y2 = jnp.dot(a1[0:L2 * tb, :], w2_ref[0],
                 preferred_element_type=jnp.float32)
    for k in range(1, K):
        y2 = y2 + jnp.dot(a1[k * tb:k * tb + L2 * tb, :], w2_ref[k],
                          preferred_element_type=jnp.float32)
    a2 = jnp.maximum(y2 + b2_ref[...], 0.0)                 # (L2*TB, C2)

    # ---- fc1 on the MXU: batched matmul over l, then reduce over l -----------
    # a2_3d[l, b, c] = conv2 output[b, c, l]; w3_ref[l, c, j] = fc1.weight[j, c*L2+l]
    a2_3d = a2.reshape(L2, tb, C2)                          # leading-dim split (tb % 8 == 0)
    t = jnp.einsum('lbc,lch->lbh', a2_3d, w3_ref[...],
                   preferred_element_type=jnp.float32)      # (L2, TB, H)
    h = jnp.maximum(jnp.sum(t, axis=0) + b3_ref[...], 0.0)  # (TB, H)

    # ---- fc2 + sigmoid --------------------------------------------------------
    logit = jnp.dot(h, w4_ref[...],
                    preferred_element_type=jnp.float32) + b4_ref[...]  # (TB, 1)
    o_ref[...] = jax.nn.sigmoid(logit)


def mycnn_forward(x, params, *, tb=None):
    """x: (B, SEQ, C_IN) float32 — same layout the PyTorch module receives."""
    B, S, C = x.shape
    assert S == SEQ and C == C_IN, (S, C)
    w1, b1, w2, b2, w3, b3, w4, b4 = params

    if tb is None:
        tb = min(MAX_TB, max(8, ((B + 7) // 8) * 8))
    assert tb % 8 == 0
    nb = pl.cdiv(B, tb)
    b_pad = nb * tb
    if b_pad != B:
        x = jnp.pad(x, ((0, b_pad - B), (0, 0), (0, 0)))

    # (B_pad, SEQ, C_IN) -> (NB, SEQ*TB, C_IN) with row index = s*TB + b
    xw = (x.reshape(nb, tb, SEQ, C_IN)
           .transpose(0, 2, 1, 3)
           .reshape(nb, SEQ * tb, C_IN))

    # Conv weights: per-tap (C_in, C_out) matrices, tap-major.
    w1_r = jnp.transpose(w1, (2, 1, 0))                     # (K, C_IN, C1)
    w2_r = jnp.transpose(w2, (2, 1, 0))                     # (K, C1, C2)
    # fc1 weight permuted to (L2, C2, H) so the in-kernel contraction matches
    # torch's row-major .view(B, -1) flatten (C2-major, L2-minor).
    w3_r = jnp.transpose(w3.reshape(H, C2, L2), (2, 1, 0))  # (L2, C2, H)
    b1_r = b1.reshape(1, C1)
    b2_r = b2.reshape(1, C2)
    b3_r = b3.reshape(1, H)
    w4_r = w4.reshape(1, H).T                               # (H, 1)
    b4_r = b4.reshape(1, 1)

    kernel = functools.partial(mycnn_kernel, tb=tb)
    out = pl.pallas_call(
        kernel,
        out_shape=jax.ShapeDtypeStruct((b_pad, 1), jnp.float32),
        grid=(nb,),
        in_specs=[
            pl.BlockSpec((1, SEQ * tb, C_IN), lambda g: (g, 0, 0)),
            pl.BlockSpec((K, C_IN, C1),       lambda g: (0, 0, 0)),
            pl.BlockSpec((1, C1),             lambda g: (0, 0)),
            pl.BlockSpec((K, C1, C2),         lambda g: (0, 0, 0)),
            pl.BlockSpec((1, C2),             lambda g: (0, 0)),
            pl.BlockSpec((L2, C2, H),         lambda g: (0, 0, 0)),
            pl.BlockSpec((1, H),              lambda g: (0, 0)),
            pl.BlockSpec((H, 1),              lambda g: (0, 0)),
            pl.BlockSpec((1, 1),              lambda g: (0, 0)),
        ],
        out_specs=pl.BlockSpec((tb, 1), lambda g: (g, 0)),
        compiler_params=pltpu.CompilerParams(
            dimension_semantics=("parallel",),
            vmem_limit_bytes=32 * 1024 * 1024),
    )(xw, w1_r, b1_r, w2_r, b2_r, w3_r, b3_r, w4_r, b4_r)
    return out[:B]


def mycnn_reference(x, params):
    """Pure-JAX reference matching the PyTorch forward exactly."""
    w1, b1, w2, b2, w3, b3, w4, b4 = params
    y = jnp.transpose(x, (0, 2, 1))
    y = lax.conv_general_dilated(y, w1, (1,), 'VALID',
                                 dimension_numbers=('NCH', 'OIH', 'NCH'))
    y = jax.nn.relu(y + b1[None, :, None])
    y = lax.conv_general_dilated(y, w2, (1,), 'VALID',
                                 dimension_numbers=('NCH', 'OIH', 'NCH'))
    y = jax.nn.relu(y + b2[None, :, None])
    y = y.reshape(y.shape[0], -1)
    y = jax.nn.relu(y @ w3.T + b3)
    y = y @ w4.T + b4
    return jax.nn.sigmoid(y)


def init_params(key):
    ks = jax.random.split(key, 8)
    s = 0.05
    w1 = s * jax.random.normal(ks[0], (C1, C_IN, K), jnp.float32)   # conv1.weight
    b1 = s * jax.random.normal(ks[1], (C1,), jnp.float32)           # conv1.bias
    w2 = s * jax.random.normal(ks[2], (C2, C1, K), jnp.float32)     # conv2.weight
    b2 = s * jax.random.normal(ks[3], (C2,), jnp.float32)           # conv2.bias
    w3 = s * jax.random.normal(ks[4], (H, FLAT), jnp.float32)       # fc1.weight
    b3 = s * jax.random.normal(ks[5], (H,), jnp.float32)            # fc1.bias
    w4 = s * jax.random.normal(ks[6], (1, H), jnp.float32)          # fc2.weight
    b4 = s * jax.random.normal(ks[7], (1,), jnp.float32)            # fc2.bias
    return (w1, b1, w2, b2, w3, b3, w4, b4)


if __name__ == "__main__":
    key = jax.random.PRNGKey(0)
    pkey, xkey = jax.random.split(key)
    params = init_params(pkey)
    x = jax.random.normal(xkey, (4, SEQ, C_IN), jnp.float32)   # (batch, seq, feat)

    out = jax.block_until_ready(mycnn_forward(x, params))
    ref = jax.block_until_ready(mycnn_reference(x, params))

    assert out.shape == (4, 1), out.shape
    assert jnp.allclose(out, ref, atol=5e-4, rtol=5e-4), (out, ref)
    print("KERNEL_OK")
</pallas_src>

<mosaic_0001>
module attributes {stable_mosaic.version = 11 : i64} {
  func.func @mycnn_kernel(%arg0: i32, %arg1: memref<1x800x8xf32, #tpu.memory_space<vmem>>, %arg2: memref<3x8x128xf32, #tpu.memory_space<vmem>>, %arg3: memref<1x128xf32, #tpu.memory_space<vmem>>, %arg4: memref<3x128x64xf32, #tpu.memory_space<vmem>>, %arg5: memref<1x64xf32, #tpu.memory_space<vmem>>, %arg6: memref<96x64x64xf32, #tpu.memory_space<vmem>>, %arg7: memref<1x64xf32, #tpu.memory_space<vmem>>, %arg8: memref<64x1xf32, #tpu.memory_space<vmem>>, %arg9: memref<1x1xf32, #tpu.memory_space<vmem>>, %arg10: memref<8x1xf32, #tpu.memory_space<vmem>>) attributes {dimension_semantics = [#tpu.dimension_semantics<parallel>], iteration_bounds = array<i64: 1>, scalar_prefetch = 0 : i64, scratch_operands = 0 : i64, tpu.core_type = #tpu.core_type<tc>, window_params = [{transform_indices = @transform_0, window_bounds = array<i64: 1, 800, 8>}, {pipeline_mode = #tpu.pipeline_mode<synchronous>, transform_indices = @transform_1, window_bounds = array<i64: 3, 8, 128>}, {pipeline_mode = #tpu.pipeline_mode<synchronous>, transform_indices = @transform_2, window_bounds = array<i64: 1, 128>}, {pipeline_mode = #tpu.pipeline_mode<synchronous>, transform_indices = @transform_3, window_bounds = array<i64: 3, 128, 64>}, {pipeline_mode = #tpu.pipeline_mode<synchronous>, transform_indices = @transform_4, window_bounds = array<i64: 1, 64>}, {pipeline_mode = #tpu.pipeline_mode<synchronous>, transform_indices = @transform_5, window_bounds = array<i64: 96, 64, 64>}, {pipeline_mode = #tpu.pipeline_mode<synchronous>, transform_indices = @transform_6, window_bounds = array<i64: 1, 64>}, {pipeline_mode = #tpu.pipeline_mode<synchronous>, transform_indices = @transform_7, window_bounds = array<i64: 64, 1>}, {pipeline_mode = #tpu.pipeline_mode<synchronous>, transform_indices = @transform_8, window_bounds = array<i64: 1, 1>}, {transform_indices = @transform_9, window_bounds = array<i64: 8, 1>}]} {
    %c0 = arith.constant 0 : index
    %c0_0 = arith.constant 0 : index
    %c0_1 = arith.constant 0 : index
    %0 = vector.load %arg1[%c0, %c0_0, %c0_1] : memref<1x800x8xf32, #tpu.memory_space<vmem>>, vector<1x800x8xf32>
    %1 = vector.shape_cast %0 : vector<1x800x8xf32> to vector<800x8xf32>
    %2 = vector.extract_strided_slice %1 {offsets = [0, 0], sizes = [784, 8], strides = [1, 1]} : vector<800x8xf32> to vector<784x8xf32>
    %c0_2 = arith.constant 0 : index
    %c0_3 = arith.constant 0 : index
    %c0_4 = arith.constant 0 : index
    %3 = vector.load %arg2[%c0_2, %c0_3, %c0_4] : memref<3x8x128xf32, #tpu.memory_space<vmem>>, vector<1x8x128xf32>
    %4 = vector.shape_cast %3 : vector<1x8x128xf32> to vector<8x128xf32>
    %cst = arith.constant dense<0.000000e+00> : vector<784x128xf32>
    %5 = tpu.matmul %2, %4, %cst {dimension_numbers = #tpu.dot_dimension_numbers<[1], [0], [0], [1], [0, 0, 1, 1], [], []>} : vector<784x8xf32>, vector<8x128xf32>, vector<784x128xf32> -> vector<784x128xf32>
    %6 = vector.extract_strided_slice %1 {offsets = [8, 0], sizes = [784, 8], strides = [1, 1]} : vector<800x8xf32> to vector<784x8xf32>
    %c1 = arith.constant 1 : index
    %c0_5 = arith.constant 0 : index
    %c0_6 = arith.constant 0 : index
    %7 = vector.load %arg2[%c1, %c0_5, %c0_6] : memref<3x8x128xf32, #tpu.memory_space<vmem>>, vector<1x8x128xf32>
    %8 = vector.shape_cast %7 : vector<1x8x128xf32> to vector<8x128xf32>
    %cst_7 = arith.constant dense<0.000000e+00> : vector<784x128xf32>
    %9 = tpu.matmul %6, %8, %cst_7 {dimension_numbers = #tpu.dot_dimension_numbers<[1], [0], [0], [1], [0, 0, 1, 1], [], []>} : vector<784x8xf32>, vector<8x128xf32>, vector<784x128xf32> -> vector<784x128xf32>
    %10 = arith.addf %5, %9 : vector<784x128xf32>
    %11 = vector.extract_strided_slice %1 {offsets = [16, 0], sizes = [784, 8], strides = [1, 1]} : vector<800x8xf32> to vector<784x8xf32>
    %c2 = arith.constant 2 : index
    %c0_8 = arith.constant 0 : index
    %c0_9 = arith.constant 0 : index
    %12 = vector.load %arg2[%c2, %c0_8, %c0_9] : memref<3x8x128xf32, #tpu.memory_space<vmem>>, vector<1x8x128xf32>
    %13 = vector.shape_cast %12 : vector<1x8x128xf32> to vector<8x128xf32>
    %cst_10 = arith.constant dense<0.000000e+00> : vector<784x128xf32>
    %14 = tpu.matmul %11, %13, %cst_10 {dimension_numbers = #tpu.dot_dimension_numbers<[1], [0], [0], [1], [0, 0, 1, 1], [], []>} : vector<784x8xf32>, vector<8x128xf32>, vector<784x128xf32> -> vector<784x128xf32>
    %15 = arith.addf %10, %14 : vector<784x128xf32>
    %c0_11 = arith.constant 0 : index
    %c0_12 = arith.constant 0 : index
    %16 = vector.load %arg3[%c0_11, %c0_12] : memref<1x128xf32, #tpu.memory_space<vmem>>, vector<1x128xf32>
    %17 = vector.broadcast %16 : vector<1x128xf32> to vector<784x128xf32>
    %18 = arith.addf %15, %17 : vector<784x128xf32>
    %cst_13 = arith.constant 0.000000e+00 : f32
    %19 = vector.broadcast %cst_13 : f32 to vector<784x128xf32>
    %20 = arith.maximumf %18, %19 : vector<784x128xf32>
    %21 = vector.extract_strided_slice %20 {offsets = [0, 0], sizes = [768, 128], strides = [1, 1]} : vector<784x128xf32> to vector<768x128xf32>
    %c0_14 = arith.constant 0 : index
    %c0_15 = arith.constant 0 : index
    %c0_16 = arith.constant 0 : index
    %22 = vector.load %arg4[%c0_14, %c0_15, %c0_16] : memref<3x128x64xf32, #tpu.memory_space<vmem>>, vector<1x128x64xf32>
    %23 = vector.shape_cast %22 : vector<1x128x64xf32> to vector<128x64xf32>
    %cst_17 = arith.constant dense<0.000000e+00> : vector<768x64xf32>
    %24 = tpu.matmul %21, %23, %cst_17 {dimension_numbers = #tpu.dot_dimension_numbers<[1], [0], [0], [1], [0, 0, 1, 1], [], []>} : vector<768x128xf32>, vector<128x64xf32>, vector<768x64xf32> -> vector<768x64xf32>
    %25 = vector.extract_strided_slice %20 {offsets = [8, 0], sizes = [768, 128], strides = [1, 1]} : vector<784x128xf32> to vector<768x128xf32>
    %c1_18 = arith.constant 1 : index
    %c0_19 = arith.constant 0 : index
    %c0_20 = arith.constant 0 : index
    %26 = vector.load %arg4[%c1_18, %c0_19, %c0_20] : memref<3x128x64xf32, #tpu.memory_space<vmem>>, vector<1x128x64xf32>
    %27 = vector.shape_cast %26 : vector<1x128x64xf32> to vector<128x64xf32>
    %cst_21 = arith.constant dense<0.000000e+00> : vector<768x64xf32>
    %28 = tpu.matmul %25, %27, %cst_21 {dimension_numbers = #tpu.dot_dimension_numbers<[1], [0], [0], [1], [0, 0, 1, 1], [], []>} : vector<768x128xf32>, vector<128x64xf32>, vector<768x64xf32> -> vector<768x64xf32>
    %29 = arith.addf %24, %28 : vector<768x64xf32>
    %30 = vector.extract_strided_slice %20 {offsets = [16, 0], sizes = [768, 128], strides = [1, 1]} : vector<784x128xf32> to vector<768x128xf32>
    %c2_22 = arith.constant 2 : index
    %c0_23 = arith.constant 0 : index
    %c0_24 = arith.constant 0 : index
    %31 = vector.load %arg4[%c2_22, %c0_23, %c0_24] : memref<3x128x64xf32, #tpu.memory_space<vmem>>, vector<1x128x64xf32>
    %32 = vector.shape_cast %31 : vector<1x128x64xf32> to vector<128x64xf32>
    %cst_25 = arith.constant dense<0.000000e+00> : vector<768x64xf32>
    %33 = tpu.matmul %30, %32, %cst_25 {dimension_numbers = #tpu.dot_dimension_numbers<[1], [0], [0], [1], [0, 0, 1, 1], [], []>} : vector<768x128xf32>, vector<128x64xf32>, vector<768x64xf32> -> vector<768x64xf32>
    %34 = arith.addf %29, %33 : vector<768x64xf32>
    %c0_26 = arith.constant 0 : index
    %c0_27 = arith.constant 0 : index
    %35 = vector.load %arg5[%c0_26, %c0_27] : memref<1x64xf32, #tpu.memory_space<vmem>>, vector<1x64xf32>
    %36 = vector.broadcast %35 : vector<1x64xf32> to vector<768x64xf32>
    %37 = arith.addf %34, %36 : vector<768x64xf32>
    %cst_28 = arith.constant 0.000000e+00 : f32
    %38 = vector.broadcast %cst_28 : f32 to vector<768x64xf32>
    %39 = arith.maximumf %37, %38 : vector<768x64xf32>
    %40 = vector.shape_cast %39 : vector<768x64xf32> to vector<96x8x64xf32>
    %c0_29 = arith.constant 0 : index
    %c0_30 = arith.constant 0 : index
    %c0_31 = arith.constant 0 : index
    %41 = vector.load %arg6[%c0_29, %c0_30, %c0_31] : memref<96x64x64xf32, #tpu.memory_space<vmem>>, vector<96x64x64xf32>
    "tpu.trace_start"() <{level = 10 : i32, message = "lbc,lch->lbh"}> : () -> ()
    %cst_32 = arith.constant dense<0.000000e+00> : vector<96x8x64xf32>
    %42 = tpu.matmul %40, %41, %cst_32 {dimension_numbers = #tpu.dot_dimension_numbers<[2], [1], [1], [2], [0, 0, 0, 1, 1, 2], [0], [0]>} : vector<96x8x64xf32>, vector<96x64x64xf32>, vector<96x8x64xf32> -> vector<96x8x64xf32>
    "tpu.trace_stop"() : () -> ()
    %cst_33 = arith.constant dense<0.000000e+00> : vector<8x64xf32>
    %43 = vector.multi_reduction <add>, %42, %cst_33 [0] : vector<96x8x64xf32> to vector<8x64xf32>
    %c0_34 = arith.constant 0 : index
    %c0_35 = arith.constant 0 : index
    %44 = vector.load %arg7[%c0_34, %c0_35] : memref<1x64xf32, #tpu.memory_space<vmem>>, vector<1x64xf32>
    %45 = vector.broadcast %44 : vector<1x64xf32> to vector<8x64xf32>
    %46 = arith.addf %43, %45 : vector<8x64xf32>
    %cst_36 = arith.constant 0.000000e+00 : f32
    %47 = vector.broadcast %cst_36 : f32 to vector<8x64xf32>
    %48 = arith.maximumf %46, %47 : vector<8x64xf32>
    %c0_37 = arith.constant 0 : index
    %c0_38 = arith.constant 0 : index
    %49 = vector.load %arg8[%c0_37, %c0_38] : memref<64x1xf32, #tpu.memory_space<vmem>>, vector<64x1xf32>
    %cst_39 = arith.constant dense<0.000000e+00> : vector<8x1xf32>
    %50 = tpu.matmul %48, %49, %cst_39 {dimension_numbers = #tpu.dot_dimension_numbers<[1], [0], [0], [1], [0, 0, 1, 1], [], []>} : vector<8x64xf32>, vector<64x1xf32>, vector<8x1xf32> -> vector<8x1xf32>
    %c0_40 = arith.constant 0 : index
    %c0_41 = arith.constant 0 : index
    %51 = vector.load %arg9[%c0_40, %c0_41] : memref<1x1xf32, #tpu.memory_space<vmem>>, vector<1x1xf32>
    %52 = vector.broadcast %51 : vector<1x1xf32> to vector<8x1xf32>
    %53 = arith.addf %50, %52 : vector<8x1xf32>
    %54 = arith.negf %53 : vector<8x1xf32>
    %55 = math.exp %54 : vector<8x1xf32>
    %cst_42 = arith.constant 1.000000e+00 : f32
    %56 = vector.broadcast %cst_42 : f32 to vector<8x1xf32>
    %57 = arith.addf %56, %55 : vector<8x1xf32>
    %58 = arith.divf %56, %57 : vector<8x1xf32>
    %c0_43 = arith.constant 0 : index
    %c0_44 = arith.constant 0 : index
    %59 = vector.load %arg10[%c0_43, %c0_44] : memref<8x1xf32, #tpu.memory_space<vmem>>, vector<8x1xf32>
    tpu.vector_store %arg10[%c0_43, %c0_44], %58 {strides = array<i32>} : memref<8x1xf32, #tpu.memory_space<vmem>>, vector<8x1xf32>,
    return
  }
  func.func @transform_0(%arg0: i32) -> (i32, i32, i32) {
    %c0_i32 = arith.constant 0 : i32
    %c0_i32_0 = arith.constant 0 : i32
    %c0_i32_1 = arith.constant 0 : i32
    return %arg0, %c0_i32, %c0_i32_0 : i32, i32, i32
  }
  func.func @transform_1(%arg0: i32) -> (i32, i32, i32) {
    %c0_i32 = arith.constant 0 : i32
    %c0_i32_0 = arith.constant 0 : i32
    %c0_i32_1 = arith.constant 0 : i32
    %c0_i32_2 = arith.constant 0 : i32
    return %c0_i32, %c0_i32_0, %c0_i32_1 : i32, i32, i32
  }
  func.func @transform_2(%arg0: i32) -> (i32, i32) {
    %c0_i32 = arith.constant 0 : i32
    %c0_i32_0 = arith.constant 0 : i32
    %c0_i32_1 = arith.constant 0 : i32
    return %c0_i32, %c0_i32_0 : i32, i32
  }
  func.func @transform_3(%arg0: i32) -> (i32, i32, i32) {
    %c0_i32 = arith.constant 0 : i32
    %c0_i32_0 = arith.constant 0 : i32
    %c0_i32_1 = arith.constant 0 : i32
    %c0_i32_2 = arith.constant 0 : i32
    return %c0_i32, %c0_i32_0, %c0_i32_1 : i32, i32, i32
  }
  func.func @transform_4(%arg0: i32) -> (i32, i32) {
    %c0_i32 = arith.constant 0 : i32
    %c0_i32_0 = arith.constant 0 : i32
    %c0_i32_1 = arith.constant 0 : i32
    return %c0_i32, %c0_i32_0 : i32, i32
  }
  func.func @transform_5(%arg0: i32) -> (i32, i32, i32) {
    %c0_i32 = arith.constant 0 : i32
    %c0_i32_0 = arith.constant 0 : i32
    %c0_i32_1 = arith.constant 0 : i32
    %c0_i32_2 = arith.constant 0 : i32
    return %c0_i32, %c0_i32_0, %c0_i32_1 : i32, i32, i32
  }
  func.func @transform_6(%arg0: i32) -> (i32, i32) {
    %c0_i32 = arith.constant 0 : i32
    %c0_i32_0 = arith.constant 0 : i32
    %c0_i32_1 = arith.constant 0 : i32
    return %c0_i32, %c0_i32_0 : i32, i32
  }
  func.func @transform_7(%arg0: i32) -> (i32, i32) {
    %c0_i32 = arith.constant 0 : i32
    %c0_i32_0 = arith.constant 0 : i32
    %c0_i32_1 = arith.constant 0 : i32
    return %c0_i32, %c0_i32_0 : i32, i32
  }
  func.func @transform_8(%arg0: i32) -> (i32, i32) {
    %c0_i32 = arith.constant 0 : i32
    %c0_i32_0 = arith.constant 0 : i32
    %c0_i32_1 = arith.constant 0 : i32
    return %c0_i32, %c0_i32_0 : i32, i32
  }
  func.func @transform_9(%arg0: i32) -> (i32, i32) {
    %c0_i32 = arith.constant 0 : i32
    %c0_i32_0 = arith.constant 0 : i32
    return %arg0, %c0_i32 : i32, i32
  }
}

</mosaic_0001>

<llo_original>
// kernel: tpu_custom_call.1
$region0: #{tpu_custom_call.1}
  #allocation0 [shape = 'u32[]', space=smem, size = 0x4, offset = 0x4, fixed_abs, tag = 'smem constant byte address 0x4 - core index']
  #allocation1 [shape = 'u32[72,128]{1,0:T(1,128)}', space=vmem, size = 0x9000, scoped, tag = 'internal scratch']
  #allocation2 [shape = 'f32[1,1]{1,0:T(1,128)S(1)}', space=vmem, size = 0x200, scoped, tag = 'scoped memory for tpu_custom_call.1']
  %s0 = inlined_call_operand.vmem [shape: f32[1,800,8], index: 0, kind: input, shape index: {}]
  %s1 = inlined_call_operand.vmem [shape: f32[3,8,128], index: 1, kind: input, shape index: {}]
  %s2 = inlined_call_operand.vmem [shape: f32[1,128], index: 2, kind: input, shape index: {}]
  %s3 = inlined_call_operand.vmem [shape: f32[3,128,64], index: 3, kind: input, shape index: {}]
  %s4 = inlined_call_operand.vmem [shape: f32[1,64], index: 4, kind: input, shape index: {}]
  %s5 = inlined_call_operand.vmem [shape: f32[96,64,64], index: 5, kind: input, shape index: {}]
  %s6 = inlined_call_operand.vmem [shape: f32[1,64], index: 6, kind: input, shape index: {}]
  %s7 = inlined_call_operand.vmem [shape: f32[64,1], index: 7, kind: input, shape index: {}]
  %s8 = inlined_call_operand.<no memory space> [shape: f32[1,1], index: 8, kind: input, shape index: {}]
  %s9 = inlined_call_operand.vmem [shape: f32[8,1], index: 9, kind: output, shape index: {}]
  %s10 = sld [smem:[#allocation0]]
  $region46: #{tpu_custom_call.1} parent=0
    _
  %s12 = ssub.s32 1, %s10
  %s13 = scalar_select 0, %s12, %s10
  %v14 = vstv %s8
  %15 = vst [vmem:[#allocation2] sm:$0x1] %v14
  // Predicated region
  $region2: #{tpu_custom_call.1} parent=0 // pred_check
    _
  $region3: #{tpu_custom_call.1} parent=0 // pred_check_branch
    %17 = sbr.rel (0) target = $region5
  $region4: #{tpu_custom_call.1} parent=0 // pred_region
    _
  $region5: #{tpu_custom_call.1} parent=0 // pred_fallthru
    _
  // Predicated region
  $region6: #{tpu_custom_call.1} parent=0 // pred_check
    _
  $region7: #{tpu_custom_call.1} parent=0 // pred_check_branch
    %19 = sbr.rel (0) target = $region9
  $region8: #{tpu_custom_call.1} parent=0 // pred_region
    _
  $region9: #{tpu_custom_call.1} parent=0 // pred_fallthru
    _
  // Predicated region
  $region10: #{tpu_custom_call.1} parent=0 // pred_check
    _
  $region11: #{tpu_custom_call.1} parent=0 // pred_check_branch
    %21 = sbr.rel (0) target = $region13
  $region12: #{tpu_custom_call.1} parent=0 // pred_region
    _
  $region13: #{tpu_custom_call.1} parent=0 // pred_fallthru
    _
  // Predicated region
  $region14: #{tpu_custom_call.1} parent=0 // pred_check
    _
  $region15: #{tpu_custom_call.1} parent=0 // pred_check_branch
    %23 = sbr.rel (0) target = $region17
  $region16: #{tpu_custom_call.1} parent=0 // pred_region
    _
  $region17: #{tpu_custom_call.1} parent=0 // pred_fallthru
    _
  // Predicated region
  $region18: #{tpu_custom_call.1} parent=0 // pred_check
    _
  $region19: #{tpu_custom_call.1} parent=0 // pred_check_branch
    %25 = sbr.rel (0) target = $region21
  $region20: #{tpu_custom_call.1} parent=0 // pred_region
    _
  $region21: #{tpu_custom_call.1} parent=0 // pred_fallthru
    _
  // Predicated region
  $region22: #{tpu_custom_call.1} parent=0 // pred_check
    _
  $region23: #{tpu_custom_call.1} parent=0 // pred_check_branch
    %27 = sbr.rel (0) target = $region25
  $region24: #{tpu_custom_call.1} parent=0 // pred_region
    _
  $region25: #{tpu_custom_call.1} parent=0 // pred_fallthru
    _
  // Predicated region
  $region26: #{tpu_custom_call.1} parent=0 // pred_check
    _
  $region27: #{tpu_custom_call.1} parent=0 // pred_check_branch
    %29 = sbr.rel (0) target = $region29
  $region28: #{tpu_custom_call.1} parent=0 // pred_region
    _
  $region29: #{tpu_custom_call.1} parent=0 // pred_fallthru
    _
  // Predicated region
  $region30: #{tpu_custom_call.1} parent=0 // pred_check
    _
  $region31: #{tpu_custom_call.1} parent=0 // pred_check_branch
    %31 = sbr.rel (0) target = $region33
  $region32: #{tpu_custom_call.1} parent=0 // pred_region
    _
  $region33: #{tpu_custom_call.1} parent=0 // pred_fallthru
    _
  // Predicated region
  $region34: #{tpu_custom_call.1} parent=0 // pred_check
    _
  $region35: #{tpu_custom_call.1} parent=0 // pred_check_branch
    %33 = sbr.rel (0) target = $region37
  $region36: #{tpu_custom_call.1} parent=0 // pred_region
    _
  $region37: #{tpu_custom_call.1} parent=0 // pred_fallthru
    _
  %v34 = vld [vmem:[%s0] sm:$0xff]
  %v35 = vld [vmem:[%s0 + $0x8] sm:$0xff]
  %v36 = vld [vmem:[%s0 + $0x10] sm:$0xff]
  %v37 = vld [vmem:[%s0 + $0x18] sm:$0xff]
  %v38 = vld [vmem:[%s0 + $0x20] sm:$0xff]
  %v39 = vld [vmem:[%s0 + $0x28] sm:$0xff]
  %v40 = vld [vmem:[%s0 + $0x30] sm:$0xff]
  %v41 = vld [vmem:[%s0 + $0x38] sm:$0xff]
  %v42 = vld [vmem:[%s0 + $0x40] sm:$0xff]
  %v43 = vld [vmem:[%s0 + $0x48] sm:$0xff]
  %v44 = vld [vmem:[%s0 + $0x50] sm:$0xff]
  %v45 = vld [vmem:[%s0 + $0x58] sm:$0xff]
  %v46 = vld [vmem:[%s0 + $0x60] sm:$0xff]
  %v47 = vld [vmem:[%s0 + $0x68] sm:$0xff]
  %v48 = vld [vmem:[%s0 + $0x70] sm:$0xff]
  %v49 = vld [vmem:[%s0 + $0x78] sm:$0xff]
  %v50 = vld [vmem:[%s0 + $0x80] sm:$0xff]
  %v51 = vld [vmem:[%s0 + $0x88] sm:$0xff]
  %v52 = vld [vmem:[%s0 + $0x90] sm:$0xff]
  %v53 = vld [vmem:[%s0 + $0x98] sm:$0xff]
  %v54 = vld [vmem:[%s0 + $0xa0] sm:$0xff]
  %v55 = vld [vmem:[%s0 + $0xa8] sm:$0xff]
  %v56 = vld [vmem:[%s0 + $0xb0] sm:$0xff]
  %v57 = vld [vmem:[%s0 + $0xb8] sm:$0xff]
  %v58 = vld [vmem:[%s0 + $0xc0] sm:$0xff]
  %v59 = vld [vmem:[%s0 + $0xc8] sm:$0xff]
  %v60 = vld [vmem:[%s0 + $0xd0] sm:$0xff]
  %v61 = vld [vmem:[%s0 + $0xd8] sm:$0xff]
  %v62 = vld [vmem:[%s0 + $0xe0] sm:$0xff]
  %v63 = vld [vmem:[%s0 + $0xe8] sm:$0xff]
  %v64 = vld [vmem:[%s0 + $0xf0] sm:$0xff]
  %v65 = vld [vmem:[%s0 + $0xf8] sm:$0xff]
  %v66 = vld [vmem:[%s0 + $0x100] sm:$0xff]
  %v67 = vld [vmem:[%s0 + $0x108] sm:$0xff]
  %v68 = vld [vmem:[%s0 + $0x110] sm:$0xff]
  %v69 = vld [vmem:[%s0 + $0x118] sm:$0xff]
  %v70 = vld [vmem:[%s0 + $0x120] sm:$0xff]
  %v71 = vld [vmem:[%s0 + $0x128] sm:$0xff]
  %v72 = vld [vmem:[%s0 + $0x130] sm:$0xff]
  %v73 = vld [vmem:[%s0 + $0x138] sm:$0xff]
  %v74 = vld [vmem:[%s0 + $0x140] sm:$0xff]
  %v75 = vld [vmem:[%s0 + $0x148] sm:$0xff]
  %v76 = vld [vmem:[%s0 + $0x150] sm:$0xff]
  %v77 = vld [vmem:[%s0 + $0x158] sm:$0xff]
  %v78 = vld [vmem:[%s0 + $0x160] sm:$0xff]
  %v79 = vld [vmem:[%s0 + $0x168] sm:$0xff]
  %v80 = vld [vmem:[%s0 + $0x170] sm:$0xff]
  %v81 = vld [vmem:[%s0 + $0x178] sm:$0xff]
  %v82 = vld [vmem:[%s0 + $0x180] sm:$0xff]
  %v83 = vld [vmem:[%s0 + $0x188] sm:$0xff]
  %v84 = vld [vmem:[%s0 + $0x190] sm:$0xff]
  %v85 = vld [vmem:[%s0 + $0x198] sm:$0xff]
  %v86 = vld [vmem:[%s0 + $0x1a0] sm:$0xff]
  %v87 = vld [vmem:[%s0 + $0x1a8] sm:$0xff]
  %v88 = vld [vmem:[%s0 + $0x1b0] sm:$0xff]
  %v89 = vld [vmem:[%s0 + $0x1b8] sm:$0xff]
  %v90 = vld [vmem:[%s0 + $0x1c0] sm:$0xff]
  %v91 = vld [vmem:[%s0 + $0x1c8] sm:$0xff]
  %v92 = vld [vmem:[%s0 + $0x1d0] sm:$0xff]
  %v93 = vld [vmem:[%s0 + $0x1d8] sm:$0xff]
  %v94 = vld [vmem:[%s0 + $0x1e0] sm:$0xff]
  %v95 = vld [vmem:[%s0 + $0x1e8] sm:$0xff]
  %v96 = vld [vmem:[%s0 + $0x1f0] sm:$0xff]
  %v97 = vld [vmem:[%s0 + $0x1f8] sm:$0xff]
  %v98 = vld [vmem:[%s0 + $0x200] sm:$0xff]
  %v99 = vld [vmem:[%s0 + $0x208] sm:$0xff]
  %v100 = vld [vmem:[%s0 + $0x210] sm:$0xff]
  %v101 = vld [vmem:[%s0 + $0x218] sm:$0xff]
  %v102 = vld [vmem:[%s0 + $0x220] sm:$0xff]
  %v103 = vld [vmem:[%s0 + $0x228] sm:$0xff]
  %v104 = vld [vmem:[%s0 + $0x230] sm:$0xff]
  %v105 = vld [vmem:[%s0 + $0x238] sm:$0xff]
  %v106 = vld [vmem:[%s0 + $0x240] sm:$0xff]
  %v107 = vld [vmem:[%s0 + $0x248] sm:$0xff]
  %v108 = vld [vmem:[%s0 + $0x250] sm:$0xff]
  %v109 = vld [vmem:[%s0 + $0x258] sm:$0xff]
  %v110 = vld [vmem:[%s0 + $0x260] sm:$0xff]
  %v111 = vld [vmem:[%s0 + $0x268] sm:$0xff]
  %v112 = vld [vmem:[%s0 + $0x270] sm:$0xff]
  %v113 = vld [vmem:[%s0 + $0x278] sm:$0xff]
  %v114 = vld [vmem:[%s0 + $0x280] sm:$0xff]
  %v115 = vld [vmem:[%s0 + $0x288] sm:$0xff]
  %v116 = vld [vmem:[%s0 + $0x290] sm:$0xff]
  %v117 = vld [vmem:[%s0 + $0x298] sm:$0xff]
  %v118 = vld [vmem:[%s0 + $0x2a0] sm:$0xff]
  %v119 = vld [vmem:[%s0 + $0x2a8] sm:$0xff]
  %v120 = vld [vmem:[%s0 + $0x2b0] sm:$0xff]
  %v121 = vld [vmem:[%s0 + $0x2b8] sm:$0xff]
  %v122 = vld [vmem:[%s0 + $0x2c0] sm:$0xff]
  %v123 = vld [vmem:[%s0 + $0x2c8] sm:$0xff]
  %v124 = vld [vmem:[%s0 + $0x2d0] sm:$0xff]
  %v125 = vld [vmem:[%s0 + $0x2d8] sm:$0xff]
  %v126 = vld [vmem:[%s0 + $0x2e0] sm:$0xff]
  %v127 = vld [vmem:[%s0 + $0x2e8] sm:$0xff]
  %v128 = vld [vmem:[%s0 + $0x2f0] sm:$0xff]
  %v129 = vld [vmem:[%s0 + $0x2f8] sm:$0xff]
  %v130 = vld [vmem:[%s0 + $0x300] sm:$0xff]
  %v131 = vld [vmem:[%s0 + $0x308] sm:$0xff]
  %v132 = vld [vmem:[%s0 + $0x310] sm:$0xff]
  %v133 = vld [vmem:[%s0 + $0x318] sm:$0xff]
  %v134 = vld [vmem:[%s1] sm:$0xff]
  %s135 = scalar_lea.vmem %s1, 8
  %v136 = vld [vmem:[%s135] sm:$0xff]
  %vm137 = vcmask 64512
  %v139 = vsel %vm137, %v35, 0
  %v142 = vsel %vm137, %v36, 0
  %v145 = vsel %vm137, %v37, 0
  %v148 = vsel %vm137, %v38, 0
  %v151 = vsel %vm137, %v39, 0
  %v154 = vsel %vm137, %v40, 0
  %v157 = vsel %vm137, %v41, 0
  %v160 = vsel %vm137, %v42, 0
  %v163 = vsel %vm137, %v43, 0
  %v166 = vsel %vm137, %v44, 0
  %v169 = vsel %vm137, %v45, 0
  %v172 = vsel %vm137, %v46, 0
  %v175 = vsel %vm137, %v47, 0
  %v178 = vsel %vm137, %v48, 0
  %v181 = vsel %vm137, %v49, 0
  %v184 = vsel %vm137, %v50, 0
  %v187 = vsel %vm137, %v51, 0
  %v190 = vsel %vm137, %v52, 0
  %v193 = vsel %vm137, %v53, 0
  %v196 = vsel %vm137, %v54, 0
  %v199 = vsel %vm137, %v55, 0
  %v202 = vsel %vm137, %v56, 0
  %v205 = vsel %vm137, %v57, 0
  %v208 = vsel %vm137, %v58, 0
  %v211 = vsel %vm137, %v59, 0
  %v214 = vsel %vm137, %v60, 0
  %v217 = vsel %vm137, %v61, 0
  %v220 = vsel %vm137, %v62, 0
  %v223 = vsel %vm137, %v63, 0
  %v226 = vsel %vm137, %v64, 0
  %v229 = vsel %vm137, %v65, 0
  %v232 = vsel %vm137, %v66, 0
  %v235 = vsel %vm137, %v67, 0
  %v238 = vsel %vm137, %v68, 0
  %v241 = vsel %vm137, %v69, 0
  %v244 = vsel %vm137, %v70, 0
  %v247 = vsel %vm137, %v71, 0
  %v250 = vsel %vm137, %v72, 0
  %v253 = vsel %vm137, %v73, 0
  %v256 = vsel %vm137, %v74, 0
  %v259 = vsel %vm137, %v75, 0
  %v262 = vsel %vm137, %v76, 0
  %v265 = vsel %vm137, %v77, 0
  %v268 = vsel %vm137, %v78, 0
  %v271 = vsel %vm137, %v79, 0
  %v274 = vsel %vm137, %v80, 0
  %v277 = vsel %vm137, %v81, 0
  %v280 = vsel %vm137, %v82, 0
  %v283 = vsel %vm137, %v83, 0
  %v286 = vsel %vm137, %v84, 0
  %v289 = vsel %vm137, %v85, 0
  %v292 = vsel %vm137, %v86, 0
  %v295 = vsel %vm137, %v87, 0
  %v298 = vsel %vm137, %v88, 0
  %v301 = vsel %vm137, %v89, 0
  %v304 = vsel %vm137, %v90, 0
  %v307 = vsel %vm137, %v91, 0
  %v310 = vsel %vm137, %v92, 0
  %v313 = vsel %vm137, %v93, 0
  %v316 = vsel %vm137, %v94, 0
  %v319 = vsel %vm137, %v95, 0
  %v322 = vsel %vm137, %v96, 0
  %v325 = vsel %vm137, %v97, 0
  %v328 = vsel %vm137, %v98, 0
  %v331 = vsel %vm137, %v99, 0
  %v334 = vsel %vm137, %v100, 0
  %v337 = vsel %vm137, %v101, 0
  %v340 = vsel %vm137, %v102, 0
  %v343 = vsel %vm137, %v103, 0
  %v346 = vsel %vm137, %v104, 0
  %v349 = vsel %vm137, %v105, 0
  %v352 = vsel %vm137, %v106, 0
  %v355 = vsel %vm137, %v107, 0
  %v358 = vsel %vm137, %v108, 0
  %v361 = vsel %vm137, %v109, 0
  %v364 = vsel %vm137, %v110, 0
  %v367 = vsel %vm137, %v111, 0
  %v370 = vsel %vm137, %v112, 0
  %v373 = vsel %vm137, %v113, 0
  %v376 = vsel %vm137, %v114, 0
  %v379 = vsel %vm137, %v115, 0
  %v382 = vsel %vm137, %v116, 0
  %v385 = vsel %vm137, %v117, 0
  %v388 = vsel %vm137, %v118, 0
  %v391 = vsel %vm137, %v119, 0
  %v394 = vsel %vm137, %v120, 0
  %v397 = vsel %vm137, %v121, 0
  %v400 = vsel %vm137, %v122, 0
  %v403 = vsel %vm137, %v123, 0
  %v406 = vsel %vm137, %v124, 0
  %v409 = vsel %vm137, %v125, 0
  %v412 = vsel %vm137, %v126, 0
  %v415 = vsel %vm137, %v127, 0
  %v418 = vsel %vm137, %v128, 0
  %v421 = vsel %vm137, %v129, 0
  %v424 = vsel %vm137, %v130, 0
  %v427 = vsel %vm137, %v131, 0
  %v430 = vsel %vm137, %v132, 0
  %432 = vmatpush.msra.mxu0 0.0
  %433 = vmatpush.msra.mxu0 0.0
  %434 = vmatpush.msra.mxu0 0.0
  %435 = vmatpush.msra.mxu0 0.0
  %436 = vmatpush.msra.mxu0 0.0
  %437 = vmatpush.msra.mxu0 0.0
  %438 = vmatpush.msra.mxu0 0.0
  %439 = vmatpush.msra.mxu0 0.0
  %440 = vmatpush.msra.mxu0 0.0
  %441 = vmatpush.msra.mxu0 0.0
  %442 = vmatpush.msra.mxu0 0.0
  %443 = vmatpush.msra.mxu0 0.0
  %444 = vmatpush.msra.mxu0 0.0
  %445 = vmatpush.msra.mxu0 0.0
  %446 = vmatpush.msra.mxu0 0.0
  %447 = vmatpush.msra.mxu0 %v136
  %448 = vmatmul.f32.gmra.mxu0 %v139
  %v449 = vpop.f32.mrf.mxu0
  %v450 = vadd.f32 0.0, %v449
  %451 = vmatmul.f32.gmra.mxu0 %v142
  %v452 = vpop.f32.mrf.mxu0
  %v453 = vadd.f32 0.0, %v452
  %454 = vmatmul.f32.gmra.mxu0 %v145
  %v455 = vpop.f32.mrf.mxu0
  %v456 = vadd.f32 0.0, %v455
  %457 = vmatmul.f32.gmra.mxu0 %v148
  %v458 = vpop.f32.mrf.mxu0
  %v459 = vadd.f32 0.0, %v458
  %460 = vmatmul.f32.gmra.mxu0 %v151
  %v461 = vpop.f32.mrf.mxu0
  %v462 = vadd.f32 0.0, %v461
  %463 = vmatmul.f32.gmra.mxu0 %v154
  %v464 = vpop.f32.mrf.mxu0
  %v465 = vadd.f32 0.0, %v464
  %466 = vmatmul.f32.gmra.mxu0 %v157
  %v467 = vpop.f32.mrf.mxu0
  %v468 = vadd.f32 0.0, %v467
  %469 = vmatmul.f32.gmra.mxu0 %v160
  %v470 = vpop.f32.mrf.mxu0
  %v471 = vadd.f32 0.0, %v470
  %472 = vmatmul.f32.gmra.mxu0 %v163
  %v473 = vpop.f32.mrf.mxu0
  %v474 = vadd.f32 0.0, %v473
  %475 = vmatmul.f32.gmra.mxu0 %v166
  %v476 = vpop.f32.mrf.mxu0
  %v477 = vadd.f32 0.0, %v476
  %478 = vmatmul.f32.gmra.mxu0 %v169
  %v479 = vpop.f32.mrf.mxu0
  %v480 = vadd.f32 0.0, %v479
  %481 = vmatmul.f32.gmra.mxu0 %v172
  %v482 = vpop.f32.mrf.mxu0
  %v483 = vadd.f32 0.0, %v482
  %484 = vmatmul.f32.gmra.mxu0 %v175
  %v485 = vpop.f32.mrf.mxu0
  %v486 = vadd.f32 0.0, %v485
  %487 = vmatmul.f32.gmra.mxu0 %v178
  %v488 = vpop.f32.mrf.mxu0
  %v489 = vadd.f32 0.0, %v488
  %490 = vmatmul.f32.gmra.mxu0 %v181
  %v491 = vpop.f32.mrf.mxu0
  %v492 = vadd.f32 0.0, %v491
  %493 = vmatmul.f32.gmra.mxu0 %v184
  %v494 = vpop.f32.mrf.mxu0
  %v495 = vadd.f32 0.0, %v494
  %496 = vmatmul.f32.gmra.mxu0 %v187
  %v497 = vpop.f32.mrf.mxu0
  %v498 = vadd.f32 0.0, %v497
  %499 = vmatmul.f32.gmra.mxu0 %v190
  %v500 = vpop.f32.mrf.mxu0
  %v501 = vadd.f32 0.0, %v500
  %502 = vmatmul.f32.gmra.mxu0 %v193
  %v503 = vpop.f32.mrf.mxu0
  %v504 = vadd.f32 0.0, %v503
  %505 = vmatmul.f32.gmra.mxu0 %v196
  %v506 = vpop.f32.mrf.mxu0
  %v507 = vadd.f32 0.0, %v506
  %508 = vmatmul.f32.gmra.mxu0 %v199
  %v509 = vpop.f32.mrf.mxu0
  %v510 = vadd.f32 0.0, %v509
  %511 = vmatmul.f32.gmra.mxu0 %v202
  %v512 = vpop.f32.mrf.mxu0
  %v513 = vadd.f32 0.0, %v512
  %514 = vmatmul.f32.gmra.mxu0 %v205
  %v515 = vpop.f32.mrf.mxu0
  %v516 = vadd.f32 0.0, %v515
  %517 = vmatmul.f32.gmra.mxu0 %v208
  %v518 = vpop.f32.mrf.mxu0
  %v519 = vadd.f32 0.0, %v518
  %520 = vmatmul.f32.gmra.mxu0 %v211
  %v521 = vpop.f32.mrf.mxu0
  %v522 = vadd.f32 0.0, %v521
  %523 = vmatmul.f32.gmra.mxu0 %v214
  %v524 = vpop.f32.mrf.mxu0
  %v525 = vadd.f32 0.0, %v524
  %526 = vmatmul.f32.gmra.mxu0 %v217
  %v527 = vpop.f32.mrf.mxu0
  %v528 = vadd.f32 0.0, %v527
  %529 = vmatmul.f32.gmra.mxu0 %v220
  %v530 = vpop.f32.mrf.mxu0
  %v531 = vadd.f32 0.0, %v530
  %532 = vmatmul.f32.gmra.mxu0 %v223
  %v533 = vpop.f32.mrf.mxu0
  %v534 = vadd.f32 0.0, %v533
  %535 = vmatmul.f32.gmra.mxu0 %v226
  %v536 = vpop.f32.mrf.mxu0
  %v537 = vadd.f32 0.0, %v536
  %538 = vmatmul.f32.gmra.mxu0 %v229
  %v539 = vpop.f32.mrf.mxu0
  %v540 = vadd.f32 0.0, %v539
  %541 = vmatmul.f32.gmra.mxu0 %v232
  %v542 = vpop.f32.mrf.mxu0
  %v543 = vadd.f32 0.0, %v542
  %544 = vmatmul.f32.gmra.mxu0 %v235
  %v545 = vpop.f32.mrf.mxu0
  %v546 = vadd.f32 0.0, %v545
  %547 = vmatmul.f32.gmra.mxu0 %v238
  %v548 = vpop.f32.mrf.mxu0
  %v549 = vadd.f32 0.0, %v548
  %550 = vmatmul.f32.gmra.mxu0 %v241
  %v551 = vpop.f32.mrf.mxu0
  %v552 = vadd.f32 0.0, %v551
  %553 = vmatmul.f32.gmra.mxu0 %v244
  %v554 = vpop.f32.mrf.mxu0
  %v555 = vadd.f32 0.0, %v554
  %556 = vmatmul.f32.gmra.mxu0 %v247
  %v557 = vpop.f32.mrf.mxu0
  %v558 = vadd.f32 0.0, %v557
  %559 = vmatmul.f32.gmra.mxu0 %v250
  %v560 = vpop.f32.mrf.mxu0
  %v561 = vadd.f32 0.0, %v560
  %562 = vmatmul.f32.gmra.mxu0 %v253
  %v563 = vpop.f32.mrf.mxu0
  %v564 = vadd.f32 0.0, %v563
  %565 = vmatmul.f32.gmra.mxu0 %v256
  %v566 = vpop.f32.mrf.mxu0
  %v567 = vadd.f32 0.0, %v566
  %568 = vmatmul.f32.gmra.mxu0 %v259
  %v569 = vpop.f32.mrf.mxu0
  %v570 = vadd.f32 0.0, %v569
  %571 = vmatmul.f32.gmra.mxu0 %v262
  %v572 = vpop.f32.mrf.mxu0
  %v573 = vadd.f32 0.0, %v572
  %574 = vmatmul.f32.gmra.mxu0 %v265
  %v575 = vpop.f32.mrf.mxu0
  %v576 = vadd.f32 0.0, %v575
  %577 = vmatmul.f32.gmra.mxu0 %v268
  %v578 = vpop.f32.mrf.mxu0
  %v579 = vadd.f32 0.0, %v578
  %580 = vmatmul.f32.gmra.mxu0 %v271
  %v581 = vpop.f32.mrf.mxu0
  %v582 = vadd.f32 0.0, %v581
  %583 = vmatmul.f32.gmra.mxu0 %v274
  %v584 = vpop.f32.mrf.mxu0
  %v585 = vadd.f32 0.0, %v584
  %586 = vmatmul.f32.gmra.mxu0 %v277
  %v587 = vpop.f32.mrf.mxu0
  %v588 = vadd.f32 0.0, %v587
  %589 = vmatmul.f32.gmra.mxu0 %v280
  %v590 = vpop.f32.mrf.mxu0
  %v591 = vadd.f32 0.0, %v590
  %592 = vmatmul.f32.gmra.mxu0 %v283
  %v593 = vpop.f32.mrf.mxu0
  %v594 = vadd.f32 0.0, %v593
  %595 = vmatmul.f32.gmra.mxu0 %v286
  %v596 = vpop.f32.mrf.mxu0
  %v597 = vadd.f32 0.0, %v596
  %598 = vmatmul.f32.gmra.mxu0 %v289
  %v599 = vpop.f32.mrf.mxu0
  %v600 = vadd.f32 0.0, %v599
  %601 = vmatmul.f32.gmra.mxu0 %v292
  %v602 = vpop.f32.mrf.mxu0
  %v603 = vadd.f32 0.0, %v602
  %604 = vmatmul.f32.gmra.mxu0 %v295
  %v605 = vpop.f32.mrf.mxu0
  %v606 = vadd.f32 0.0, %v605
  %607 = vmatmul.f32.gmra.mxu0 %v298
  %v608 = vpop.f32.mrf.mxu0
  %v609 = vadd.f32 0.0, %v608
  %610 = vmatmul.f32.gmra.mxu0 %v301
  %v611 = vpop.f32.mrf.mxu0
  %v612 = vadd.f32 0.0, %v611
  %613 = vmatmul.f32.gmra.mxu0 %v304
  %v614 = vpop.f32.mrf.mxu0
  %v615 = vadd.f32 0.0, %v614
  %616 = vmatmul.f32.gmra.mxu0 %v307
  %v617 = vpop.f32.mrf.mxu0
  %v618 = vadd.f32 0.0, %v617
  %619 = vmatmul.f32.gmra.mxu0 %v310
  %v620 = vpop.f32.mrf.mxu0
  %v621 = vadd.f32 0.0, %v620
  %622 = vmatmul.f32.gmra.mxu0 %v313
  %v623 = vpop.f32.mrf.mxu0
  %v624 = vadd.f32 0.0, %v623
  %625 = vmatmul.f32.gmra.mxu0 %v316
  %v626 = vpop.f32.mrf.mxu0
  %v627 = vadd.f32 0.0, %v626
  %628 = vmatmul.f32.gmra.mxu0 %v319
  %v629 = vpop.f32.mrf.mxu0
  %v630 = vadd.f32 0.0, %v629
  %631 = vmatmul.f32.gmra.mxu0 %v322
  %v632 = vpop.f32.mrf.mxu0
  %v633 = vadd.f32 0.0, %v632
  %634 = vmatmul.f32.gmra.mxu0 %v325
  %v635 = vpop.f32.mrf.mxu0
  %v636 = vadd.f32 0.0, %v635
  %637 = vmatmul.f32.gmra.mxu0 %v328
  %v638 = vpop.f32.mrf.mxu0
  %v639 = vadd.f32 0.0, %v638
  %640 = vmatmul.f32.gmra.mxu0 %v331
  %v641 = vpop.f32.mrf.mxu0
  %v642 = vadd.f32 0.0, %v641
  %643 = vmatmul.f32.gmra.mxu0 %v334
  %v644 = vpop.f32.mrf.mxu0
  %v645 = vadd.f32 0.0, %v644
  %646 = vmatmul.f32.gmra.mxu0 %v337
  %v647 = vpop.f32.mrf.mxu0
  %v648 = vadd.f32 0.0, %v647
  %649 = vmatmul.f32.gmra.mxu0 %v340
  %v650 = vpop.f32.mrf.mxu0
  %v651 = vadd.f32 0.0, %v650
  %652 = vmatmul.f32.gmra.mxu0 %v343
  %v653 = vpop.f32.mrf.mxu0
  %v654 = vadd.f32 0.0, %v653
  %655 = vmatmul.f32.gmra.mxu0 %v346
  %v656 = vpop.f32.mrf.mxu0
  %v657 = vadd.f32 0.0, %v656
  %658 = vmatmul.f32.gmra.mxu0 %v349
  %v659 = vpop.f32.mrf.mxu0
  %v660 = vadd.f32 0.0, %v659
  %661 = vmatmul.f32.gmra.mxu0 %v352
  %v662 = vpop.f32.mrf.mxu0
  %v663 = vadd.f32 0.0, %v662
  %664 = vmatmul.f32.gmra.mxu0 %v355
  %v665 = vpop.f32.mrf.mxu0
  %v666 = vadd.f32 0.0, %v665
  %667 = vmatmul.f32.gmra.mxu0 %v358
  %v668 = vpop.f32.mrf.mxu0
  %v669 = vadd.f32 0.0, %v668
  %670 = vmatmul.f32.gmra.mxu0 %v361
  %v671 = vpop.f32.mrf.mxu0
  %v672 = vadd.f32 0.0, %v671
  %673 = vmatmul.f32.gmra.mxu0 %v364
  %v674 = vpop.f32.mrf.mxu0
  %v675 = vadd.f32 0.0, %v674
  %676 = vmatmul.f32.gmra.mxu0 %v367
  %v677 = vpop.f32.mrf.mxu0
  %v678 = vadd.f32 0.0, %v677
  %679 = vmatmul.f32.gmra.mxu0 %v370
  %v680 = vpop.f32.mrf.mxu0
  %v681 = vadd.f32 0.0, %v680
  %682 = vmatmul.f32.gmra.mxu0 %v373
  %v683 = vpop.f32.mrf.mxu0
  %v684 = vadd.f32 0.0, %v683
  %685 = vmatmul.f32.gmra.mxu0 %v376
  %v686 = vpop.f32.mrf.mxu0
  %v687 = vadd.f32 0.0, %v686
  %688 = vmatmul.f32.gmra.mxu0 %v379
  %v689 = vpop.f32.mrf.mxu0
  %v690 = vadd.f32 0.0, %v689
  %691 = vmatmul.f32.gmra.mxu0 %v382
  %v692 = vpop.f32.mrf.mxu0
  %v693 = vadd.f32 0.0, %v692
  %694 = vmatmul.f32.gmra.mxu0 %v385
  %v695 = vpop.f32.mrf.mxu0
  %v696 = vadd.f32 0.0, %v695
  %697 = vmatmul.f32.gmra.mxu0 %v388
  %v698 = vpop.f32.mrf.mxu0
  %v699 = vadd.f32 0.0, %v698
  %700 = vmatmul.f32.gmra.mxu0 %v391
  %v701 = vpop.f32.mrf.mxu0
  %v702 = vadd.f32 0.0, %v701
  %703 = vmatmul.f32.gmra.mxu0 %v394
  %v704 = vpop.f32.mrf.mxu0
  %v705 = vadd.f32 0.0, %v704
  %706 = vmatmul.f32.gmra.mxu0 %v397
  %v707 = vpop.f32.mrf.mxu0
  %v708 = vadd.f32 0.0, %v707
  %709 = vmatmul.f32.gmra.mxu0 %v400
  %v710 = vpop.f32.mrf.mxu0
  %v711 = vadd.f32 0.0, %v710
  %712 = vmatmul.f32.gmra.mxu0 %v403
  %v713 = vpop.f32.mrf.mxu0
  %v714 = vadd.f32 0.0, %v713
  %715 = vmatmul.f32.gmra.mxu0 %v406
  %v716 = vpop.f32.mrf.mxu0
  %v717 = vadd.f32 0.0, %v716
  %718 = vmatmul.f32.gmra.mxu0 %v409
  %v719 = vpop.f32.mrf.mxu0
  %v720 = vadd.f32 0.0, %v719
  %721 = vmatmul.f32.gmra.mxu0 %v412
  %v722 = vpop.f32.mrf.mxu0
  %v723 = vadd.f32 0.0, %v722
  %724 = vmatmul.f32.gmra.mxu0 %v415
  %v725 = vpop.f32.mrf.mxu0
  %v726 = vadd.f32 0.0, %v725
  %727 = vmatmul.f32.gmra.mxu0 %v418
  %v728 = vpop.f32.mrf.mxu0
  %v729 = vadd.f32 0.0, %v728
  %730 = vmatmul.f32.gmra.mxu0 %v421
  %v731 = vpop.f32.mrf.mxu0
  %v732 = vadd.f32 0.0, %v731
  %733 = vmatmul.f32.gmra.mxu0 %v424
  %v734 = vpop.f32.mrf.mxu0
  %v735 = vadd.f32 0.0, %v734
  %736 = vmatmul.f32.gmra.mxu0 %v427
  %v737 = vpop.f32.mrf.mxu0
  %v738 = vadd.f32 0.0, %v737
  %739 = vmatmul.f32.gmra.mxu0 %v430
  %v740 = vpop.f32.mrf.mxu0
  %v741 = vadd.f32 0.0, %v740
  %742 = vdwg.mxu0
  %v744 = vsel %vm137, %v34, 0
  %746 = vmatpush.msra.mxu0 0.0
  %747 = vmatpush.msra.mxu0 0.0
  %748 = vmatpush.msra.mxu0 0.0
  %749 = vmatpush.msra.mxu0 0.0
  %750 = vmatpush.msra.mxu0 0.0
  %751 = vmatpush.msra.mxu0 0.0
  %752 = vmatpush.msra.mxu0 0.0
  %753 = vmatpush.msra.mxu0 0.0
  %754 = vmatpush.msra.mxu0 0.0
  %755 = vmatpush.msra.mxu0 0.0
  %756 = vmatpush.msra.mxu0 0.0
  %757 = vmatpush.msra.mxu0 0.0
  %758 = vmatpush.msra.mxu0 0.0
  %759 = vmatpush.msra.mxu0 0.0
  %760 = vmatpush.msra.mxu0 0.0
  %761 = vmatpush.msra.mxu0 %v134
  %762 = vmatmul.f32.gmra.mxu0 %v744
  %v763 = vpop.f32.mrf.mxu0
  %v764 = vadd.f32 %v450, %v763
  %765 = vmatmul.f32.gmra.mxu0 %v139
  %v766 = vpop.f32.mrf.mxu0
  %v767 = vadd.f32 %v453, %v766
  %768 = vmatmul.f32.gmra.mxu0 %v142
  %v769 = vpop.f32.mrf.mxu0
  %v770 = vadd.f32 %v456, %v769
  %771 = vmatmul.f32.gmra.mxu0 %v145
  %v772 = vpop.f32.mrf.mxu0
  %v773 = vadd.f32 %v459, %v772
  %774 = vmatmul.f32.gmra.mxu0 %v148
  %v775 = vpop.f32.mrf.mxu0
  %v776 = vadd.f32 %v462, %v775
  %777 = vmatmul.f32.gmra.mxu0 %v151
  %v778 = vpop.f32.mrf.mxu0
  %v779 = vadd.f32 %v465, %v778
  %780 = vmatmul.f32.gmra.mxu0 %v154
  %v781 = vpop.f32.mrf.mxu0
  %v782 = vadd.f32 %v468, %v781
  %783 = vmatmul.f32.gmra.mxu0 %v157
  %v784 = vpop.f32.mrf.mxu0
  %v785 = vadd.f32 %v471, %v784
  %786 = vmatmul.f32.gmra.mxu0 %v160
  %v787 = vpop.f32.mrf.mxu0
  %v788 = vadd.f32 %v474, %v787
  %789 = vmatmul.f32.gmra.mxu0 %v163
  %v790 = vpop.f32.mrf.mxu0
  %v791 = vadd.f32 %v477, %v790
  %792 = vmatmul.f32.gmra.mxu0 %v166
  %v793 = vpop.f32.mrf.mxu0
  %v794 = vadd.f32 %v480, %v793
  %795 = vmatmul.f32.gmra.mxu0 %v169
  %v796 = vpop.f32.mrf.mxu0
  %v797 = vadd.f32 %v483, %v796
  %798 = vmatmul.f32.gmra.mxu0 %v172
  %v799 = vpop.f32.mrf.mxu0
  %v800 = vadd.f32 %v486, %v799
  %801 = vmatmul.f32.gmra.mxu0 %v175
  %v802 = vpop.f32.mrf.mxu0
  %v803 = vadd.f32 %v489, %v802
  %804 = vmatmul.f32.gmra.mxu0 %v178
  %v805 = vpop.f32.mrf.mxu0
  %v806 = vadd.f32 %v492, %v805
  %807 = vmatmul.f32.gmra.mxu0 %v181
  %v808 = vpop.f32.mrf.mxu0
  %v809 = vadd.f32 %v495, %v808
  %810 = vmatmul.f32.gmra.mxu0 %v184
  %v811 = vpop.f32.mrf.mxu0
  %v812 = vadd.f32 %v498, %v811
  %813 = vmatmul.f32.gmra.mxu0 %v187
  %v814 = vpop.f32.mrf.mxu0
  %v815 = vadd.f32 %v501, %v814
  %816 = vmatmul.f32.gmra.mxu0 %v190
  %v817 = vpop.f32.mrf.mxu0
  %v818 = vadd.f32 %v504, %v817
  %819 = vmatmul.f32.gmra.mxu0 %v193
  %v820 = vpop.f32.mrf.mxu0
  %v821 = vadd.f32 %v507, %v820
  %822 = vmatmul.f32.gmra.mxu0 %v196
  %v823 = vpop.f32.mrf.mxu0
  %v824 = vadd.f32 %v510, %v823
  %825 = vmatmul.f32.gmra.mxu0 %v199
  %v826 = vpop.f32.mrf.mxu0
  %v827 = vadd.f32 %v513, %v826
  %828 = vmatmul.f32.gmra.mxu0 %v202
  %v829 = vpop.f32.mrf.mxu0
  %v830 = vadd.f32 %v516, %v829
  %831 = vmatmul.f32.gmra.mxu0 %v205
  %v832 = vpop.f32.mrf.mxu0
  %v833 = vadd.f32 %v519, %v832
  %834 = vmatmul.f32.gmra.mxu0 %v208
  %v835 = vpop.f32.mrf.mxu0
  %v836 = vadd.f32 %v522, %v835
  %837 = vmatmul.f32.gmra.mxu0 %v211
  %v838 = vpop.f32.mrf.mxu0
  %v839 = vadd.f32 %v525, %v838
  %840 = vmatmul.f32.gmra.mxu0 %v214
  %v841 = vpop.f32.mrf.mxu0
  %v842 = vadd.f32 %v528, %v841
  %843 = vmatmul.f32.gmra.mxu0 %v217
  %v844 = vpop.f32.mrf.mxu0
  %v845 = vadd.f32 %v531, %v844
  %846 = vmatmul.f32.gmra.mxu0 %v220
  %v847 = vpop.f32.mrf.mxu0
  %v848 = vadd.f32 %v534, %v847
  %849 = vmatmul.f32.gmra.mxu0 %v223
  %v850 = vpop.f32.mrf.mxu0
  %v851 = vadd.f32 %v537, %v850
  %852 = vmatmul.f32.gmra.mxu0 %v226
  %v853 = vpop.f32.mrf.mxu0
  %v854 = vadd.f32 %v540, %v853
  %855 = vmatmul.f32.gmra.mxu0 %v229
  %v856 = vpop.f32.mrf.mxu0
  %v857 = vadd.f32 %v543, %v856
  %858 = vmatmul.f32.gmra.mxu0 %v232
  %v859 = vpop.f32.mrf.mxu0
  %v860 = vadd.f32 %v546, %v859
  %861 = vmatmul.f32.gmra.mxu0 %v235
  %v862 = vpop.f32.mrf.mxu0
  %v863 = vadd.f32 %v549, %v862
  %864 = vmatmul.f32.gmra.mxu0 %v238
  %v865 = vpop.f32.mrf.mxu0
  %v866 = vadd.f32 %v552, %v865
  %867 = vmatmul.f32.gmra.mxu0 %v241
  %v868 = vpop.f32.mrf.mxu0
  %v869 = vadd.f32 %v555, %v868
  %870 = vmatmul.f32.gmra.mxu0 %v244
  %v871 = vpop.f32.mrf.mxu0
  %v872 = vadd.f32 %v558, %v871
  %873 = vmatmul.f32.gmra.mxu0 %v247
  %v874 = vpop.f32.mrf.mxu0
  %v875 = vadd.f32 %v561, %v874
  %876 = vmatmul.f32.gmra.mxu0 %v250
  %v877 = vpop.f32.mrf.mxu0
  %v878 = vadd.f32 %v564, %v877
  %879 = vmatmul.f32.gmra.mxu0 %v253
  %v880 = vpop.f32.mrf.mxu0
  %v881 = vadd.f32 %v567, %v880
  %882 = vmatmul.f32.gmra.mxu0 %v256
  %v883 = vpop.f32.mrf.mxu0
  %v884 = vadd.f32 %v570, %v883
  %885 = vmatmul.f32.gmra.mxu0 %v259
  %v886 = vpop.f32.mrf.mxu0
  %v887 = vadd.f32 %v573, %v886
  %888 = vmatmul.f32.gmra.mxu0 %v262
  %v889 = vpop.f32.mrf.mxu0
  %v890 = vadd.f32 %v576, %v889
  %891 = vmatmul.f32.gmra.mxu0 %v265
  %v892 = vpop.f32.mrf.mxu0
  %v893 = vadd.f32 %v579, %v892
  %894 = vmatmul.f32.gmra.mxu0 %v268
  %v895 = vpop.f32.mrf.mxu0
  %v896 = vadd.f32 %v582, %v895
  %897 = vmatmul.f32.gmra.mxu0 %v271
  %v898 = vpop.f32.mrf.mxu0
  %v899 = vadd.f32 %v585, %v898
  %900 = vmatmul.f32.gmra.mxu0 %v274
  %v901 = vpop.f32.mrf.mxu0
  %v902 = vadd.f32 %v588, %v901
  %903 = vmatmul.f32.gmra.mxu0 %v277
  %v904 = vpop.f32.mrf.mxu0
  %v905 = vadd.f32 %v591, %v904
  %906 = vmatmul.f32.gmra.mxu0 %v280
  %v907 = vpop.f32.mrf.mxu0
  %v908 = vadd.f32 %v594, %v907
  %909 = vmatmul.f32.gmra.mxu0 %v283
  %v910 = vpop.f32.mrf.mxu0
  %v911 = vadd.f32 %v597, %v910
  %912 = vmatmul.f32.gmra.mxu0 %v286
  %v913 = vpop.f32.mrf.mxu0
  %v914 = vadd.f32 %v600, %v913
  %915 = vmatmul.f32.gmra.mxu0 %v289
  %v916 = vpop.f32.mrf.mxu0
  %v917 = vadd.f32 %v603, %v916
  %918 = vmatmul.f32.gmra.mxu0 %v292
  %v919 = vpop.f32.mrf.mxu0
  %v920 = vadd.f32 %v606, %v919
  %921 = vmatmul.f32.gmra.mxu0 %v295
  %v922 = vpop.f32.mrf.mxu0
  %v923 = vadd.f32 %v609, %v922
  %924 = vmatmul.f32.gmra.mxu0 %v298
  %v925 = vpop.f32.mrf.mxu0
  %v926 = vadd.f32 %v612, %v925
  %927 = vmatmul.f32.gmra.mxu0 %v301
  %v928 = vpop.f32.mrf.mxu0
  %v929 = vadd.f32 %v615, %v928
  %930 = vmatmul.f32.gmra.mxu0 %v304
  %v931 = vpop.f32.mrf.mxu0
  %v932 = vadd.f32 %v618, %v931
  %933 = vmatmul.f32.gmra.mxu0 %v307
  %v934 = vpop.f32.mrf.mxu0
  %v935 = vadd.f32 %v621, %v934
  %936 = vmatmul.f32.gmra.mxu0 %v310
  %v937 = vpop.f32.mrf.mxu0
  %v938 = vadd.f32 %v624, %v937
  %939 = vmatmul.f32.gmra.mxu0 %v313
  %v940 = vpop.f32.mrf.mxu0
  %v941 = vadd.f32 %v627, %v940
  %942 = vmatmul.f32.gmra.mxu0 %v316
  %v943 = vpop.f32.mrf.mxu0
  %v944 = vadd.f32 %v630, %v943
  %945 = vmatmul.f32.gmra.mxu0 %v319
  %v946 = vpop.f32.mrf.mxu0
  %v947 = vadd.f32 %v633, %v946
  %948 = vmatmul.f32.gmra.mxu0 %v322
  %v949 = vpop.f32.mrf.mxu0
  %v950 = vadd.f32 %v636, %v949
  %951 = vmatmul.f32.gmra.mxu0 %v325
  %v952 = vpop.f32.mrf.mxu0
  %v953 = vadd.f32 %v639, %v952
  %954 = vmatmul.f32.gmra.mxu0 %v328
  %v955 = vpop.f32.mrf.mxu0
  %v956 = vadd.f32 %v642, %v955
  %957 = vmatmul.f32.gmra.mxu0 %v331
  %v958 = vpop.f32.mrf.mxu0
  %v959 = vadd.f32 %v645, %v958
  %960 = vmatmul.f32.gmra.mxu0 %v334
  %v961 = vpop.f32.mrf.mxu0
  %v962 = vadd.f32 %v648, %v961
  %963 = vmatmul.f32.gmra.mxu0 %v337
  %v964 = vpop.f32.mrf.mxu0
  %v965 = vadd.f32 %v651, %v964
  %966 = vmatmul.f32.gmra.mxu0 %v340
  %v967 = vpop.f32.mrf.mxu0
  %v968 = vadd.f32 %v654, %v967
  %969 = vmatmul.f32.gmra.mxu0 %v343
  %v970 = vpop.f32.mrf.mxu0
  %v971 = vadd.f32 %v657, %v970
  %972 = vmatmul.f32.gmra.mxu0 %v346
  %v973 = vpop.f32.mrf.mxu0
  %v974 = vadd.f32 %v660, %v973
  %975 = vmatmul.f32.gmra.mxu0 %v349
  %v976 = vpop.f32.mrf.mxu0
  %v977 = vadd.f32 %v663, %v976
  %978 = vmatmul.f32.gmra.mxu0 %v352
  %v979 = vpop.f32.mrf.mxu0
  %v980 = vadd.f32 %v666, %v979
  %981 = vmatmul.f32.gmra.mxu0 %v355
  %v982 = vpop.f32.mrf.mxu0
  %v983 = vadd.f32 %v669, %v982
  %984 = vmatmul.f32.gmra.mxu0 %v358
  %v985 = vpop.f32.mrf.mxu0
  %v986 = vadd.f32 %v672, %v985
  %987 = vmatmul.f32.gmra.mxu0 %v361
  %v988 = vpop.f32.mrf.mxu0
  %v989 = vadd.f32 %v675, %v988
  %990 = vmatmul.f32.gmra.mxu0 %v364
  %v991 = vpop.f32.mrf.mxu0
  %v992 = vadd.f32 %v678, %v991
  %993 = vmatmul.f32.gmra.mxu0 %v367
  %v994 = vpop.f32.mrf.mxu0
  %v995 = vadd.f32 %v681, %v994
  %996 = vmatmul.f32.gmra.mxu0 %v370
  %v997 = vpop.f32.mrf.mxu0
  %v998 = vadd.f32 %v684, %v997
  %999 = vmatmul.f32.gmra.mxu0 %v373
  %v1000 = vpop.f32.mrf.mxu0
  %v1001 = vadd.f32 %v687, %v1000
  %1002 = vmatmul.f32.gmra.mxu0 %v376
  %v1003 = vpop.f32.mrf.mxu0
  %v1004 = vadd.f32 %v690, %v1003
  %1005 = vmatmul.f32.gmra.mxu0 %v379
  %v1006 = vpop.f32.mrf.mxu0
  %v1007 = vadd.f32 %v693, %v1006
  %1008 = vmatmul.f32.gmra.mxu0 %v382
  %v1009 = vpop.f32.mrf.mxu0
  %v1010 = vadd.f32 %v696, %v1009
  %1011 = vmatmul.f32.gmra.mxu0 %v385
  %v1012 = vpop.f32.mrf.mxu0
  %v1013 = vadd.f32 %v699, %v1012
  %1014 = vmatmul.f32.gmra.mxu0 %v388
  %v1015 = vpop.f32.mrf.mxu0
  %v1016 = vadd.f32 %v702, %v1015
  %1017 = vmatmul.f32.gmra.mxu0 %v391
  %v1018 = vpop.f32.mrf.mxu0
  %v1019 = vadd.f32 %v705, %v1018
  %1020 = vmatmul.f32.gmra.mxu0 %v394
  %v1021 = vpop.f32.mrf.mxu0
  %v1022 = vadd.f32 %v708, %v1021
  %1023 = vmatmul.f32.gmra.mxu0 %v397
  %v1024 = vpop.f32.mrf.mxu0
  %v1025 = vadd.f32 %v711, %v1024
  %1026 = vmatmul.f32.gmra.mxu0 %v400
  %v1027 = vpop.f32.mrf.mxu0
  %v1028 = vadd.f32 %v714, %v1027
  %1029 = vmatmul.f32.gmra.mxu0 %v403
  %v1030 = vpop.f32.mrf.mxu0
  %v1031 = vadd.f32 %v717, %v1030
  %1032 = vmatmul.f32.gmra.mxu0 %v406
  %v1033 = vpop.f32.mrf.mxu0
  %v1034 = vadd.f32 %v720, %v1033
  %1035 = vmatmul.f32.gmra.mxu0 %v409
  %v1036 = vpop.f32.mrf.mxu0
  %v1037 = vadd.f32 %v723, %v1036
  %1038 = vmatmul.f32.gmra.mxu0 %v412
  %v1039 = vpop.f32.mrf.mxu0
  %v1040 = vadd.f32 %v726, %v1039
  %1041 = vmatmul.f32.gmra.mxu0 %v415
  %v1042 = vpop.f32.mrf.mxu0
  %v1043 = vadd.f32 %v729, %v1042
  %1044 = vmatmul.f32.gmra.mxu0 %v418
  %v1045 = vpop.f32.mrf.mxu0
  %v1046 = vadd.f32 %v732, %v1045
  %1047 = vmatmul.f32.gmra.mxu0 %v421
  %v1048 = vpop.f32.mrf.mxu0
  %v1049 = vadd.f32 %v735, %v1048
  %1050 = vmatmul.f32.gmra.mxu0 %v424
  %v1051 = vpop.f32.mrf.mxu0
  %v1052 = vadd.f32 %v738, %v1051
  %1053 = vmatmul.f32.gmra.mxu0 %v427
  %v1054 = vpop.f32.mrf.mxu0
  %v1055 = vadd.f32 %v741, %v1054
  %1056 = vdwg.mxu0
  %s1057 = scalar_lea.vmem %s1, 16
  %v1058 = vld [vmem:[%s1057] sm:$0xff]
  %v1060 = vsel %vm137, %v133, 0
  %1062 = vmatpush.msra.mxu0 0.0
  %1063 = vmatpush.msra.mxu0 0.0
  %1064 = vmatpush.msra.mxu0 0.0
  %1065 = vmatpush.msra.mxu0 0.0
  %1066 = vmatpush.msra.mxu0 0.0
  %1067 = vmatpush.msra.mxu0 0.0
  %1068 = vmatpush.msra.mxu0 0.0
  %1069 = vmatpush.msra.mxu0 0.0
  %1070 = vmatpush.msra.mxu0 0.0
  %1071 = vmatpush.msra.mxu0 0.0
  %1072 = vmatpush.msra.mxu0 0.0
  %1073 = vmatpush.msra.mxu0 0.0
  %1074 = vmatpush.msra.mxu0 0.0
  %1075 = vmatpush.msra.mxu0 0.0
  %1076 = vmatpush.msra.mxu0 0.0
  %1077 = vmatpush.msra.mxu0 %v1058
  %1078 = vmatmul.f32.gmra.mxu0 %v142
  %v1079 = vpop.f32.mrf.mxu0
  %v1080 = vadd.f32 0.0, %v1079
  %1081 = vmatmul.f32.gmra.mxu0 %v145
  %v1082 = vpop.f32.mrf.mxu0
  %v1083 = vadd.f32 0.0, %v1082
  %1084 = vmatmul.f32.gmra.mxu0 %v148
  %v1085 = vpop.f32.mrf.mxu0
  %v1086 = vadd.f32 0.0, %v1085
  %1087 = vmatmul.f32.gmra.mxu0 %v151
  %v1088 = vpop.f32.mrf.mxu0
  %v1089 = vadd.f32 0.0, %v1088
  %1090 = vmatmul.f32.gmra.mxu0 %v154
  %v1091 = vpop.f32.mrf.mxu0
  %v1092 = vadd.f32 0.0, %v1091
  %1093 = vmatmul.f32.gmra.mxu0 %v157
  %v1094 = vpop.f32.mrf.mxu0
  %v1095 = vadd.f32 0.0, %v1094
  %1096 = vmatmul.f32.gmra.mxu0 %v160
  %v1097 = vpop.f32.mrf.mxu0
  %v1098 = vadd.f32 0.0, %v1097
  %1099 = vmatmul.f32.gmra.mxu0 %v163
  %v1100 = vpop.f32.mrf.mxu0
  %v1101 = vadd.f32 0.0, %v1100
  %1102 = vmatmul.f32.gmra.mxu0 %v166
  %v1103 = vpop.f32.mrf.mxu0
  %v1104 = vadd.f32 0.0, %v1103
  %1105 = vmatmul.f32.gmra.mxu0 %v169
  %v1106 = vpop.f32.mrf.mxu0
  %v1107 = vadd.f32 0.0, %v1106
  %1108 = vmatmul.f32.gmra.mxu0 %v172
  %v1109 = vpop.f32.mrf.mxu0
  %v1110 = vadd.f32 0.0, %v1109
  %1111 = vmatmul.f32.gmra.mxu0 %v175
  %v1112 = vpop.f32.mrf.mxu0
  %v1113 = vadd.f32 0.0, %v1112
  %1114 = vmatmul.f32.gmra.mxu0 %v178
  %v1115 = vpop.f32.mrf.mxu0
  %v1116 = vadd.f32 0.0, %v1115
  %1117 = vmatmul.f32.gmra.mxu0 %v181
  %v1118 = vpop.f32.mrf.mxu0
  %v1119 = vadd.f32 0.0, %v1118
  %1120 = vmatmul.f32.gmra.mxu0 %v184
  %v1121 = vpop.f32.mrf.mxu0
  %v1122 = vadd.f32 0.0, %v1121
  %1123 = vmatmul.f32.gmra.mxu0 %v187
  %v1124 = vpop.f32.mrf.mxu0
  %v1125 = vadd.f32 0.0, %v1124
  %1126 = vmatmul.f32.gmra.mxu0 %v190
  %v1127 = vpop.f32.mrf.mxu0
  %v1128 = vadd.f32 0.0, %v1127
  %1129 = vmatmul.f32.gmra.mxu0 %v193
  %v1130 = vpop.f32.mrf.mxu0
  %v1131 = vadd.f32 0.0, %v1130
  %1132 = vmatmul.f32.gmra.mxu0 %v196
  %v1133 = vpop.f32.mrf.mxu0
  %v1134 = vadd.f32 0.0, %v1133
  %1135 = vmatmul.f32.gmra.mxu0 %v199
  %v1136 = vpop.f32.mrf.mxu0
  %v1137 = vadd.f32 0.0, %v1136
  %1138 = vmatmul.f32.gmra.mxu0 %v202
  %v1139 = vpop.f32.mrf.mxu0
  %v1140 = vadd.f32 0.0, %v1139
  %1141 = vmatmul.f32.gmra.mxu0 %v205
  %v1142 = vpop.f32.mrf.mxu0
  %v1143 = vadd.f32 0.0, %v1142
  %1144 = vmatmul.f32.gmra.mxu0 %v208
  %v1145 = vpop.f32.mrf.mxu0
  %v1146 = vadd.f32 0.0, %v1145
  %1147 = vmatmul.f32.gmra.mxu0 %v211
  %v1148 = vpop.f32.mrf.mxu0
  %v1149 = vadd.f32 0.0, %v1148
  %1150 = vmatmul.f32.gmra.mxu0 %v214
  %v1151 = vpop.f32.mrf.mxu0
  %v1152 = vadd.f32 0.0, %v1151
  %1153 = vmatmul.f32.gmra.mxu0 %v217
  %v1154 = vpop.f32.mrf.mxu0
  %v1155 = vadd.f32 0.0, %v1154
  %1156 = vmatmul.f32.gmra.mxu0 %v220
  %v1157 = vpop.f32.mrf.mxu0
  %v1158 = vadd.f32 0.0, %v1157
  %1159 = vmatmul.f32.gmra.mxu0 %v223
  %v1160 = vpop.f32.mrf.mxu0
  %v1161 = vadd.f32 0.0, %v1160
  %1162 = vmatmul.f32.gmra.mxu0 %v226
  %v1163 = vpop.f32.mrf.mxu0
  %v1164 = vadd.f32 0.0, %v1163
  %1165 = vmatmul.f32.gmra.mxu0 %v229
  %v1166 = vpop.f32.mrf.mxu0
  %v1167 = vadd.f32 0.0, %v1166
  %1168 = vmatmul.f32.gmra.mxu0 %v232
  %v1169 = vpop.f32.mrf.mxu0
  %v1170 = vadd.f32 0.0, %v1169
  %1171 = vmatmul.f32.gmra.mxu0 %v235
  %v1172 = vpop.f32.mrf.mxu0
  %v1173 = vadd.f32 0.0, %v1172
  %1174 = vmatmul.f32.gmra.mxu0 %v238
  %v1175 = vpop.f32.mrf.mxu0
  %v1176 = vadd.f32 0.0, %v1175
  %1177 = vmatmul.f32.gmra.mxu0 %v241
  %v1178 = vpop.f32.mrf.mxu0
  %v1179 = vadd.f32 0.0, %v1178
  %1180 = vmatmul.f32.gmra.mxu0 %v244
  %v1181 = vpop.f32.mrf.mxu0
  %v1182 = vadd.f32 0.0, %v1181
  %1183 = vmatmul.f32.gmra.mxu0 %v247
  %v1184 = vpop.f32.mrf.mxu0
  %v1185 = vadd.f32 0.0, %v1184
  %1186 = vmatmul.f32.gmra.mxu0 %v250
  %v1187 = vpop.f32.mrf.mxu0
  %v1188 = vadd.f32 0.0, %v1187
  %1189 = vmatmul.f32.gmra.mxu0 %v253
  %v1190 = vpop.f32.mrf.mxu0
  %v1191 = vadd.f32 0.0, %v1190
  %1192 = vmatmul.f32.gmra.mxu0 %v256
  %v1193 = vpop.f32.mrf.mxu0
  %v1194 = vadd.f32 0.0, %v1193
  %1195 = vmatmul.f32.gmra.mxu0 %v259
  %v1196 = vpop.f32.mrf.mxu0
  %v1197 = vadd.f32 0.0, %v1196
  %1198 = vmatmul.f32.gmra.mxu0 %v262
  %v1199 = vpop.f32.mrf.mxu0
  %v1200 = vadd.f32 0.0, %v1199
  %1201 = vmatmul.f32.gmra.mxu0 %v265
  %v1202 = vpop.f32.mrf.mxu0
  %v1203 = vadd.f32 0.0, %v1202
  %1204 = vmatmul.f32.gmra.mxu0 %v268
  %v1205 = vpop.f32.mrf.mxu0
  %v1206 = vadd.f32 0.0, %v1205
  %1207 = vmatmul.f32.gmra.mxu0 %v271
  %v1208 = vpop.f32.mrf.mxu0
  %v1209 = vadd.f32 0.0, %v1208
  %1210 = vmatmul.f32.gmra.mxu0 %v274
  %v1211 = vpop.f32.mrf.mxu0
  %v1212 = vadd.f32 0.0, %v1211
  %1213 = vmatmul.f32.gmra.mxu0 %v277
  %v1214 = vpop.f32.mrf.mxu0
  %v1215 = vadd.f32 0.0, %v1214
  %1216 = vmatmul.f32.gmra.mxu0 %v280
  %v1217 = vpop.f32.mrf.mxu0
  %v1218 = vadd.f32 0.0, %v1217
  %1219 = vmatmul.f32.gmra.mxu0 %v283
  %v1220 = vpop.f32.mrf.mxu0
  %v1221 = vadd.f32 0.0, %v1220
  %1222 = vmatmul.f32.gmra.mxu0 %v286
  %v1223 = vpop.f32.mrf.mxu0
  %v1224 = vadd.f32 0.0, %v1223
  %1225 = vmatmul.f32.gmra.mxu0 %v289
  %v1226 = vpop.f32.mrf.mxu0
  %v1227 = vadd.f32 0.0, %v1226
  %1228 = vmatmul.f32.gmra.mxu0 %v292
  %v1229 = vpop.f32.mrf.mxu0
  %v1230 = vadd.f32 0.0, %v1229
  %1231 = vmatmul.f32.gmra.mxu0 %v295
  %v1232 = vpop.f32.mrf.mxu0
  %v1233 = vadd.f32 0.0, %v1232
  %1234 = vmatmul.f32.gmra.mxu0 %v298
  %v1235 = vpop.f32.mrf.mxu0
  %v1236 = vadd.f32 0.0, %v1235
  %1237 = vmatmul.f32.gmra.mxu0 %v301
  %v1238 = vpop.f32.mrf.mxu0
  %v1239 = vadd.f32 0.0, %v1238
  %1240 = vmatmul.f32.gmra.mxu0 %v304
  %v1241 = vpop.f32.mrf.mxu0
  %v1242 = vadd.f32 0.0, %v1241
  %1243 = vmatmul.f32.gmra.mxu0 %v307
  %v1244 = vpop.f32.mrf.mxu0
  %v1245 = vadd.f32 0.0, %v1244
  %1246 = vmatmul.f32.gmra.mxu0 %v310
  %v1247 = vpop.f32.mrf.mxu0
  %v1248 = vadd.f32 0.0, %v1247
  %1249 = vmatmul.f32.gmra.mxu0 %v313
  %v1250 = vpop.f32.mrf.mxu0
  %v1251 = vadd.f32 0.0, %v1250
  %1252 = vmatmul.f32.gmra.mxu0 %v316
  %v1253 = vpop.f32.mrf.mxu0
  %v1254 = vadd.f32 0.0, %v1253
  %1255 = vmatmul.f32.gmra.mxu0 %v319
  %v1256 = vpop.f32.mrf.mxu0
  %v1257 = vadd.f32 0.0, %v1256
  %1258 = vmatmul.f32.gmra.mxu0 %v322
  %v1259 = vpop.f32.mrf.mxu0
  %v1260 = vadd.f32 0.0, %v1259
  %1261 = vmatmul.f32.gmra.mxu0 %v325
  %v1262 = vpop.f32.mrf.mxu0
  %v1263 = vadd.f32 0.0, %v1262
  %1264 = vmatmul.f32.gmra.mxu0 %v328
  %v1265 = vpop.f32.mrf.mxu0
  %v1266 = vadd.f32 0.0, %v1265
  %1267 = vmatmul.f32.gmra.mxu0 %v331
  %v1268 = vpop.f32.mrf.mxu0
  %v1269 = vadd.f32 0.0, %v1268
  %1270 = vmatmul.f32.gmra.mxu0 %v334
  %v1271 = vpop.f32.mrf.mxu0
  %v1272 = vadd.f32 0.0, %v1271
  %1273 = vmatmul.f32.gmra.mxu0 %v337
  %v1274 = vpop.f32.mrf.mxu0
  %v1275 = vadd.f32 0.0, %v1274
  %1276 = vmatmul.f32.gmra.mxu0 %v340
  %v1277 = vpop.f32.mrf.mxu0
  %v1278 = vadd.f32 0.0, %v1277
  %1279 = vmatmul.f32.gmra.mxu0 %v343
  %v1280 = vpop.f32.mrf.mxu0
  %v1281 = vadd.f32 0.0, %v1280
  %1282 = vmatmul.f32.gmra.mxu0 %v346
  %v1283 = vpop.f32.mrf.mxu0
  %v1284 = vadd.f32 0.0, %v1283
  %1285 = vmatmul.f32.gmra.mxu0 %v349
  %v1286 = vpop.f32.mrf.mxu0
  %v1287 = vadd.f32 0.0, %v1286
  %1288 = vmatmul.f32.gmra.mxu0 %v352
  %v1289 = vpop.f32.mrf.mxu0
  %v1290 = vadd.f32 0.0, %v1289
  %1291 = vmatmul.f32.gmra.mxu0 %v355
  %v1292 = vpop.f32.mrf.mxu0
  %v1293 = vadd.f32 0.0, %v1292
  %1294 = vmatmul.f32.gmra.mxu0 %v358
  %v1295 = vpop.f32.mrf.mxu0
  %v1296 = vadd.f32 0.0, %v1295
  %1297 = vmatmul.f32.gmra.mxu0 %v361
  %v1298 = vpop.f32.mrf.mxu0
  %v1299 = vadd.f32 0.0, %v1298
  %1300 = vmatmul.f32.gmra.mxu0 %v364
  %v1301 = vpop.f32.mrf.mxu0
  %v1302 = vadd.f32 0.0, %v1301
  %1303 = vmatmul.f32.gmra.mxu0 %v367
  %v1304 = vpop.f32.mrf.mxu0
  %v1305 = vadd.f32 0.0, %v1304
  %1306 = vmatmul.f32.gmra.mxu0 %v370
  %v1307 = vpop.f32.mrf.mxu0
  %v1308 = vadd.f32 0.0, %v1307
  %1309 = vmatmul.f32.gmra.mxu0 %v373
  %v1310 = vpop.f32.mrf.mxu0
  %v1311 = vadd.f32 0.0, %v1310
  %1312 = vmatmul.f32.gmra.mxu0 %v376
  %v1313 = vpop.f32.mrf.mxu0
  %v1314 = vadd.f32 0.0, %v1313
  %1315 = vmatmul.f32.gmra.mxu0 %v379
  %v1316 = vpop.f32.mrf.mxu0
  %v1317 = vadd.f32 0.0, %v1316
  %1318 = vmatmul.f32.gmra.mxu0 %v382
  %v1319 = vpop.f32.mrf.mxu0
  %v1320 = vadd.f32 0.0, %v1319
  %1321 = vmatmul.f32.gmra.mxu0 %v385
  %v1322 = vpop.f32.mrf.mxu0
  %v1323 = vadd.f32 0.0, %v1322
  %1324 = vmatmul.f32.gmra.mxu0 %v388
  %v1325 = vpop.f32.mrf.mxu0
  %v1326 = vadd.f32 0.0, %v1325
  %1327 = vmatmul.f32.gmra.mxu0 %v391
  %v1328 = vpop.f32.mrf.mxu0
  %v1329 = vadd.f32 0.0, %v1328
  %1330 = vmatmul.f32.gmra.mxu0 %v394
  %v1331 = vpop.f32.mrf.mxu0
  %v1332 = vadd.f32 0.0, %v1331
  %1333 = vmatmul.f32.gmra.mxu0 %v397
  %v1334 = vpop.f32.mrf.mxu0
  %v1335 = vadd.f32 0.0, %v1334
  %1336 = vmatmul.f32.gmra.mxu0 %v400
  %v1337 = vpop.f32.mrf.mxu0
  %v1338 = vadd.f32 0.0, %v1337
  %1339 = vmatmul.f32.gmra.mxu0 %v403
  %v1340 = vpop.f32.mrf.mxu0
  %v1341 = vadd.f32 0.0, %v1340
  %1342 = vmatmul.f32.gmra.mxu0 %v406
  %v1343 = vpop.f32.mrf.mxu0
  %v1344 = vadd.f32 0.0, %v1343
  %1345 = vmatmul.f32.gmra.mxu0 %v409
  %v1346 = vpop.f32.mrf.mxu0
  %v1347 = vadd.f32 0.0, %v1346
  %1348 = vmatmul.f32.gmra.mxu0 %v412
  %v1349 = vpop.f32.mrf.mxu0
  %v1350 = vadd.f32 0.0, %v1349
  %1351 = vmatmul.f32.gmra.mxu0 %v415
  %v1352 = vpop.f32.mrf.mxu0
  %v1353 = vadd.f32 0.0, %v1352
  %1354 = vmatmul.f32.gmra.mxu0 %v418
  %v1355 = vpop.f32.mrf.mxu0
  %v1356 = vadd.f32 0.0, %v1355
  %1357 = vmatmul.f32.gmra.mxu0 %v421
  %v1358 = vpop.f32.mrf.mxu0
  %v1359 = vadd.f32 0.0, %v1358
  %1360 = vmatmul.f32.gmra.mxu0 %v424
  %v1361 = vpop.f32.mrf.mxu0
  %v1362 = vadd.f32 0.0, %v1361
  %1363 = vmatmul.f32.gmra.mxu0 %v427
  %v1364 = vpop.f32.mrf.mxu0
  %v1365 = vadd.f32 0.0, %v1364
  %1366 = vmatmul.f32.gmra.mxu0 %v430
  %v1367 = vpop.f32.mrf.mxu0
  %v1368 = vadd.f32 0.0, %v1367
  %1369 = vmatmul.f32.gmra.mxu0 %v1060
  %v1370 = vpop.f32.mrf.mxu0
  %v1371 = vadd.f32 0.0, %v1370
  %1372 = vdwg.mxu0
  %v1373 = vadd.f32 %v764, %v1080
  %v1374 = vadd.f32 %v767, %v1083
  %v1375 = vadd.f32 %v770, %v1086
  %v1376 = vadd.f32 %v773, %v1089
  %v1377 = vadd.f32 %v776, %v1092
  %v1378 = vadd.f32 %v779, %v1095
  %v1379 = vadd.f32 %v782, %v1098
  %v1380 = vadd.f32 %v785, %v1101
  %v1381 = vadd.f32 %v788, %v1104
  %v1382 = vadd.f32 %v791, %v1107
  %v1383 = vadd.f32 %v794, %v1110
  %v1384 = vadd.f32 %v797, %v1113
  %v1385 = vadd.f32 %v800, %v1116
  %v1386 = vadd.f32 %v803, %v1119
  %v1387 = vadd.f32 %v806, %v1122
  %v1388 = vadd.f32 %v809, %v1125
  %v1389 = vadd.f32 %v812, %v1128
  %v1390 = vadd.f32 %v815, %v1131
  %v1391 = vadd.f32 %v818, %v1134
  %v1392 = vadd.f32 %v821, %v1137
  %v1393 = vadd.f32 %v824, %v1140
  %v1394 = vadd.f32 %v827, %v1143
  %v1395 = vadd.f32 %v830, %v1146
  %v1396 = vadd.f32 %v833, %v1149
  %v1397 = vadd.f32 %v836, %v1152
  %v1398 = vadd.f32 %v839, %v1155
  %v1399 = vadd.f32 %v842, %v1158
  %v1400 = vadd.f32 %v845, %v1161
  %v1401 = vadd.f32 %v848, %v1164
  %v1402 = vadd.f32 %v851, %v1167
  %v1403 = vadd.f32 %v854, %v1170
  %v1404 = vadd.f32 %v857, %v1173
  %v1405 = vadd.f32 %v860, %v1176
  %v1406 = vadd.f32 %v863, %v1179
  %v1407 = vadd.f32 %v866, %v1182
  %v1408 = vadd.f32 %v869, %v1185
  %v1409 = vadd.f32 %v872, %v1188
  %v1410 = vadd.f32 %v875, %v1191
  %v1411 = vadd.f32 %v878, %v1194
  %v1412 = vadd.f32 %v881, %v1197
  %v1413 = vadd.f32 %v884, %v1200
  %v1414 = vadd.f32 %v887, %v1203
  %v1415 = vadd.f32 %v890, %v1206
  %v1416 = vadd.f32 %v893, %v1209
  %v1417 = vadd.f32 %v896, %v1212
  %v1418 = vadd.f32 %v899, %v1215
  %v1419 = vadd.f32 %v902, %v1218
  %v1420 = vadd.f32 %v905, %v1221
  %v1421 = vadd.f32 %v908, %v1224
  %v1422 = vadd.f32 %v911, %v1227
  %v1423 = vadd.f32 %v914, %v1230
  %v1424 = vadd.f32 %v917, %v1233
  %v1425 = vadd.f32 %v920, %v1236
  %v1426 = vadd.f32 %v923, %v1239
  %v1427 = vadd.f32 %v926, %v1242
  %v1428 = vadd.f32 %v929, %v1245
  %v1429 = vadd.f32 %v932, %v1248
  %v1430 = vadd.f32 %v935, %v1251
  %v1431 = vadd.f32 %v938, %v1254
  %v1432 = vadd.f32 %v941, %v1257
  %v1433 = vadd.f32 %v944, %v1260
  %v1434 = vadd.f32 %v947, %v1263
  %v1435 = vadd.f32 %v950, %v1266
  %v1436 = vadd.f32 %v953, %v1269
  %v1437 = vadd.f32 %v956, %v1272
  %v1438 = vadd.f32 %v959, %v1275
  %v1439 = vadd.f32 %v962, %v1278
  %v1440 = vadd.f32 %v965, %v1281
  %v1441 = vadd.f32 %v968, %v1284
  %v1442 = vadd.f32 %v971, %v1287
  %v1443 = vadd.f32 %v974, %v1290
  %v1444 = vadd.f32 %v977, %v1293
  %v1445 = vadd.f32 %v980, %v1296
  %v1446 = vadd.f32 %v983, %v1299
  %v1447 = vadd.f32 %v986, %v1302
  %v1448 = vadd.f32 %v989, %v1305
  %v1449 = vadd.f32 %v992, %v1308
  %v1450 = vadd.f32 %v995, %v1311
  %v1451 = vadd.f32 %v998, %v1314
  %v1452 = vadd.f32 %v1001, %v1317
  %v1453 = vadd.f32 %v1004, %v1320
  %v1454 = vadd.f32 %v1007, %v1323
  %v1455 = vadd.f32 %v1010, %v1326
  %v1456 = vadd.f32 %v1013, %v1329
  %v1457 = vadd.f32 %v1016, %v1332
  %v1458 = vadd.f32 %v1019, %v1335
  %v1459 = vadd.f32 %v1022, %v1338
  %v1460 = vadd.f32 %v1025, %v1341
  %v1461 = vadd.f32 %v1028, %v1344
  %v1462 = vadd.f32 %v1031, %v1347
  %v1463 = vadd.f32 %v1034, %v1350
  %v1464 = vadd.f32 %v1037, %v1353
  %v1465 = vadd.f32 %v1040, %v1356
  %v1466 = vadd.f32 %v1043, %v1359
  %v1467 = vadd.f32 %v1046, %v1362
  %v1468 = vadd.f32 %v1049, %v1365
  %v1469 = vadd.f32 %v1052, %v1368
  %v1470 = vadd.f32 %v1055, %v1371
  %v1471 = vld [vmem:[%s2] sm:$0x1]
  %v1473 = vperm.slane %v1471, 0
  %v1475 = vadd.f32 %v1373, %v1473
  %v1476 = vadd.f32 %v1374, %v1473
  %v1477 = vadd.f32 %v1375, %v1473
  %v1478 = vadd.f32 %v1376, %v1473
  %v1479 = vadd.f32 %v1377, %v1473
  %v1480 = vadd.f32 %v1378, %v1473
  %v1481 = vadd.f32 %v1379, %v1473
  %v1482 = vadd.f32 %v1380, %v1473
  %v1483 = vadd.f32 %v1381, %v1473
  %v1484 = vadd.f32 %v1382, %v1473
  %v1485 = vadd.f32 %v1383, %v1473
  %v1486 = vadd.f32 %v1384, %v1473
  %v1487 = vadd.f32 %v1385, %v1473
  %v1488 = vadd.f32 %v1386, %v1473
  %v1489 = vadd.f32 %v1387, %v1473
  %v1490 = vadd.f32 %v1388, %v1473
  %v1491 = vadd.f32 %v1389, %v1473
  %v1492 = vadd.f32 %v1390, %v1473
  %v1493 = vadd.f32 %v1391, %v1473
  %v1494 = vadd.f32 %v1392, %v1473
  %v1495 = vadd.f32 %v1393, %v1473
  %v1496 = vadd.f32 %v1394, %v1473
  %v1497 = vadd.f32 %v1395, %v1473
  %v1498 = vadd.f32 %v1396, %v1473
  %v1499 = vadd.f32 %v1397, %v1473
  %v1500 = vadd.f32 %v1398, %v1473
  %v1501 = vadd.f32 %v1399, %v1473
  %v1502 = vadd.f32 %v1400, %v1473
  %v1503 = vadd.f32 %v1401, %v1473
  %v1504 = vadd.f32 %v1402, %v1473
  %v1505 = vadd.f32 %v1403, %v1473
  %v1506 = vadd.f32 %v1404, %v1473
  %v1507 = vadd.f32 %v1405, %v1473
  %v1508 = vadd.f32 %v1406, %v1473
  %v1509 = vadd.f32 %v1407, %v1473
  %v1510 = vadd.f32 %v1408, %v1473
  %v1511 = vadd.f32 %v1409, %v1473
  %v1512 = vadd.f32 %v1410, %v1473
  %v1513 = vadd.f32 %v1411, %v1473
  %v1514 = vadd.f32 %v1412, %v1473
  %v1515 = vadd.f32 %v1413, %v1473
  %v1516 = vadd.f32 %v1414, %v1473
  %v1517 = vadd.f32 %v1415, %v1473
  %v1518 = vadd.f32 %v1416, %v1473
  %v1519 = vadd.f32 %v1417, %v1473
  %v1520 = vadd.f32 %v1418, %v1473
  %v1521 = vadd.f32 %v1419, %v1473
  %v1522 = vadd.f32 %v1420, %v1473
  %v1523 = vadd.f32 %v1421, %v1473
  %v1524 = vadd.f32 %v1422, %v1473
  %v1525 = vadd.f32 %v1423, %v1473
  %v1526 = vadd.f32 %v1424, %v1473
  %v1527 = vadd.f32 %v1425, %v1473
  %v1528 = vadd.f32 %v1426, %v1473
  %v1529 = vadd.f32 %v1427, %v1473
  %v1530 = vadd.f32 %v1428, %v1473
  %v1531 = vadd.f32 %v1429, %v1473
  %v1532 = vadd.f32 %v1430, %v1473
  %v1533 = vadd.f32 %v1431, %v1473
  %v1534 = vadd.f32 %v1432, %v1473
  %v1535 = vadd.f32 %v1433, %v1473
  %v1536 = vadd.f32 %v1434, %v1473
  %v1537 = vadd.f32 %v1435, %v1473
  %v1538 = vadd.f32 %v1436, %v1473
  %v1539 = vadd.f32 %v1437, %v1473
  %v1540 = vadd.f32 %v1438, %v1473
  %v1541 = vadd.f32 %v1439, %v1473
  %v1542 = vadd.f32 %v1440, %v1473
  %v1543 = vadd.f32 %v1441, %v1473
  %v1544 = vadd.f32 %v1442, %v1473
  %v1545 = vadd.f32 %v1443, %v1473
  %v1546 = vadd.f32 %v1444, %v1473
  %v1547 = vadd.f32 %v1445, %v1473
  %v1548 = vadd.f32 %v1446, %v1473
  %v1549 = vadd.f32 %v1447, %v1473
  %v1550 = vadd.f32 %v1448, %v1473
  %v1551 = vadd.f32 %v1449, %v1473
  %v1552 = vadd.f32 %v1450, %v1473
  %v1553 = vadd.f32 %v1451, %v1473
  %v1554 = vadd.f32 %v1452, %v1473
  %v1555 = vadd.f32 %v1453, %v1473
  %v1556 = vadd.f32 %v1454, %v1473
  %v1557 = vadd.f32 %v1455, %v1473
  %v1558 = vadd.f32 %v1456, %v1473
  %v1559 = vadd.f32 %v1457, %v1473
  %v1560 = vadd.f32 %v1458, %v1473
  %v1561 = vadd.f32 %v1459, %v1473
  %v1562 = vadd.f32 %v1460, %v1473
  %v1563 = vadd.f32 %v1461, %v1473
  %v1564 = vadd.f32 %v1462, %v1473
  %v1565 = vadd.f32 %v1463, %v1473
  %v1566 = vadd.f32 %v1464, %v1473
  %v1567 = vadd.f32 %v1465, %v1473
  %v1568 = vadd.f32 %v1466, %v1473
  %v1569 = vadd.f32 %v1467, %v1473
  %v1570 = vadd.f32 %v1468, %v1473
  %v1571 = vadd.f32 %v1469, %v1473
  %v1572 = vadd.f32 %v1470, %v1473
  %v1573 = vmax.f32 %v1475, 0.0
  %v1574 = vmax.f32 %v1476, 0.0
  %v1575 = vmax.f32 %v1477, 0.0
  %v1576 = vmax.f32 %v1478, 0.0
  %v1577 = vmax.f32 %v1479, 0.0
  %v1578 = vmax.f32 %v1480, 0.0
  %v1579 = vmax.f32 %v1481, 0.0
  %v1580 = vmax.f32 %v1482, 0.0
  %v1581 = vmax.f32 %v1483, 0.0
  %v1582 = vmax.f32 %v1484, 0.0
  %v1583 = vmax.f32 %v1485, 0.0
  %v1584 = vmax.f32 %v1486, 0.0
  %v1585 = vmax.f32 %v1487, 0.0
  %v1586 = vmax.f32 %v1488, 0.0
  %v1587 = vmax.f32 %v1489, 0.0
  %v1588 = vmax.f32 %v1490, 0.0
  %v1589 = vmax.f32 %v1491, 0.0
  %v1590 = vmax.f32 %v1492, 0.0
  %v1591 = vmax.f32 %v1493, 0.0
  %v1592 = vmax.f32 %v1494, 0.0
  %v1593 = vmax.f32 %v1495, 0.0
  %v1594 = vmax.f32 %v1496, 0.0
  %v1595 = vmax.f32 %v1497, 0.0
  %v1596 = vmax.f32 %v1498, 0.0
  %v1597 = vmax.f32 %v1499, 0.0
  %v1598 = vmax.f32 %v1500, 0.0
  %v1599 = vmax.f32 %v1501, 0.0
  %v1600 = vmax.f32 %v1502, 0.0
  %v1601 = vmax.f32 %v1503, 0.0
  %v1602 = vmax.f32 %v1504, 0.0
  %v1603 = vmax.f32 %v1505, 0.0
  %v1604 = vmax.f32 %v1506, 0.0
  %v1605 = vmax.f32 %v1507, 0.0
  %v1606 = vmax.f32 %v1508, 0.0
  %v1607 = vmax.f32 %v1509, 0.0
  %v1608 = vmax.f32 %v1510, 0.0
  %v1609 = vmax.f32 %v1511, 0.0
  %v1610 = vmax.f32 %v1512, 0.0
  %v1611 = vmax.f32 %v1513, 0.0
  %v1612 = vmax.f32 %v1514, 0.0
  %v1613 = vmax.f32 %v1515, 0.0
  %v1614 = vmax.f32 %v1516, 0.0
  %v1615 = vmax.f32 %v1517, 0.0
  %v1616 = vmax.f32 %v1518, 0.0
  %v1617 = vmax.f32 %v1519, 0.0
  %v1618 = vmax.f32 %v1520, 0.0
  %v1619 = vmax.f32 %v1521, 0.0
  %v1620 = vmax.f32 %v1522, 0.0
  %v1621 = vmax.f32 %v1523, 0.0
  %v1622 = vmax.f32 %v1524, 0.0
  %v1623 = vmax.f32 %v1525, 0.0
  %v1624 = vmax.f32 %v1526, 0.0
  %v1625 = vmax.f32 %v1527, 0.0
  %v1626 = vmax.f32 %v1528, 0.0
  %v1627 = vmax.f32 %v1529, 0.0
  %v1628 = vmax.f32 %v1530, 0.0
  %v1629 = vmax.f32 %v1531, 0.0
  %v1630 = vmax.f32 %v1532, 0.0
  %v1631 = vmax.f32 %v1533, 0.0
  %v1632 = vmax.f32 %v1534, 0.0
  %v1633 = vmax.f32 %v1535, 0.0
  %v1634 = vmax.f32 %v1536, 0.0
  %v1635 = vmax.f32 %v1537, 0.0
  %v1636 = vmax.f32 %v1538, 0.0
  %v1637 = vmax.f32 %v1539, 0.0
  %v1638 = vmax.f32 %v1540, 0.0
  %v1639 = vmax.f32 %v1541, 0.0
  %v1640 = vmax.f32 %v1542, 0.0
  %v1641 = vmax.f32 %v1543, 0.0
  %v1642 = vmax.f32 %v1544, 0.0
  %v1643 = vmax.f32 %v1545, 0.0
  %v1644 = vmax.f32 %v1546, 0.0
  %v1645 = vmax.f32 %v1547, 0.0
  %v1646 = vmax.f32 %v1548, 0.0
  %v1647 = vmax.f32 %v1549, 0.0
  %v1648 = vmax.f32 %v1550, 0.0
  %v1649 = vmax.f32 %v1551, 0.0
  %v1650 = vmax.f32 %v1552, 0.0
  %v1651 = vmax.f32 %v1553, 0.0
  %v1652 = vmax.f32 %v1554, 0.0
  %v1653 = vmax.f32 %v1555, 0.0
  %v1654 = vmax.f32 %v1556, 0.0
  %v1655 = vmax.f32 %v1557, 0.0
  %v1656 = vmax.f32 %v1558, 0.0
  %v1657 = vmax.f32 %v1559, 0.0
  %v1658 = vmax.f32 %v1560, 0.0
  %v1659 = vmax.f32 %v1561, 0.0
  %v1660 = vmax.f32 %v1562, 0.0
  %v1661 = vmax.f32 %v1563, 0.0
  %v1662 = vmax.f32 %v1564, 0.0
  %v1663 = vmax.f32 %v1565, 0.0
  %v1664 = vmax.f32 %v1566, 0.0
  %v1665 = vmax.f32 %v1567, 0.0
  %v1666 = vmax.f32 %v1568, 0.0
  %v1667 = vmax.f32 %v1569, 0.0
  %v1668 = vmax.f32 %v1570, 0.0
  %v1669 = vmax.f32 %v1571, 0.0
  %v1670 = vmax.f32 %v1572, 0.0
  %v1671 = vld [vmem:[%s3] sm:$0xff]
  %v1672 = vld [vmem:[%s3 + $0x8] sm:$0xff]
  %v1673 = vld [vmem:[%s3 + $0x10] sm:$0xff]
  %v1674 = vld [vmem:[%s3 + $0x18] sm:$0xff]
  %v1675 = vld [vmem:[%s3 + $0x20] sm:$0xff]
  %v1676 = vld [vmem:[%s3 + $0x28] sm:$0xff]
  %v1677 = vld [vmem:[%s3 + $0x30] sm:$0xff]
  %v1678 = vld [vmem:[%s3 + $0x38] sm:$0xff]
  %v1679 = vld [vmem:[%s3 + $0x40] sm:$0xff]
  %v1680 = vld [vmem:[%s3 + $0x48] sm:$0xff]
  %v1681 = vld [vmem:[%s3 + $0x50] sm:$0xff]
  %v1682 = vld [vmem:[%s3 + $0x58] sm:$0xff]
  %v1683 = vld [vmem:[%s3 + $0x60] sm:$0xff]
  %v1684 = vld [vmem:[%s3 + $0x68] sm:$0xff]
  %v1685 = vld [vmem:[%s3 + $0x70] sm:$0xff]
  %v1686 = vld [vmem:[%s3 + $0x78] sm:$0xff]
  %s1687 = scalar_lea.vmem %s3, 128
  %v1688 = vld [vmem:[%s1687] sm:$0xff]
  %v1689 = vld [vmem:[%s1687 + $0x8] sm:$0xff]
  %v1690 = vld [vmem:[%s1687 + $0x10] sm:$0xff]
  %v1691 = vld [vmem:[%s1687 + $0x18] sm:$0xff]
  %v1692 = vld [vmem:[%s1687 + $0x20] sm:$0xff]
  %v1693 = vld [vmem:[%s1687 + $0x28] sm:$0xff]
  %v1694 = vld [vmem:[%s1687 + $0x30] sm:$0xff]
  %v1695 = vld [vmem:[%s1687 + $0x38] sm:$0xff]
  %v1696 = vld [vmem:[%s1687 + $0x40] sm:$0xff]
  %v1697 = vld [vmem:[%s1687 + $0x48] sm:$0xff]
  %v1698 = vld [vmem:[%s1687 + $0x50] sm:$0xff]
  %v1699 = vld [vmem:[%s1687 + $0x58] sm:$0xff]
  %v1700 = vld [vmem:[%s1687 + $0x60] sm:$0xff]
  %v1701 = vld [vmem:[%s1687 + $0x68] sm:$0xff]
  %v1702 = vld [vmem:[%s1687 + $0x70] sm:$0xff]
  %v1703 = vld [vmem:[%s1687 + $0x78] sm:$0xff]
  %1704 = vmatpush.msra.mxu0 %v1703
  %1705 = vmatpush.msra.mxu0 %v1702
  %1706 = vmatpush.msra.mxu0 %v1701
  %1707 = vmatpush.msra.mxu0 %v1700
  %1708 = vmatpush.msra.mxu0 %v1699
  %1709 = vmatpush.msra.mxu0 %v1698
  %1710 = vmatpush.msra.mxu0 %v1697
  %1711 = vmatpush.msra.mxu0 %v1696
  %1712 = vmatpush.msra.mxu0 %v1695
  %1713 = vmatpush.msra.mxu0 %v1694
  %1714 = vmatpush.msra.mxu0 %v1693
  %1715 = vmatpush.msra.mxu0 %v1692
  %1716 = vmatpush.msra.mxu0 %v1691
  %1717 = vmatpush.msra.mxu0 %v1690
  %1718 = vmatpush.msra.mxu0 %v1689
  %1719 = vmatpush.msra.mxu0 %v1688
  %1720 = vmatmul.f32.gmra.mxu0 %v1574
  %v1721 = vpop.f32.mrf.mxu0
  %v1722 = vadd.f32 0.0, %v1721
  %1723 = vmatmul.f32.gmra.mxu0 %v1575
  %v1724 = vpop.f32.mrf.mxu0
  %v1725 = vadd.f32 0.0, %v1724
  %1726 = vmatmul.f32.gmra.mxu0 %v1576
  %v1727 = vpop.f32.mrf.mxu0
  %v1728 = vadd.f32 0.0, %v1727
  %1729 = vmatmul.f32.gmra.mxu0 %v1577
  %v1730 = vpop.f32.mrf.mxu0
  %v1731 = vadd.f32 0.0, %v1730
  %1732 = vmatmul.f32.gmra.mxu0 %v1578
  %v1733 = vpop.f32.mrf.mxu0
  %v1734 = vadd.f32 0.0, %v1733
  %1735 = vmatmul.f32.gmra.mxu0 %v1579
  %v1736 = vpop.f32.mrf.mxu0
  %v1737 = vadd.f32 0.0, %v1736
  %1738 = vmatmul.f32.gmra.mxu0 %v1580
  %v1739 = vpop.f32.mrf.mxu0
  %v1740 = vadd.f32 0.0, %v1739
  %1741 = vmatmul.f32.gmra.mxu0 %v1581
  %v1742 = vpop.f32.mrf.mxu0
  %v1743 = vadd.f32 0.0, %v1742
  %1744 = vmatmul.f32.gmra.mxu0 %v1582
  %v1745 = vpop.f32.mrf.mxu0
  %v1746 = vadd.f32 0.0, %v1745
  %1747 = vmatmul.f32.gmra.mxu0 %v1583
  %v1748 = vpop.f32.mrf.mxu0
  %v1749 = vadd.f32 0.0, %v1748
  %1750 = vmatmul.f32.gmra.mxu0 %v1584
  %v1751 = vpop.f32.mrf.mxu0
  %v1752 = vadd.f32 0.0, %v1751
  %1753 = vmatmul.f32.gmra.mxu0 %v1585
  %v1754 = vpop.f32.mrf.mxu0
  %v1755 = vadd.f32 0.0, %v1754
  %1756 = vmatmul.f32.gmra.mxu0 %v1586
  %v1757 = vpop.f32.mrf.mxu0
  %v1758 = vadd.f32 0.0, %v1757
  %1759 = vmatmul.f32.gmra.mxu0 %v1587
  %v1760 = vpop.f32.mrf.mxu0
  %v1761 = vadd.f32 0.0, %v1760
  %1762 = vmatmul.f32.gmra.mxu0 %v1588
  %v1763 = vpop.f32.mrf.mxu0
  %v1764 = vadd.f32 0.0, %v1763
  %1765 = vmatmul.f32.gmra.mxu0 %v1589
  %v1766 = vpop.f32.mrf.mxu0
  %v1767 = vadd.f32 0.0, %v1766
  %1768 = vmatmul.f32.gmra.mxu0 %v1590
  %v1769 = vpop.f32.mrf.mxu0
  %v1770 = vadd.f32 0.0, %v1769
  %1771 = vmatmul.f32.gmra.mxu0 %v1591
  %v1772 = vpop.f32.mrf.mxu0
  %v1773 = vadd.f32 0.0, %v1772
  %1774 = vmatmul.f32.gmra.mxu0 %v1592
  %v1775 = vpop.f32.mrf.mxu0
  %v1776 = vadd.f32 0.0, %v1775
  %1777 = vmatmul.f32.gmra.mxu0 %v1593
  %v1778 = vpop.f32.mrf.mxu0
  %v1779 = vadd.f32 0.0, %v1778
  %1780 = vmatmul.f32.gmra.mxu0 %v1594
  %v1781 = vpop.f32.mrf.mxu0
  %v1782 = vadd.f32 0.0, %v1781
  %1783 = vmatmul.f32.gmra.mxu0 %v1595
  %v1784 = vpop.f32.mrf.mxu0
  %v1785 = vadd.f32 0.0, %v1784
  %1786 = vmatmul.f32.gmra.mxu0 %v1596
  %v1787 = vpop.f32.mrf.mxu0
  %v1788 = vadd.f32 0.0, %v1787
  %1789 = vmatmul.f32.gmra.mxu0 %v1597
  %v1790 = vpop.f32.mrf.mxu0
  %v1791 = vadd.f32 0.0, %v1790
  %1792 = vmatmul.f32.gmra.mxu0 %v1598
  %v1793 = vpop.f32.mrf.mxu0
  %v1794 = vadd.f32 0.0, %v1793
  %1795 = vmatmul.f32.gmra.mxu0 %v1599
  %v1796 = vpop.f32.mrf.mxu0
  %v1797 = vadd.f32 0.0, %v1796
  %1798 = vmatmul.f32.gmra.mxu0 %v1600
  %v1799 = vpop.f32.mrf.mxu0
  %v1800 = vadd.f32 0.0, %v1799
  %1801 = vmatmul.f32.gmra.mxu0 %v1601
  %v1802 = vpop.f32.mrf.mxu0
  %v1803 = vadd.f32 0.0, %v1802
  %1804 = vmatmul.f32.gmra.mxu0 %v1602
  %v1805 = vpop.f32.mrf.mxu0
  %v1806 = vadd.f32 0.0, %v1805
  %1807 = vmatmul.f32.gmra.mxu0 %v1603
  %v1808 = vpop.f32.mrf.mxu0
  %v1809 = vadd.f32 0.0, %v1808
  %1810 = vmatmul.f32.gmra.mxu0 %v1604
  %v1811 = vpop.f32.mrf.mxu0
  %v1812 = vadd.f32 0.0, %v1811
  %1813 = vmatmul.f32.gmra.mxu0 %v1605
  %v1814 = vpop.f32.mrf.mxu0
  %v1815 = vadd.f32 0.0, %v1814
  %1816 = vmatmul.f32.gmra.mxu0 %v1606
  %v1817 = vpop.f32.mrf.mxu0
  %v1818 = vadd.f32 0.0, %v1817
  %1819 = vmatmul.f32.gmra.mxu0 %v1607
  %v1820 = vpop.f32.mrf.mxu0
  %v1821 = vadd.f32 0.0, %v1820
  %1822 = vmatmul.f32.gmra.mxu0 %v1608
  %v1823 = vpop.f32.mrf.mxu0
  %v1824 = vadd.f32 0.0, %v1823
  %1825 = vmatmul.f32.gmra.mxu0 %v1609
  %v1826 = vpop.f32.mrf.mxu0
  %v1827 = vadd.f32 0.0, %v1826
  %1828 = vmatmul.f32.gmra.mxu0 %v1610
  %v1829 = vpop.f32.mrf.mxu0
  %v1830 = vadd.f32 0.0, %v1829
  %1831 = vmatmul.f32.gmra.mxu0 %v1611
  %v1832 = vpop.f32.mrf.mxu0
  %v1833 = vadd.f32 0.0, %v1832
  %1834 = vmatmul.f32.gmra.mxu0 %v1612
  %v1835 = vpop.f32.mrf.mxu0
  %v1836 = vadd.f32 0.0, %v1835
  %1837 = vmatmul.f32.gmra.mxu0 %v1613
  %v1838 = vpop.f32.mrf.mxu0
  %v1839 = vadd.f32 0.0, %v1838
  %1840 = vmatmul.f32.gmra.mxu0 %v1614
  %v1841 = vpop.f32.mrf.mxu0
  %v1842 = vadd.f32 0.0, %v1841
  %1843 = vmatmul.f32.gmra.mxu0 %v1615
  %v1844 = vpop.f32.mrf.mxu0
  %v1845 = vadd.f32 0.0, %v1844
  %1846 = vmatmul.f32.gmra.mxu0 %v1616
  %v1847 = vpop.f32.mrf.mxu0
  %v1848 = vadd.f32 0.0, %v1847
  %1849 = vmatmul.f32.gmra.mxu0 %v1617
  %v1850 = vpop.f32.mrf.mxu0
  %v1851 = vadd.f32 0.0, %v1850
  %1852 = vmatmul.f32.gmra.mxu0 %v1618
  %v1853 = vpop.f32.mrf.mxu0
  %v1854 = vadd.f32 0.0, %v1853
  %1855 = vmatmul.f32.gmra.mxu0 %v1619
  %v1856 = vpop.f32.mrf.mxu0
  %v1857 = vadd.f32 0.0, %v1856
  %1858 = vmatmul.f32.gmra.mxu0 %v1620
  %v1859 = vpop.f32.mrf.mxu0
  %v1860 = vadd.f32 0.0, %v1859
  %1861 = vmatmul.f32.gmra.mxu0 %v1621
  %v1862 = vpop.f32.mrf.mxu0
  %v1863 = vadd.f32 0.0, %v1862
  %1864 = vmatmul.f32.gmra.mxu0 %v1622
  %v1865 = vpop.f32.mrf.mxu0
  %v1866 = vadd.f32 0.0, %v1865
  %1867 = vmatmul.f32.gmra.mxu0 %v1623
  %v1868 = vpop.f32.mrf.mxu0
  %v1869 = vadd.f32 0.0, %v1868
  %1870 = vmatmul.f32.gmra.mxu0 %v1624
  %v1871 = vpop.f32.mrf.mxu0
  %v1872 = vadd.f32 0.0, %v1871
  %1873 = vmatmul.f32.gmra.mxu0 %v1625
  %v1874 = vpop.f32.mrf.mxu0
  %v1875 = vadd.f32 0.0, %v1874
  %1876 = vmatmul.f32.gmra.mxu0 %v1626
  %v1877 = vpop.f32.mrf.mxu0
  %v1878 = vadd.f32 0.0, %v1877
  %1879 = vmatmul.f32.gmra.mxu0 %v1627
  %v1880 = vpop.f32.mrf.mxu0
  %v1881 = vadd.f32 0.0, %v1880
  %1882 = vmatmul.f32.gmra.mxu0 %v1628
  %v1883 = vpop.f32.mrf.mxu0
  %v1884 = vadd.f32 0.0, %v1883
  %1885 = vmatmul.f32.gmra.mxu0 %v1629
  %v1886 = vpop.f32.mrf.mxu0
  %v1887 = vadd.f32 0.0, %v1886
  %1888 = vmatmul.f32.gmra.mxu0 %v1630
  %v1889 = vpop.f32.mrf.mxu0
  %v1890 = vadd.f32 0.0, %v1889
  %1891 = vmatmul.f32.gmra.mxu0 %v1631
  %v1892 = vpop.f32.mrf.mxu0
  %v1893 = vadd.f32 0.0, %v1892
  %1894 = vmatmul.f32.gmra.mxu0 %v1632
  %v1895 = vpop.f32.mrf.mxu0
  %v1896 = vadd.f32 0.0, %v1895
  %1897 = vmatmul.f32.gmra.mxu0 %v1633
  %v1898 = vpop.f32.mrf.mxu0
  %v1899 = vadd.f32 0.0, %v1898
  %1900 = vmatmul.f32.gmra.mxu0 %v1634
  %v1901 = vpop.f32.mrf.mxu0
  %v1902 = vadd.f32 0.0, %v1901
  %1903 = vmatmul.f32.gmra.mxu0 %v1635
  %v1904 = vpop.f32.mrf.mxu0
  %v1905 = vadd.f32 0.0, %v1904
  %1906 = vmatmul.f32.gmra.mxu0 %v1636
  %v1907 = vpop.f32.mrf.mxu0
  %v1908 = vadd.f32 0.0, %v1907
  %1909 = vmatmul.f32.gmra.mxu0 %v1637
  %v1910 = vpop.f32.mrf.mxu0
  %v1911 = vadd.f32 0.0, %v1910
  %1912 = vmatmul.f32.gmra.mxu0 %v1638
  %v1913 = vpop.f32.mrf.mxu0
  %v1914 = vadd.f32 0.0, %v1913
  %1915 = vmatmul.f32.gmra.mxu0 %v1639
  %v1916 = vpop.f32.mrf.mxu0
  %v1917 = vadd.f32 0.0, %v1916
  %1918 = vmatmul.f32.gmra.mxu0 %v1640
  %v1919 = vpop.f32.mrf.mxu0
  %v1920 = vadd.f32 0.0, %v1919
  %1921 = vmatmul.f32.gmra.mxu0 %v1641
  %v1922 = vpop.f32.mrf.mxu0
  %v1923 = vadd.f32 0.0, %v1922
  %1924 = vmatmul.f32.gmra.mxu0 %v1642
  %v1925 = vpop.f32.mrf.mxu0
  %v1926 = vadd.f32 0.0, %v1925
  %1927 = vmatmul.f32.gmra.mxu0 %v1643
  %v1928 = vpop.f32.mrf.mxu0
  %v1929 = vadd.f32 0.0, %v1928
  %1930 = vmatmul.f32.gmra.mxu0 %v1644
  %v1931 = vpop.f32.mrf.mxu0
  %v1932 = vadd.f32 0.0, %v1931
  %1933 = vmatmul.f32.gmra.mxu0 %v1645
  %v1934 = vpop.f32.mrf.mxu0
  %v1935 = vadd.f32 0.0, %v1934
  %1936 = vmatmul.f32.gmra.mxu0 %v1646
  %v1937 = vpop.f32.mrf.mxu0
  %v1938 = vadd.f32 0.0, %v1937
  %1939 = vmatmul.f32.gmra.mxu0 %v1647
  %v1940 = vpop.f32.mrf.mxu0
  %v1941 = vadd.f32 0.0, %v1940
  %1942 = vmatmul.f32.gmra.mxu0 %v1648
  %v1943 = vpop.f32.mrf.mxu0
  %v1944 = vadd.f32 0.0, %v1943
  %1945 = vmatmul.f32.gmra.mxu0 %v1649
  %v1946 = vpop.f32.mrf.mxu0
  %v1947 = vadd.f32 0.0, %v1946
  %1948 = vmatmul.f32.gmra.mxu0 %v1650
  %v1949 = vpop.f32.mrf.mxu0
  %v1950 = vadd.f32 0.0, %v1949
  %1951 = vmatmul.f32.gmra.mxu0 %v1651
  %v1952 = vpop.f32.mrf.mxu0
  %v1953 = vadd.f32 0.0, %v1952
  %1954 = vmatmul.f32.gmra.mxu0 %v1652
  %v1955 = vpop.f32.mrf.mxu0
  %v1956 = vadd.f32 0.0, %v1955
  %1957 = vmatmul.f32.gmra.mxu0 %v1653
  %v1958 = vpop.f32.mrf.mxu0
  %v1959 = vadd.f32 0.0, %v1958
  %1960 = vmatmul.f32.gmra.mxu0 %v1654
  %v1961 = vpop.f32.mrf.mxu0
  %v1962 = vadd.f32 0.0, %v1961
  %1963 = vmatmul.f32.gmra.mxu0 %v1655
  %v1964 = vpop.f32.mrf.mxu0
  %v1965 = vadd.f32 0.0, %v1964
  %1966 = vmatmul.f32.gmra.mxu0 %v1656
  %v1967 = vpop.f32.mrf.mxu0
  %v1968 = vadd.f32 0.0, %v1967
  %1969 = vmatmul.f32.gmra.mxu0 %v1657
  %v1970 = vpop.f32.mrf.mxu0
  %v1971 = vadd.f32 0.0, %v1970
  %1972 = vmatmul.f32.gmra.mxu0 %v1658
  %v1973 = vpop.f32.mrf.mxu0
  %v1974 = vadd.f32 0.0, %v1973
  %1975 = vmatmul.f32.gmra.mxu0 %v1659
  %v1976 = vpop.f32.mrf.mxu0
  %v1977 = vadd.f32 0.0, %v1976
  %1978 = vmatmul.f32.gmra.mxu0 %v1660
  %v1979 = vpop.f32.mrf.mxu0
  %v1980 = vadd.f32 0.0, %v1979
  %1981 = vmatmul.f32.gmra.mxu0 %v1661
  %v1982 = vpop.f32.mrf.mxu0
  %v1983 = vadd.f32 0.0, %v1982
  %1984 = vmatmul.f32.gmra.mxu0 %v1662
  %v1985 = vpop.f32.mrf.mxu0
  %v1986 = vadd.f32 0.0, %v1985
  %1987 = vmatmul.f32.gmra.mxu0 %v1663
  %v1988 = vpop.f32.mrf.mxu0
  %v1989 = vadd.f32 0.0, %v1988
  %1990 = vmatmul.f32.gmra.mxu0 %v1664
  %v1991 = vpop.f32.mrf.mxu0
  %v1992 = vadd.f32 0.0, %v1991
  %1993 = vmatmul.f32.gmra.mxu0 %v1665
  %v1994 = vpop.f32.mrf.mxu0
  %v1995 = vadd.f32 0.0, %v1994
  %1996 = vmatmul.f32.gmra.mxu0 %v1666
  %v1997 = vpop.f32.mrf.mxu0
  %v1998 = vadd.f32 0.0, %v1997
  %1999 = vmatmul.f32.gmra.mxu0 %v1667
  %v2000 = vpop.f32.mrf.mxu0
  %v2001 = vadd.f32 0.0, %v2000
  %2002 = vmatmul.f32.gmra.mxu0 %v1668
  %v2003 = vpop.f32.mrf.mxu0
  %v2004 = vadd.f32 0.0, %v2003
  %2005 = vmatmul.f32.gmra.mxu0 %v1669
  %v2006 = vpop.f32.mrf.mxu0
  %v2007 = vadd.f32 0.0, %v2006
  %2008 = vdwg.mxu0
  %2009 = vmatpush.msra.mxu0 %v1686
  %2010 = vmatpush.msra.mxu0 %v1685
  %2011 = vmatpush.msra.mxu0 %v1684
  %2012 = vmatpush.msra.mxu0 %v1683
  %2013 = vmatpush.msra.mxu0 %v1682
  %2014 = vmatpush.msra.mxu0 %v1681
  %2015 = vmatpush.msra.mxu0 %v1680
  %2016 = vmatpush.msra.mxu0 %v1679
  %2017 = vmatpush.msra.mxu0 %v1678
  %2018 = vmatpush.msra.mxu0 %v1677
  %2019 = vmatpush.msra.mxu0 %v1676
  %2020 = vmatpush.msra.mxu0 %v1675
  %2021 = vmatpush.msra.mxu0 %v1674
  %2022 = vmatpush.msra.mxu0 %v1673
  %2023 = vmatpush.msra.mxu0 %v1672
  %2024 = vmatpush.msra.mxu0 %v1671
  %2025 = vmatmul.f32.gmra.mxu0 %v1573
  %v2026 = vpop.f32.mrf.mxu0
  %v2027 = vadd.f32 %v1722, %v2026
  %2028 = vmatmul.f32.gmra.mxu0 %v1574
  %v2029 = vpop.f32.mrf.mxu0
  %v2030 = vadd.f32 %v1725, %v2029
  %2031 = vmatmul.f32.gmra.mxu0 %v1575
  %v2032 = vpop.f32.mrf.mxu0
  %v2033 = vadd.f32 %v1728, %v2032
  %2034 = vmatmul.f32.gmra.mxu0 %v1576
  %v2035 = vpop.f32.mrf.mxu0
  %v2036 = vadd.f32 %v1731, %v2035
  %2037 = vmatmul.f32.gmra.mxu0 %v1577
  %v2038 = vpop.f32.mrf.mxu0
  %v2039 = vadd.f32 %v1734, %v2038
  %2040 = vmatmul.f32.gmra.mxu0 %v1578
  %v2041 = vpop.f32.mrf.mxu0
  %v2042 = vadd.f32 %v1737, %v2041
  %2043 = vmatmul.f32.gmra.mxu0 %v1579
  %v2044 = vpop.f32.mrf.mxu0
  %v2045 = vadd.f32 %v1740, %v2044
  %2046 = vmatmul.f32.gmra.mxu0 %v1580
  %v2047 = vpop.f32.mrf.mxu0
  %v2048 = vadd.f32 %v1743, %v2047
  %2049 = vmatmul.f32.gmra.mxu0 %v1581
  %v2050 = vpop.f32.mrf.mxu0
  %v2051 = vadd.f32 %v1746, %v2050
  %2052 = vmatmul.f32.gmra.mxu0 %v1582
  %v2053 = vpop.f32.mrf.mxu0
  %v2054 = vadd.f32 %v1749, %v2053
  %2055 = vmatmul.f32.gmra.mxu0 %v1583
  %v2056 = vpop.f32.mrf.mxu0
  %v2057 = vadd.f32 %v1752, %v2056
  %2058 = vmatmul.f32.gmra.mxu0 %v1584
  %v2059 = vpop.f32.mrf.mxu0
  %v2060 = vadd.f32 %v1755, %v2059
  %2061 = vmatmul.f32.gmra.mxu0 %v1585
  %v2062 = vpop.f32.mrf.mxu0
  %v2063 = vadd.f32 %v1758, %v2062
  %2064 = vmatmul.f32.gmra.mxu0 %v1586
  %v2065 = vpop.f32.mrf.mxu0
  %v2066 = vadd.f32 %v1761, %v2065
  %2067 = vmatmul.f32.gmra.mxu0 %v1587
  %v2068 = vpop.f32.mrf.mxu0
  %v2069 = vadd.f32 %v1764, %v2068
  %2070 = vmatmul.f32.gmra.mxu0 %v1588
  %v2071 = vpop.f32.mrf.mxu0
  %v2072 = vadd.f32 %v1767, %v2071
  %2073 = vmatmul.f32.gmra.mxu0 %v1589
  %v2074 = vpop.f32.mrf.mxu0
  %v2075 = vadd.f32 %v1770, %v2074
  %2076 = vmatmul.f32.gmra.mxu0 %v1590
  %v2077 = vpop.f32.mrf.mxu0
  %v2078 = vadd.f32 %v1773, %v2077
  %2079 = vmatmul.f32.gmra.mxu0 %v1591
  %v2080 = vpop.f32.mrf.mxu0
  %v2081 = vadd.f32 %v1776, %v2080
  %2082 = vmatmul.f32.gmra.mxu0 %v1592
  %v2083 = vpop.f32.mrf.mxu0
  %v2084 = vadd.f32 %v1779, %v2083
  %2085 = vmatmul.f32.gmra.mxu0 %v1593
  %v2086 = vpop.f32.mrf.mxu0
  %v2087 = vadd.f32 %v1782, %v2086
  %2088 = vmatmul.f32.gmra.mxu0 %v1594
  %v2089 = vpop.f32.mrf.mxu0
  %v2090 = vadd.f32 %v1785, %v2089
  %2091 = vmatmul.f32.gmra.mxu0 %v1595
  %v2092 = vpop.f32.mrf.mxu0
  %v2093 = vadd.f32 %v1788, %v2092
  %2094 = vmatmul.f32.gmra.mxu0 %v1596
  %v2095 = vpop.f32.mrf.mxu0
  %v2096 = vadd.f32 %v1791, %v2095
  %2097 = vmatmul.f32.gmra.mxu0 %v1597
  %v2098 = vpop.f32.mrf.mxu0
  %v2099 = vadd.f32 %v1794, %v2098
  %2100 = vmatmul.f32.gmra.mxu0 %v1598
  %v2101 = vpop.f32.mrf.mxu0
  %v2102 = vadd.f32 %v1797, %v2101
  %2103 = vmatmul.f32.gmra.mxu0 %v1599
  %v2104 = vpop.f32.mrf.mxu0
  %v2105 = vadd.f32 %v1800, %v2104
  %2106 = vmatmul.f32.gmra.mxu0 %v1600
  %v2107 = vpop.f32.mrf.mxu0
  %v2108 = vadd.f32 %v1803, %v2107
  %2109 = vmatmul.f32.gmra.mxu0 %v1601
  %v2110 = vpop.f32.mrf.mxu0
  %v2111 = vadd.f32 %v1806, %v2110
  %2112 = vmatmul.f32.gmra.mxu0 %v1602
  %v2113 = vpop.f32.mrf.mxu0
  %v2114 = vadd.f32 %v1809, %v2113
  %2115 = vmatmul.f32.gmra.mxu0 %v1603
  %v2116 = vpop.f32.mrf.mxu0
  %v2117 = vadd.f32 %v1812, %v2116
  %2118 = vmatmul.f32.gmra.mxu0 %v1604
  %v2119 = vpop.f32.mrf.mxu0
  %v2120 = vadd.f32 %v1815, %v2119
  %2121 = vmatmul.f32.gmra.mxu0 %v1605
  %v2122 = vpop.f32.mrf.mxu0
  %v2123 = vadd.f32 %v1818, %v2122
  %2124 = vmatmul.f32.gmra.mxu0 %v1606
  %v2125 = vpop.f32.mrf.mxu0
  %v2126 = vadd.f32 %v1821, %v2125
  %2127 = vmatmul.f32.gmra.mxu0 %v1607
  %v2128 = vpop.f32.mrf.mxu0
  %v2129 = vadd.f32 %v1824, %v2128
  %2130 = vmatmul.f32.gmra.mxu0 %v1608
  %v2131 = vpop.f32.mrf.mxu0
  %v2132 = vadd.f32 %v1827, %v2131
  %2133 = vmatmul.f32.gmra.mxu0 %v1609
  %v2134 = vpop.f32.mrf.mxu0
  %v2135 = vadd.f32 %v1830, %v2134
  %2136 = vmatmul.f32.gmra.mxu0 %v1610
  %v2137 = vpop.f32.mrf.mxu0
  %v2138 = vadd.f32 %v1833, %v2137
  %2139 = vmatmul.f32.gmra.mxu0 %v1611
  %v2140 = vpop.f32.mrf.mxu0
  %v2141 = vadd.f32 %v1836, %v2140
  %2142 = vmatmul.f32.gmra.mxu0 %v1612
  %v2143 = vpop.f32.mrf.mxu0
  %v2144 = vadd.f32 %v1839, %v2143
  %2145 = vmatmul.f32.gmra.mxu0 %v1613
  %v2146 = vpop.f32.mrf.mxu0
  %v2147 = vadd.f32 %v1842, %v2146
  %2148 = vmatmul.f32.gmra.mxu0 %v1614
  %v2149 = vpop.f32.mrf.mxu0
  %v2150 = vadd.f32 %v1845, %v2149
  %2151 = vmatmul.f32.gmra.mxu0 %v1615
  %v2152 = vpop.f32.mrf.mxu0
  %v2153 = vadd.f32 %v1848, %v2152
  %2154 = vmatmul.f32.gmra.mxu0 %v1616
  %v2155 = vpop.f32.mrf.mxu0
  %v2156 = vadd.f32 %v1851, %v2155
  %2157 = vmatmul.f32.gmra.mxu0 %v1617
  %v2158 = vpop.f32.mrf.mxu0
  %v2159 = vadd.f32 %v1854, %v2158
  %2160 = vmatmul.f32.gmra.mxu0 %v1618
  %v2161 = vpop.f32.mrf.mxu0
  %v2162 = vadd.f32 %v1857, %v2161
  %2163 = vmatmul.f32.gmra.mxu0 %v1619
  %v2164 = vpop.f32.mrf.mxu0
  %v2165 = vadd.f32 %v1860, %v2164
  %2166 = vmatmul.f32.gmra.mxu0 %v1620
  %v2167 = vpop.f32.mrf.mxu0
  %v2168 = vadd.f32 %v1863, %v2167
  %2169 = vmatmul.f32.gmra.mxu0 %v1621
  %v2170 = vpop.f32.mrf.mxu0
  %v2171 = vadd.f32 %v1866, %v2170
  %2172 = vmatmul.f32.gmra.mxu0 %v1622
  %v2173 = vpop.f32.mrf.mxu0
  %v2174 = vadd.f32 %v1869, %v2173
  %2175 = vmatmul.f32.gmra.mxu0 %v1623
  %v2176 = vpop.f32.mrf.mxu0
  %v2177 = vadd.f32 %v1872, %v2176
  %2178 = vmatmul.f32.gmra.mxu0 %v1624
  %v2179 = vpop.f32.mrf.mxu0
  %v2180 = vadd.f32 %v1875, %v2179
  %2181 = vmatmul.f32.gmra.mxu0 %v1625
  %v2182 = vpop.f32.mrf.mxu0
  %v2183 = vadd.f32 %v1878, %v2182
  %2184 = vmatmul.f32.gmra.mxu0 %v1626
  %v2185 = vpop.f32.mrf.mxu0
  %v2186 = vadd.f32 %v1881, %v2185
  %2187 = vmatmul.f32.gmra.mxu0 %v1627
  %v2188 = vpop.f32.mrf.mxu0
  %v2189 = vadd.f32 %v1884, %v2188
  %2190 = vmatmul.f32.gmra.mxu0 %v1628
  %v2191 = vpop.f32.mrf.mxu0
  %v2192 = vadd.f32 %v1887, %v2191
  %2193 = vmatmul.f32.gmra.mxu0 %v1629
  %v2194 = vpop.f32.mrf.mxu0
  %v2195 = vadd.f32 %v1890, %v2194
  %2196 = vmatmul.f32.gmra.mxu0 %v1630
  %v2197 = vpop.f32.mrf.mxu0
  %v2198 = vadd.f32 %v1893, %v2197
  %2199 = vmatmul.f32.gmra.mxu0 %v1631
  %v2200 = vpop.f32.mrf.mxu0
  %v2201 = vadd.f32 %v1896, %v2200
  %2202 = vmatmul.f32.gmra.mxu0 %v1632
  %v2203 = vpop.f32.mrf.mxu0
  %v2204 = vadd.f32 %v1899, %v2203
  %2205 = vmatmul.f32.gmra.mxu0 %v1633
  %v2206 = vpop.f32.mrf.mxu0
  %v2207 = vadd.f32 %v1902, %v2206
  %2208 = vmatmul.f32.gmra.mxu0 %v1634
  %v2209 = vpop.f32.mrf.mxu0
  %v2210 = vadd.f32 %v1905, %v2209
  %2211 = vmatmul.f32.gmra.mxu0 %v1635
  %v2212 = vpop.f32.mrf.mxu0
  %v2213 = vadd.f32 %v1908, %v2212
  %2214 = vmatmul.f32.gmra.mxu0 %v1636
  %v2215 = vpop.f32.mrf.mxu0
  %v2216 = vadd.f32 %v1911, %v2215
  %2217 = vmatmul.f32.gmra.mxu0 %v1637
  %v2218 = vpop.f32.mrf.mxu0
  %v2219 = vadd.f32 %v1914, %v2218
  %2220 = vmatmul.f32.gmra.mxu0 %v1638
  %v2221 = vpop.f32.mrf.mxu0
  %v2222 = vadd.f32 %v1917, %v2221
  %2223 = vmatmul.f32.gmra.mxu0 %v1639
  %v2224 = vpop.f32.mrf.mxu0
  %v2225 = vadd.f32 %v1920, %v2224
  %2226 = vmatmul.f32.gmra.mxu0 %v1640
  %v2227 = vpop.f32.mrf.mxu0
  %v2228 = vadd.f32 %v1923, %v2227
  %2229 = vmatmul.f32.gmra.mxu0 %v1641
  %v2230 = vpop.f32.mrf.mxu0
  %v2231 = vadd.f32 %v1926, %v2230
  %2232 = vmatmul.f32.gmra.mxu0 %v1642
  %v2233 = vpop.f32.mrf.mxu0
  %v2234 = vadd.f32 %v1929, %v2233
  %2235 = vmatmul.f32.gmra.mxu0 %v1643
  %v2236 = vpop.f32.mrf.mxu0
  %v2237 = vadd.f32 %v1932, %v2236
  %2238 = vmatmul.f32.gmra.mxu0 %v1644
  %v2239 = vpop.f32.mrf.mxu0
  %v2240 = vadd.f32 %v1935, %v2239
  %2241 = vmatmul.f32.gmra.mxu0 %v1645
  %v2242 = vpop.f32.mrf.mxu0
  %v2243 = vadd.f32 %v1938, %v2242
  %2244 = vmatmul.f32.gmra.mxu0 %v1646
  %v2245 = vpop.f32.mrf.mxu0
  %v2246 = vadd.f32 %v1941, %v2245
  %2247 = vmatmul.f32.gmra.mxu0 %v1647
  %v2248 = vpop.f32.mrf.mxu0
  %v2249 = vadd.f32 %v1944, %v2248
  %2250 = vmatmul.f32.gmra.mxu0 %v1648
  %v2251 = vpop.f32.mrf.mxu0
  %v2252 = vadd.f32 %v1947, %v2251
  %2253 = vmatmul.f32.gmra.mxu0 %v1649
  %v2254 = vpop.f32.mrf.mxu0
  %v2255 = vadd.f32 %v1950, %v2254
  %2256 = vmatmul.f32.gmra.mxu0 %v1650
  %v2257 = vpop.f32.mrf.mxu0
  %v2258 = vadd.f32 %v1953, %v2257
  %2259 = vmatmul.f32.gmra.mxu0 %v1651
  %v2260 = vpop.f32.mrf.mxu0
  %v2261 = vadd.f32 %v1956, %v2260
  %2262 = vmatmul.f32.gmra.mxu0 %v1652
  %v2263 = vpop.f32.mrf.mxu0
  %v2264 = vadd.f32 %v1959, %v2263
  %2265 = vmatmul.f32.gmra.mxu0 %v1653
  %v2266 = vpop.f32.mrf.mxu0
  %v2267 = vadd.f32 %v1962, %v2266
  %2268 = vmatmul.f32.gmra.mxu0 %v1654
  %v2269 = vpop.f32.mrf.mxu0
  %v2270 = vadd.f32 %v1965, %v2269
  %2271 = vmatmul.f32.gmra.mxu0 %v1655
  %v2272 = vpop.f32.mrf.mxu0
  %v2273 = vadd.f32 %v1968, %v2272
  %2274 = vmatmul.f32.gmra.mxu0 %v1656
  %v2275 = vpop.f32.mrf.mxu0
  %v2276 = vadd.f32 %v1971, %v2275
  %2277 = vmatmul.f32.gmra.mxu0 %v1657
  %v2278 = vpop.f32.mrf.mxu0
  %v2279 = vadd.f32 %v1974, %v2278
  %2280 = vmatmul.f32.gmra.mxu0 %v1658
  %v2281 = vpop.f32.mrf.mxu0
  %v2282 = vadd.f32 %v1977, %v2281
  %2283 = vmatmul.f32.gmra.mxu0 %v1659
  %v2284 = vpop.f32.mrf.mxu0
  %v2285 = vadd.f32 %v1980, %v2284
  %2286 = vmatmul.f32.gmra.mxu0 %v1660
  %v2287 = vpop.f32.mrf.mxu0
  %v2288 = vadd.f32 %v1983, %v2287
  %2289 = vmatmul.f32.gmra.mxu0 %v1661
  %v2290 = vpop.f32.mrf.mxu0
  %v2291 = vadd.f32 %v1986, %v2290
  %2292 = vmatmul.f32.gmra.mxu0 %v1662
  %v2293 = vpop.f32.mrf.mxu0
  %v2294 = vadd.f32 %v1989, %v2293
  %2295 = vmatmul.f32.gmra.mxu0 %v1663
  %v2296 = vpop.f32.mrf.mxu0
  %v2297 = vadd.f32 %v1992, %v2296
  %2298 = vmatmul.f32.gmra.mxu0 %v1664
  %v2299 = vpop.f32.mrf.mxu0
  %v2300 = vadd.f32 %v1995, %v2299
  %2301 = vmatmul.f32.gmra.mxu0 %v1665
  %v2302 = vpop.f32.mrf.mxu0
  %v2303 = vadd.f32 %v1998, %v2302
  %2304 = vmatmul.f32.gmra.mxu0 %v1666
  %v2305 = vpop.f32.mrf.mxu0
  %v2306 = vadd.f32 %v2001, %v2305
  %2307 = vmatmul.f32.gmra.mxu0 %v1667
  %v2308 = vpop.f32.mrf.mxu0
  %v2309 = vadd.f32 %v2004, %v2308
  %2310 = vmatmul.f32.gmra.mxu0 %v1668
  %v2311 = vpop.f32.mrf.mxu0
  %v2312 = vadd.f32 %v2007, %v2311
  %2313 = vdwg.mxu0
  %s2314 = scalar_lea.vmem %s3, 256
  %v2315 = vld [vmem:[%s2314] sm:$0xff]
  %v2316 = vld [vmem:[%s2314 + $0x8] sm:$0xff]
  %v2317 = vld [vmem:[%s2314 + $0x10] sm:$0xff]
  %v2318 = vld [vmem:[%s2314 + $0x18] sm:$0xff]
  %v2319 = vld [vmem:[%s2314 + $0x20] sm:$0xff]
  %v2320 = vld [vmem:[%s2314 + $0x28] sm:$0xff]
  %v2321 = vld [vmem:[%s2314 + $0x30] sm:$0xff]
  %v2322 = vld [vmem:[%s2314 + $0x38] sm:$0xff]
  %v2323 = vld [vmem:[%s2314 + $0x40] sm:$0xff]
  %v2324 = vld [vmem:[%s2314 + $0x48] sm:$0xff]
  %v2325 = vld [vmem:[%s2314 + $0x50] sm:$0xff]
  %v2326 = vld [vmem:[%s2314 + $0x58] sm:$0xff]
  %v2327 = vld [vmem:[%s2314 + $0x60] sm:$0xff]
  %v2328 = vld [vmem:[%s2314 + $0x68] sm:$0xff]
  %v2329 = vld [vmem:[%s2314 + $0x70] sm:$0xff]
  %v2330 = vld [vmem:[%s2314 + $0x78] sm:$0xff]
  %2331 = vmatpush.msra.mxu0 %v2330
  %2332 = vmatpush.msra.mxu0 %v2329
  %2333 = vmatpush.msra.mxu0 %v2328
  %2334 = vmatpush.msra.mxu0 %v2327
  %2335 = vmatpush.msra.mxu0 %v2326
  %2336 = vmatpush.msra.mxu0 %v2325
  %2337 = vmatpush.msra.mxu0 %v2324
  %2338 = vmatpush.msra.mxu0 %v2323
  %2339 = vmatpush.msra.mxu0 %v2322
  %2340 = vmatpush.msra.mxu0 %v2321
  %2341 = vmatpush.msra.mxu0 %v2320
  %2342 = vmatpush.msra.mxu0 %v2319
  %2343 = vmatpush.msra.mxu0 %v2318
  %2344 = vmatpush.msra.mxu0 %v2317
  %2345 = vmatpush.msra.mxu0 %v2316
  %2346 = vmatpush.msra.mxu0 %v2315
  %2347 = vmatmul.f32.gmra.mxu0 %v1575
  %v2348 = vpop.f32.mrf.mxu0
  %v2349 = vadd.f32 0.0, %v2348
  %2350 = vmatmul.f32.gmra.mxu0 %v1576
  %v2351 = vpop.f32.mrf.mxu0
  %v2352 = vadd.f32 0.0, %v2351
  %2353 = vmatmul.f32.gmra.mxu0 %v1577
  %v2354 = vpop.f32.mrf.mxu0
  %v2355 = vadd.f32 0.0, %v2354
  %2356 = vmatmul.f32.gmra.mxu0 %v1578
  %v2357 = vpop.f32.mrf.mxu0
  %v2358 = vadd.f32 0.0, %v2357
  %2359 = vmatmul.f32.gmra.mxu0 %v1579
  %v2360 = vpop.f32.mrf.mxu0
  %v2361 = vadd.f32 0.0, %v2360
  %2362 = vmatmul.f32.gmra.mxu0 %v1580
  %v2363 = vpop.f32.mrf.mxu0
  %v2364 = vadd.f32 0.0, %v2363
  %2365 = vmatmul.f32.gmra.mxu0 %v1581
  %v2366 = vpop.f32.mrf.mxu0
  %v2367 = vadd.f32 0.0, %v2366
  %2368 = vmatmul.f32.gmra.mxu0 %v1582
  %v2369 = vpop.f32.mrf.mxu0
  %v2370 = vadd.f32 0.0, %v2369
  %2371 = vmatmul.f32.gmra.mxu0 %v1583
  %v2372 = vpop.f32.mrf.mxu0
  %v2373 = vadd.f32 0.0, %v2372
  %2374 = vmatmul.f32.gmra.mxu0 %v1584
  %v2375 = vpop.f32.mrf.mxu0
  %v2376 = vadd.f32 0.0, %v2375
  %2377 = vmatmul.f32.gmra.mxu0 %v1585
  %v2378 = vpop.f32.mrf.mxu0
  %v2379 = vadd.f32 0.0, %v2378
  %2380 = vmatmul.f32.gmra.mxu0 %v1586
  %v2381 = vpop.f32.mrf.mxu0
  %v2382 = vadd.f32 0.0, %v2381
  %2383 = vmatmul.f32.gmra.mxu0 %v1587
  %v2384 = vpop.f32.mrf.mxu0
  %v2385 = vadd.f32 0.0, %v2384
  %2386 = vmatmul.f32.gmra.mxu0 %v1588
  %v2387 = vpop.f32.mrf.mxu0
  %v2388 = vadd.f32 0.0, %v2387
  %2389 = vmatmul.f32.gmra.mxu0 %v1589
  %v2390 = vpop.f32.mrf.mxu0
  %v2391 = vadd.f32 0.0, %v2390
  %2392 = vmatmul.f32.gmra.mxu0 %v1590
  %v2393 = vpop.f32.mrf.mxu0
  %v2394 = vadd.f32 0.0, %v2393
  %2395 = vmatmul.f32.gmra.mxu0 %v1591
  %v2396 = vpop.f32.mrf.mxu0
  %v2397 = vadd.f32 0.0, %v2396
  %2398 = vmatmul.f32.gmra.mxu0 %v1592
  %v2399 = vpop.f32.mrf.mxu0
  %v2400 = vadd.f32 0.0, %v2399
  %2401 = vmatmul.f32.gmra.mxu0 %v1593
  %v2402 = vpop.f32.mrf.mxu0
  %v2403 = vadd.f32 0.0, %v2402
  %2404 = vmatmul.f32.gmra.mxu0 %v1594
  %v2405 = vpop.f32.mrf.mxu0
  %v2406 = vadd.f32 0.0, %v2405
  %2407 = vmatmul.f32.gmra.mxu0 %v1595
  %v2408 = vpop.f32.mrf.mxu0
  %v2409 = vadd.f32 0.0, %v2408
  %2410 = vmatmul.f32.gmra.mxu0 %v1596
  %v2411 = vpop.f32.mrf.mxu0
  %v2412 = vadd.f32 0.0, %v2411
  %2413 = vmatmul.f32.gmra.mxu0 %v1597
  %v2414 = vpop.f32.mrf.mxu0
  %v2415 = vadd.f32 0.0, %v2414
  %2416 = vmatmul.f32.gmra.mxu0 %v1598
  %v2417 = vpop.f32.mrf.mxu0
  %v2418 = vadd.f32 0.0, %v2417
  %2419 = vmatmul.f32.gmra.mxu0 %v1599
  %v2420 = vpop.f32.mrf.mxu0
  %v2421 = vadd.f32 0.0, %v2420
  %2422 = vmatmul.f32.gmra.mxu0 %v1600
  %v2423 = vpop.f32.mrf.mxu0
  %v2424 = vadd.f32 0.0, %v2423
  %2425 = vmatmul.f32.gmra.mxu0 %v1601
  %v2426 = vpop.f32.mrf.mxu0
  %v2427 = vadd.f32 0.0, %v2426
  %2428 = vmatmul.f32.gmra.mxu0 %v1602
  %v2429 = vpop.f32.mrf.mxu0
  %v2430 = vadd.f32 0.0, %v2429
  %2431 = vmatmul.f32.gmra.mxu0 %v1603
  %v2432 = vpop.f32.mrf.mxu0
  %v2433 = vadd.f32 0.0, %v2432
  %2434 = vmatmul.f32.gmra.mxu0 %v1604
  %v2435 = vpop.f32.mrf.mxu0
  %v2436 = vadd.f32 0.0, %v2435
  %2437 = vmatmul.f32.gmra.mxu0 %v1605
  %v2438 = vpop.f32.mrf.mxu0
  %v2439 = vadd.f32 0.0, %v2438
  %2440 = vmatmul.f32.gmra.mxu0 %v1606
  %v2441 = vpop.f32.mrf.mxu0
  %v2442 = vadd.f32 0.0, %v2441
  %2443 = vmatmul.f32.gmra.mxu0 %v1607
  %v2444 = vpop.f32.mrf.mxu0
  %v2445 = vadd.f32 0.0, %v2444
  %2446 = vmatmul.f32.gmra.mxu0 %v1608
  %v2447 = vpop.f32.mrf.mxu0
  %v2448 = vadd.f32 0.0, %v2447
  %2449 = vmatmul.f32.gmra.mxu0 %v1609
  %v2450 = vpop.f32.mrf.mxu0
  %v2451 = vadd.f32 0.0, %v2450
  %2452 = vmatmul.f32.gmra.mxu0 %v1610
  %v2453 = vpop.f32.mrf.mxu0
  %v2454 = vadd.f32 0.0, %v2453
  %2455 = vmatmul.f32.gmra.mxu0 %v1611
  %v2456 = vpop.f32.mrf.mxu0
  %v2457 = vadd.f32 0.0, %v2456
  %2458 = vmatmul.f32.gmra.mxu0 %v1612
  %v2459 = vpop.f32.mrf.mxu0
  %v2460 = vadd.f32 0.0, %v2459
  %2461 = vmatmul.f32.gmra.mxu0 %v1613
  %v2462 = vpop.f32.mrf.mxu0
  %v2463 = vadd.f32 0.0, %v2462
  %2464 = vmatmul.f32.gmra.mxu0 %v1614
  %v2465 = vpop.f32.mrf.mxu0
  %v2466 = vadd.f32 0.0, %v2465
  %2467 = vmatmul.f32.gmra.mxu0 %v1615
  %v2468 = vpop.f32.mrf.mxu0
  %v2469 = vadd.f32 0.0, %v2468
  %2470 = vmatmul.f32.gmra.mxu0 %v1616
  %v2471 = vpop.f32.mrf.mxu0
  %v2472 = vadd.f32 0.0, %v2471
  %2473 = vmatmul.f32.gmra.mxu0 %v1617
  %v2474 = vpop.f32.mrf.mxu0
  %v2475 = vadd.f32 0.0, %v2474
  %2476 = vmatmul.f32.gmra.mxu0 %v1618
  %v2477 = vpop.f32.mrf.mxu0
  %v2478 = vadd.f32 0.0, %v2477
  %2479 = vmatmul.f32.gmra.mxu0 %v1619
  %v2480 = vpop.f32.mrf.mxu0
  %v2481 = vadd.f32 0.0, %v2480
  %2482 = vmatmul.f32.gmra.mxu0 %v1620
  %v2483 = vpop.f32.mrf.mxu0
  %v2484 = vadd.f32 0.0, %v2483
  %2485 = vmatmul.f32.gmra.mxu0 %v1621
  %v2486 = vpop.f32.mrf.mxu0
  %v2487 = vadd.f32 0.0, %v2486
  %2488 = vmatmul.f32.gmra.mxu0 %v1622
  %v2489 = vpop.f32.mrf.mxu0
  %v2490 = vadd.f32 0.0, %v2489
  %2491 = vmatmul.f32.gmra.mxu0 %v1623
  %v2492 = vpop.f32.mrf.mxu0
  %v2493 = vadd.f32 0.0, %v2492
  %2494 = vmatmul.f32.gmra.mxu0 %v1624
  %v2495 = vpop.f32.mrf.mxu0
  %v2496 = vadd.f32 0.0, %v2495
  %2497 = vmatmul.f32.gmra.mxu0 %v1625
  %v2498 = vpop.f32.mrf.mxu0
  %v2499 = vadd.f32 0.0, %v2498
  %2500 = vmatmul.f32.gmra.mxu0 %v1626
  %v2501 = vpop.f32.mrf.mxu0
  %v2502 = vadd.f32 0.0, %v2501
  %2503 = vmatmul.f32.gmra.mxu0 %v1627
  %v2504 = vpop.f32.mrf.mxu0
  %v2505 = vadd.f32 0.0, %v2504
  %2506 = vmatmul.f32.gmra.mxu0 %v1628
  %v2507 = vpop.f32.mrf.mxu0
  %v2508 = vadd.f32 0.0, %v2507
  %2509 = vmatmul.f32.gmra.mxu0 %v1629
  %v2510 = vpop.f32.mrf.mxu0
  %v2511 = vadd.f32 0.0, %v2510
  %2512 = vmatmul.f32.gmra.mxu0 %v1630
  %v2513 = vpop.f32.mrf.mxu0
  %v2514 = vadd.f32 0.0, %v2513
  %2515 = vmatmul.f32.gmra.mxu0 %v1631
  %v2516 = vpop.f32.mrf.mxu0
  %v2517 = vadd.f32 0.0, %v2516
  %2518 = vmatmul.f32.gmra.mxu0 %v1632
  %v2519 = vpop.f32.mrf.mxu0
  %v2520 = vadd.f32 0.0, %v2519
  %2521 = vmatmul.f32.gmra.mxu0 %v1633
  %v2522 = vpop.f32.mrf.mxu0
  %v2523 = vadd.f32 0.0, %v2522
  %2524 = vmatmul.f32.gmra.mxu0 %v1634
  %v2525 = vpop.f32.mrf.mxu0
  %v2526 = vadd.f32 0.0, %v2525
  %2527 = vmatmul.f32.gmra.mxu0 %v1635
  %v2528 = vpop.f32.mrf.mxu0
  %v2529 = vadd.f32 0.0, %v2528
  %2530 = vmatmul.f32.gmra.mxu0 %v1636
  %v2531 = vpop.f32.mrf.mxu0
  %v2532 = vadd.f32 0.0, %v2531
  %2533 = vmatmul.f32.gmra.mxu0 %v1637
  %v2534 = vpop.f32.mrf.mxu0
  %v2535 = vadd.f32 0.0, %v2534
  %2536 = vmatmul.f32.gmra.mxu0 %v1638
  %v2537 = vpop.f32.mrf.mxu0
  %v2538 = vadd.f32 0.0, %v2537
  %2539 = vmatmul.f32.gmra.mxu0 %v1639
  %v2540 = vpop.f32.mrf.mxu0
  %v2541 = vadd.f32 0.0, %v2540
  %2542 = vmatmul.f32.gmra.mxu0 %v1640
  %v2543 = vpop.f32.mrf.mxu0
  %v2544 = vadd.f32 0.0, %v2543
  %2545 = vmatmul.f32.gmra.mxu0 %v1641
  %v2546 = vpop.f32.mrf.mxu0
  %v2547 = vadd.f32 0.0, %v2546
  %2548 = vmatmul.f32.gmra.mxu0 %v1642
  %v2549 = vpop.f32.mrf.mxu0
  %v2550 = vadd.f32 0.0, %v2549
  %2551 = vmatmul.f32.gmra.mxu0 %v1643
  %v2552 = vpop.f32.mrf.mxu0
  %v2553 = vadd.f32 0.0, %v2552
  %2554 = vmatmul.f32.gmra.mxu0 %v1644
  %v2555 = vpop.f32.mrf.mxu0
  %v2556 = vadd.f32 0.0, %v2555
  %2557 = vmatmul.f32.gmra.mxu0 %v1645
  %v2558 = vpop.f32.mrf.mxu0
  %v2559 = vadd.f32 0.0, %v2558
  %2560 = vmatmul.f32.gmra.mxu0 %v1646
  %v2561 = vpop.f32.mrf.mxu0
  %v2562 = vadd.f32 0.0, %v2561
  %2563 = vmatmul.f32.gmra.mxu0 %v1647
  %v2564 = vpop.f32.mrf.mxu0
  %v2565 = vadd.f32 0.0, %v2564
  %2566 = vmatmul.f32.gmra.mxu0 %v1648
  %v2567 = vpop.f32.mrf.mxu0
  %v2568 = vadd.f32 0.0, %v2567
  %2569 = vmatmul.f32.gmra.mxu0 %v1649
  %v2570 = vpop.f32.mrf.mxu0
  %v2571 = vadd.f32 0.0, %v2570
  %2572 = vmatmul.f32.gmra.mxu0 %v1650
  %v2573 = vpop.f32.mrf.mxu0
  %v2574 = vadd.f32 0.0, %v2573
  %2575 = vmatmul.f32.gmra.mxu0 %v1651
  %v2576 = vpop.f32.mrf.mxu0
  %v2577 = vadd.f32 0.0, %v2576
  %2578 = vmatmul.f32.gmra.mxu0 %v1652
  %v2579 = vpop.f32.mrf.mxu0
  %v2580 = vadd.f32 0.0, %v2579
  %2581 = vmatmul.f32.gmra.mxu0 %v1653
  %v2582 = vpop.f32.mrf.mxu0
  %v2583 = vadd.f32 0.0, %v2582
  %2584 = vmatmul.f32.gmra.mxu0 %v1654
  %v2585 = vpop.f32.mrf.mxu0
  %v2586 = vadd.f32 0.0, %v2585
  %2587 = vmatmul.f32.gmra.mxu0 %v1655
  %v2588 = vpop.f32.mrf.mxu0
  %v2589 = vadd.f32 0.0, %v2588
  %2590 = vmatmul.f32.gmra.mxu0 %v1656
  %v2591 = vpop.f32.mrf.mxu0
  %v2592 = vadd.f32 0.0, %v2591
  %2593 = vmatmul.f32.gmra.mxu0 %v1657
  %v2594 = vpop.f32.mrf.mxu0
  %v2595 = vadd.f32 0.0, %v2594
  %2596 = vmatmul.f32.gmra.mxu0 %v1658
  %v2597 = vpop.f32.mrf.mxu0
  %v2598 = vadd.f32 0.0, %v2597
  %2599 = vmatmul.f32.gmra.mxu0 %v1659
  %v2600 = vpop.f32.mrf.mxu0
  %v2601 = vadd.f32 0.0, %v2600
  %2602 = vmatmul.f32.gmra.mxu0 %v1660
  %v2603 = vpop.f32.mrf.mxu0
  %v2604 = vadd.f32 0.0, %v2603
  %2605 = vmatmul.f32.gmra.mxu0 %v1661
  %v2606 = vpop.f32.mrf.mxu0
  %v2607 = vadd.f32 0.0, %v2606
  %2608 = vmatmul.f32.gmra.mxu0 %v1662
  %v2609 = vpop.f32.mrf.mxu0
  %v2610 = vadd.f32 0.0, %v2609
  %2611 = vmatmul.f32.gmra.mxu0 %v1663
  %v2612 = vpop.f32.mrf.mxu0
  %v2613 = vadd.f32 0.0, %v2612
  %2614 = vmatmul.f32.gmra.mxu0 %v1664
  %v2615 = vpop.f32.mrf.mxu0
  %v2616 = vadd.f32 0.0, %v2615
  %2617 = vmatmul.f32.gmra.mxu0 %v1665
  %v2618 = vpop.f32.mrf.mxu0
  %v2619 = vadd.f32 0.0, %v2618
  %2620 = vmatmul.f32.gmra.mxu0 %v1666
  %v2621 = vpop.f32.mrf.mxu0
  %v2622 = vadd.f32 0.0, %v2621
  %2623 = vmatmul.f32.gmra.mxu0 %v1667
  %v2624 = vpop.f32.mrf.mxu0
  %v2625 = vadd.f32 0.0, %v2624
  %2626 = vmatmul.f32.gmra.mxu0 %v1668
  %v2627 = vpop.f32.mrf.mxu0
  %v2628 = vadd.f32 0.0, %v2627
  %2629 = vmatmul.f32.gmra.mxu0 %v1669
  %v2630 = vpop.f32.mrf.mxu0
  %v2631 = vadd.f32 0.0, %v2630
  %2632 = vmatmul.f32.gmra.mxu0 %v1670
  %v2633 = vpop.f32.mrf.mxu0
  %v2634 = vadd.f32 0.0, %v2633
  %2635 = vdwg.mxu0
  %v2636 = vadd.f32 %v2027, %v2349
  %v2637 = vadd.f32 %v2030, %v2352
  %v2638 = vadd.f32 %v2033, %v2355
  %v2639 = vadd.f32 %v2036, %v2358
  %v2640 = vadd.f32 %v2039, %v2361
  %v2641 = vadd.f32 %v2042, %v2364
  %v2642 = vadd.f32 %v2045, %v2367
  %v2643 = vadd.f32 %v2048, %v2370
  %v2644 = vadd.f32 %v2051, %v2373
  %v2645 = vadd.f32 %v2054, %v2376
  %v2646 = vadd.f32 %v2057, %v2379
  %v2647 = vadd.f32 %v2060, %v2382
  %v2648 = vadd.f32 %v2063, %v2385
  %v2649 = vadd.f32 %v2066, %v2388
  %v2650 = vadd.f32 %v2069, %v2391
  %v2651 = vadd.f32 %v2072, %v2394
  %v2652 = vadd.f32 %v2075, %v2397
  %v2653 = vadd.f32 %v2078, %v2400
  %v2654 = vadd.f32 %v2081, %v2403
  %v2655 = vadd.f32 %v2084, %v2406
  %v2656 = vadd.f32 %v2087, %v2409
  %v2657 = vadd.f32 %v2090, %v2412
  %v2658 = vadd.f32 %v2093, %v2415
  %v2659 = vadd.f32 %v2096, %v2418
  %v2660 = vadd.f32 %v2099, %v2421
  %v2661 = vadd.f32 %v2102, %v2424
  %v2662 = vadd.f32 %v2105, %v2427
  %v2663 = vadd.f32 %v2108, %v2430
  %v2664 = vadd.f32 %v2111, %v2433
  %v2665 = vadd.f32 %v2114, %v2436
  %v2666 = vadd.f32 %v2117, %v2439
  %v2667 = vadd.f32 %v2120, %v2442
  %v2668 = vadd.f32 %v2123, %v2445
  %v2669 = vadd.f32 %v2126, %v2448
  %v2670 = vadd.f32 %v2129, %v2451
  %v2671 = vadd.f32 %v2132, %v2454
  %v2672 = vadd.f32 %v2135, %v2457
  %v2673 = vadd.f32 %v2138, %v2460
  %v2674 = vadd.f32 %v2141, %v2463
  %v2675 = vadd.f32 %v2144, %v2466
  %v2676 = vadd.f32 %v2147, %v2469
  %v2677 = vadd.f32 %v2150, %v2472
  %v2678 = vadd.f32 %v2153, %v2475
  %v2679 = vadd.f32 %v2156, %v2478
  %v2680 = vadd.f32 %v2159, %v2481
  %v2681 = vadd.f32 %v2162, %v2484
  %v2682 = vadd.f32 %v2165, %v2487
  %v2683 = vadd.f32 %v2168, %v2490
  %v2684 = vadd.f32 %v2171, %v2493
  %v2685 = vadd.f32 %v2174, %v2496
  %v2686 = vadd.f32 %v2177, %v2499
  %v2687 = vadd.f32 %v2180, %v2502
  %v2688 = vadd.f32 %v2183, %v2505
  %v2689 = vadd.f32 %v2186, %v2508
  %v2690 = vadd.f32 %v2189, %v2511
  %v2691 = vadd.f32 %v2192, %v2514
  %v2692 = vadd.f32 %v2195, %v2517
  %v2693 = vadd.f32 %v2198, %v2520
  %v2694 = vadd.f32 %v2201, %v2523
  %v2695 = vadd.f32 %v2204, %v2526
  %v2696 = vadd.f32 %v2207, %v2529
  %v2697 = vadd.f32 %v2210, %v2532
  %v2698 = vadd.f32 %v2213, %v2535
  %v2699 = vadd.f32 %v2216, %v2538
  %v2700 = vadd.f32 %v2219, %v2541
  %v2701 = vadd.f32 %v2222, %v2544
  %v2702 = vadd.f32 %v2225, %v2547
  %v2703 = vadd.f32 %v2228, %v2550
  %v2704 = vadd.f32 %v2231, %v2553
  %v2705 = vadd.f32 %v2234, %v2556
  %v2706 = vadd.f32 %v2237, %v2559
  %v2707 = vadd.f32 %v2240, %v2562
  %v2708 = vadd.f32 %v2243, %v2565
  %v2709 = vadd.f32 %v2246, %v2568
  %v2710 = vadd.f32 %v2249, %v2571
  %v2711 = vadd.f32 %v2252, %v2574
  %v2712 = vadd.f32 %v2255, %v2577
  %v2713 = vadd.f32 %v2258, %v2580
  %v2714 = vadd.f32 %v2261, %v2583
  %v2715 = vadd.f32 %v2264, %v2586
  %v2716 = vadd.f32 %v2267, %v2589
  %v2717 = vadd.f32 %v2270, %v2592
  %v2718 = vadd.f32 %v2273, %v2595
  %v2719 = vadd.f32 %v2276, %v2598
  %v2720 = vadd.f32 %v2279, %v2601
  %v2721 = vadd.f32 %v2282, %v2604
  %v2722 = vadd.f32 %v2285, %v2607
  %v2723 = vadd.f32 %v2288, %v2610
  %v2724 = vadd.f32 %v2291, %v2613
  %v2725 = vadd.f32 %v2294, %v2616
  %v2726 = vadd.f32 %v2297, %v2619
  %v2727 = vadd.f32 %v2300, %v2622
  %v2728 = vadd.f32 %v2303, %v2625
  %v2729 = vadd.f32 %v2306, %v2628
  %v2730 = vadd.f32 %v2309, %v2631
  %v2731 = vadd.f32 %v2312, %v2634
  %v2732 = vld [vmem:[%s4] sm:$0x1]
  %v2734 = vperm.slane %v2732, 0
  %v2736 = vadd.f32 %v2636, %v2734
  %v2737 = vadd.f32 %v2637, %v2734
  %v2738 = vadd.f32 %v2638, %v2734
  %v2739 = vadd.f32 %v2639, %v2734
  %v2740 = vadd.f32 %v2640, %v2734
  %v2741 = vadd.f32 %v2641, %v2734
  %v2742 = vadd.f32 %v2642, %v2734
  %v2743 = vadd.f32 %v2643, %v2734
  %v2744 = vadd.f32 %v2644, %v2734
  %v2745 = vadd.f32 %v2645, %v2734
  %v2746 = vadd.f32 %v2646, %v2734
  %v2747 = vadd.f32 %v2647, %v2734
  %v2748 = vadd.f32 %v2648, %v2734
  %v2749 = vadd.f32 %v2649, %v2734
  %v2750 = vadd.f32 %v2650, %v2734
  %v2751 = vadd.f32 %v2651, %v2734
  %v2752 = vadd.f32 %v2652, %v2734
  %v2753 = vadd.f32 %v2653, %v2734
  %v2754 = vadd.f32 %v2654, %v2734
  %v2755 = vadd.f32 %v2655, %v2734
  %v2756 = vadd.f32 %v2656, %v2734
  %v2757 = vadd.f32 %v2657, %v2734
  %v2758 = vadd.f32 %v2658, %v2734
  %v2759 = vadd.f32 %v2659, %v2734
  %v2760 = vadd.f32 %v2660, %v2734
  %v2761 = vadd.f32 %v2661, %v2734
  %v2762 = vadd.f32 %v2662, %v2734
  %v2763 = vadd.f32 %v2663, %v2734
  %v2764 = vadd.f32 %v2664, %v2734
  %v2765 = vadd.f32 %v2665, %v2734
  %v2766 = vadd.f32 %v2666, %v2734
  %v2767 = vadd.f32 %v2667, %v2734
  %v2768 = vadd.f32 %v2668, %v2734
  %v2769 = vadd.f32 %v2669, %v2734
  %v2770 = vadd.f32 %v2670, %v2734
  %v2771 = vadd.f32 %v2671, %v2734
  %v2772 = vadd.f32 %v2672, %v2734
  %v2773 = vadd.f32 %v2673, %v2734
  %v2774 = vadd.f32 %v2674, %v2734
  %v2775 = vadd.f32 %v2675, %v2734
  %v2776 = vadd.f32 %v2676, %v2734
  %v2777 = vadd.f32 %v2677, %v2734
  %v2778 = vadd.f32 %v2678, %v2734
  %v2779 = vadd.f32 %v2679, %v2734
  %v2780 = vadd.f32 %v2680, %v2734
  %v2781 = vadd.f32 %v2681, %v2734
  %v2782 = vadd.f32 %v2682, %v2734
  %v2783 = vadd.f32 %v2683, %v2734
  %v2784 = vadd.f32 %v2684, %v2734
  %v2785 = vadd.f32 %v2685, %v2734
  %v2786 = vadd.f32 %v2686, %v2734
  %v2787 = vadd.f32 %v2687, %v2734
  %v2788 = vadd.f32 %v2688, %v2734
  %v2789 = vadd.f32 %v2689, %v2734
  %v2790 = vadd.f32 %v2690, %v2734
  %v2791 = vadd.f32 %v2691, %v2734
  %v2792 = vadd.f32 %v2692, %v2734
  %v2793 = vadd.f32 %v2693, %v2734
  %v2794 = vadd.f32 %v2694, %v2734
  %v2795 = vadd.f32 %v2695, %v2734
  %v2796 = vadd.f32 %v2696, %v2734
  %v2797 = vadd.f32 %v2697, %v2734
  %v2798 = vadd.f32 %v2698, %v2734
  %v2799 = vadd.f32 %v2699, %v2734
  %v2800 = vadd.f32 %v2700, %v2734
  %v2801 = vadd.f32 %v2701, %v2734
  %v2802 = vadd.f32 %v2702, %v2734
  %v2803 = vadd.f32 %v2703, %v2734
  %v2804 = vadd.f32 %v2704, %v2734
  %v2805 = vadd.f32 %v2705, %v2734
  %v2806 = vadd.f32 %v2706, %v2734
  %v2807 = vadd.f32 %v2707, %v2734
  %v2808 = vadd.f32 %v2708, %v2734
  %v2809 = vadd.f32 %v2709, %v2734
  %v2810 = vadd.f32 %v2710, %v2734
  %v2811 = vadd.f32 %v2711, %v2734
  %v2812 = vadd.f32 %v2712, %v2734
  %v2813 = vadd.f32 %v2713, %v2734
  %v2814 = vadd.f32 %v2714, %v2734
  %v2815 = vadd.f32 %v2715, %v2734
  %v2816 = vadd.f32 %v2716, %v2734
  %v2817 = vadd.f32 %v2717, %v2734
  %v2818 = vadd.f32 %v2718, %v2734
  %v2819 = vadd.f32 %v2719, %v2734
  %v2820 = vadd.f32 %v2720, %v2734
  %v2821 = vadd.f32 %v2721, %v2734
  %v2822 = vadd.f32 %v2722, %v2734
  %v2823 = vadd.f32 %v2723, %v2734
  %v2824 = vadd.f32 %v2724, %v2734
  %v2825 = vadd.f32 %v2725, %v2734
  %v2826 = vadd.f32 %v2726, %v2734
  %v2827 = vadd.f32 %v2727, %v2734
  %v2828 = vadd.f32 %v2728, %v2734
  %v2829 = vadd.f32 %v2729, %v2734
  %v2830 = vadd.f32 %v2730, %v2734
  %v2831 = vadd.f32 %v2731, %v2734
  %v2832 = vmax.f32 %v2736, 0.0
  %v2833 = vmax.f32 %v2737, 0.0
  %v2834 = vmax.f32 %v2738, 0.0
  %v2835 = vmax.f32 %v2739, 0.0
  %v2836 = vmax.f32 %v2740, 0.0
  %v2837 = vmax.f32 %v2741, 0.0
  %v2838 = vmax.f32 %v2742, 0.0
  %v2839 = vmax.f32 %v2743, 0.0
  %v2840 = vmax.f32 %v2744, 0.0
  %v2841 = vmax.f32 %v2745, 0.0
  %v2842 = vmax.f32 %v2746, 0.0
  %v2843 = vmax.f32 %v2747, 0.0
  %v2844 = vmax.f32 %v2748, 0.0
  %v2845 = vmax.f32 %v2749, 0.0
  %v2846 = vmax.f32 %v2750, 0.0
  %v2847 = vmax.f32 %v2751, 0.0
  %v2848 = vmax.f32 %v2752, 0.0
  %v2849 = vmax.f32 %v2753, 0.0
  %v2850 = vmax.f32 %v2754, 0.0
  %v2851 = vmax.f32 %v2755, 0.0
  %v2852 = vmax.f32 %v2756, 0.0
  %v2853 = vmax.f32 %v2757, 0.0
  %v2854 = vmax.f32 %v2758, 0.0
  %v2855 = vmax.f32 %v2759, 0.0
  %v2856 = vmax.f32 %v2760, 0.0
  %v2857 = vmax.f32 %v2761, 0.0
  %v2858 = vmax.f32 %v2762, 0.0
  %v2859 = vmax.f32 %v2763, 0.0
  %v2860 = vmax.f32 %v2764, 0.0
  %v2861 = vmax.f32 %v2765, 0.0
  %v2862 = vmax.f32 %v2766, 0.0
  %v2863 = vmax.f32 %v2767, 0.0
  %v2864 = vmax.f32 %v2768, 0.0
  %v2865 = vmax.f32 %v2769, 0.0
  %v2866 = vmax.f32 %v2770, 0.0
  %v2867 = vmax.f32 %v2771, 0.0
  %v2868 = vmax.f32 %v2772, 0.0
  %v2869 = vmax.f32 %v2773, 0.0
  %v2870 = vmax.f32 %v2774, 0.0
  %v2871 = vmax.f32 %v2775, 0.0
  %v2872 = vmax.f32 %v2776, 0.0
  %v2873 = vmax.f32 %v2777, 0.0
  %v2874 = vmax.f32 %v2778, 0.0
  %v2875 = vmax.f32 %v2779, 0.0
  %v2876 = vmax.f32 %v2780, 0.0
  %v2877 = vmax.f32 %v2781, 0.0
  %v2878 = vmax.f32 %v2782, 0.0
  %v2879 = vmax.f32 %v2783, 0.0
  %v2880 = vmax.f32 %v2784, 0.0
  %v2881 = vmax.f32 %v2785, 0.0
  %v2882 = vmax.f32 %v2786, 0.0
  %v2883 = vmax.f32 %v2787, 0.0
  %v2884 = vmax.f32 %v2788, 0.0
  %v2885 = vmax.f32 %v2789, 0.0
  %v2886 = vmax.f32 %v2790, 0.0
  %v2887 = vmax.f32 %v2791, 0.0
  %v2888 = vmax.f32 %v2792, 0.0
  %v2889 = vmax.f32 %v2793, 0.0
  %v2890 = vmax.f32 %v2794, 0.0
  %v2891 = vmax.f32 %v2795, 0.0
  %v2892 = vmax.f32 %v2796, 0.0
  %v2893 = vmax.f32 %v2797, 0.0
  %v2894 = vmax.f32 %v2798, 0.0
  %v2895 = vmax.f32 %v2799, 0.0
  %v2896 = vmax.f32 %v2800, 0.0
  %v2897 = vmax.f32 %v2801, 0.0
  %v2898 = vmax.f32 %v2802, 0.0
  %v2899 = vmax.f32 %v2803, 0.0
  %v2900 = vmax.f32 %v2804, 0.0
  %v2901 = vmax.f32 %v2805, 0.0
  %v2902 = vmax.f32 %v2806, 0.0
  %v2903 = vmax.f32 %v2807, 0.0
  %v2904 = vmax.f32 %v2808, 0.0
  %v2905 = vmax.f32 %v2809, 0.0
  %v2906 = vmax.f32 %v2810, 0.0
  %v2907 = vmax.f32 %v2811, 0.0
  %v2908 = vmax.f32 %v2812, 0.0
  %v2909 = vmax.f32 %v2813, 0.0
  %v2910 = vmax.f32 %v2814, 0.0
  %v2911 = vmax.f32 %v2815, 0.0
  %v2912 = vmax.f32 %v2816, 0.0
  %v2913 = vmax.f32 %v2817, 0.0
  %v2914 = vmax.f32 %v2818, 0.0
  %v2915 = vmax.f32 %v2819, 0.0
  %v2916 = vmax.f32 %v2820, 0.0
  %v2917 = vmax.f32 %v2821, 0.0
  %v2918 = vmax.f32 %v2822, 0.0
  %v2919 = vmax.f32 %v2823, 0.0
  %v2920 = vmax.f32 %v2824, 0.0
  %v2921 = vmax.f32 %v2825, 0.0
  %v2922 = vmax.f32 %v2826, 0.0
  %v2923 = vmax.f32 %v2827, 0.0
  %v2924 = vmax.f32 %v2828, 0.0
  %v2925 = vmax.f32 %v2829, 0.0
  %v2926 = vmax.f32 %v2830, 0.0
  %v2927 = vmax.f32 %v2831, 0.0
  %v2928 = vld [vmem:[%s5] sm:$0xff]
  %v2929 = vld [vmem:[%s5 + $0x8] sm:$0xff]
  %v2930 = vld [vmem:[%s5 + $0x10] sm:$0xff]
  %v2931 = vld [vmem:[%s5 + $0x18] sm:$0xff]
  %v2932 = vld [vmem:[%s5 + $0x20] sm:$0xff]
  %v2933 = vld [vmem:[%s5 + $0x28] sm:$0xff]
  %v2934 = vld [vmem:[%s5 + $0x30] sm:$0xff]
  %v2935 = vld [vmem:[%s5 + $0x38] sm:$0xff]
  %v2936 = vld [vmem:[%s5 + $0x40] sm:$0xff]
  %v2937 = vld [vmem:[%s5 + $0x48] sm:$0xff]
  %v2938 = vld [vmem:[%s5 + $0x50] sm:$0xff]
  %v2939 = vld [vmem:[%s5 + $0x58] sm:$0xff]
  %v2940 = vld [vmem:[%s5 + $0x60] sm:$0xff]
  %v2941 = vld [vmem:[%s5 + $0x68] sm:$0xff]
  %v2942 = vld [vmem:[%s5 + $0x70] sm:$0xff]
  %v2943 = vld [vmem:[%s5 + $0x78] sm:$0xff]
  %v2944 = vld [vmem:[%s5 + $0x80] sm:$0xff]
  %v2945 = vld [vmem:[%s5 + $0x88] sm:$0xff]
  %v2946 = vld [vmem:[%s5 + $0x90] sm:$0xff]
  %v2947 = vld [vmem:[%s5 + $0x98] sm:$0xff]
  %v2948 = vld [vmem:[%s5 + $0xa0] sm:$0xff]
  %v2949 = vld [vmem:[%s5 + $0xa8] sm:$0xff]
  %v2950 = vld [vmem:[%s5 + $0xb0] sm:$0xff]
  %v2951 = vld [vmem:[%s5 + $0xb8] sm:$0xff]
  %v2952 = vld [vmem:[%s5 + $0xc0] sm:$0xff]
  %v2953 = vld [vmem:[%s5 + $0xc8] sm:$0xff]
  %v2954 = vld [vmem:[%s5 + $0xd0] sm:$0xff]
  %v2955 = vld [vmem:[%s5 + $0xd8] sm:$0xff]
  %v2956 = vld [vmem:[%s5 + $0xe0] sm:$0xff]
  %v2957 = vld [vmem:[%s5 + $0xe8] sm:$0xff]
  %v2958 = vld [vmem:[%s5 + $0xf0] sm:$0xff]
  %v2959 = vld [vmem:[%s5 + $0xf8] sm:$0xff]
  %v2960 = vld [vmem:[%s5 + $0x100] sm:$0xff]
  %v2961 = vld [vmem:[%s5 + $0x108] sm:$0xff]
  %v2962 = vld [vmem:[%s5 + $0x110] sm:$0xff]
  %v2963 = vld [vmem:[%s5 + $0x118] sm:$0xff]
  %v2964 = vld [vmem:[%s5 + $0x120] sm:$0xff]
  %v2965 = vld [vmem:[%s5 + $0x128] sm:$0xff]
  %v2966 = vld [vmem:[%s5 + $0x130] sm:$0xff]
  %v2967 = vld [vmem:[%s5 + $0x138] sm:$0xff]
  %v2968 = vld [vmem:[%s5 + $0x140] sm:$0xff]
  %v2969 = vld [vmem:[%s5 + $0x148] sm:$0xff]
  %v2970 = vld [vmem:[%s5 + $0x150] sm:$0xff]
  %v2971 = vld [vmem:[%s5 + $0x158] sm:$0xff]
  %v2972 = vld [vmem:[%s5 + $0x160] sm:$0xff]
  %v2973 = vld [vmem:[%s5 + $0x168] sm:$0xff]
  %v2974 = vld [vmem:[%s5 + $0x170] sm:$0xff]
  %v2975 = vld [vmem:[%s5 + $0x178] sm:$0xff]
  %v2976 = vld [vmem:[%s5 + $0x180] sm:$0xff]
  %v2977 = vld [vmem:[%s5 + $0x188] sm:$0xff]
  %v2978 = vld [vmem:[%s5 + $0x190] sm:$0xff]
  %v2979 = vld [vmem:[%s5 + $0x198] sm:$0xff]
  %v2980 = vld [vmem:[%s5 + $0x1a0] sm:$0xff]
  %v2981 = vld [vmem:[%s5 + $0x1a8] sm:$0xff]
  %v2982 = vld [vmem:[%s5 + $0x1b0] sm:$0xff]
  %v2983 = vld [vmem:[%s5 + $0x1b8] sm:$0xff]
  %v2984 = vld [vmem:[%s5 + $0x1c0] sm:$0xff]
  %v2985 = vld [vmem:[%s5 + $0x1c8] sm:$0xff]
  %v2986 = vld [vmem:[%s5 + $0x1d0] sm:$0xff]
  %v2987 = vld [vmem:[%s5 + $0x1d8] sm:$0xff]
  %v2988 = vld [vmem:[%s5 + $0x1e0] sm:$0xff]
  %v2989 = vld [vmem:[%s5 + $0x1e8] sm:$0xff]
  %v2990 = vld [vmem:[%s5 + $0x1f0] sm:$0xff]
  %v2991 = vld [vmem:[%s5 + $0x1f8] sm:$0xff]
  %v2992 = vld [vmem:[%s5 + $0x200] sm:$0xff]
  %v2993 = vld [vmem:[%s5 + $0x208] sm:$0xff]
  %v2994 = vld [vmem:[%s5 + $0x210] sm:$0xff]
  %v2995 = vld [vmem:[%s5 + $0x218] sm:$0xff]
  %v2996 = vld [vmem:[%s5 + $0x220] sm:$0xff]
  %v2997 = vld [vmem:[%s5 + $0x228] sm:$0xff]
  %v2998 = vld [vmem:[%s5 + $0x230] sm:$0xff]
  %v2999 = vld [vmem:[%s5 + $0x238] sm:$0xff]
  %v3000 = vld [vmem:[%s5 + $0x240] sm:$0xff]
  %v3001 = vld [vmem:[%s5 + $0x248] sm:$0xff]
  %v3002 = vld [vmem:[%s5 + $0x250] sm:$0xff]
  %v3003 = vld [vmem:[%s5 + $0x258] sm:$0xff]
  %v3004 = vld [vmem:[%s5 + $0x260] sm:$0xff]
  %v3005 = vld [vmem:[%s5 + $0x268] sm:$0xff]
  %v3006 = vld [vmem:[%s5 + $0x270] sm:$0xff]
  %v3007 = vld [vmem:[%s5 + $0x278] sm:$0xff]
  %v3008 = vld [vmem:[%s5 + $0x280] sm:$0xff]
  %v3009 = vld [vmem:[%s5 + $0x288] sm:$0xff]
  %v3010 = vld [vmem:[%s5 + $0x290] sm:$0xff]
  %v3011 = vld [vmem:[%s5 + $0x298] sm:$0xff]
  %v3012 = vld [vmem:[%s5 + $0x2a0] sm:$0xff]
  %v3013 = vld [vmem:[%s5 + $0x2a8] sm:$0xff]
  %v3014 = vld [vmem:[%s5 + $0x2b0] sm:$0xff]
  %v3015 = vld [vmem:[%s5 + $0x2b8] sm:$0xff]
  %v3016 = vld [vmem:[%s5 + $0x2c0] sm:$0xff]
  %v3017 = vld [vmem:[%s5 + $0x2c8] sm:$0xff]
  %v3018 = vld [vmem:[%s5 + $0x2d0] sm:$0xff]
  %v3019 = vld [vmem:[%s5 + $0x2d8] sm:$0xff]
  %v3020 = vld [vmem:[%s5 + $0x2e0] sm:$0xff]
  %v3021 = vld [vmem:[%s5 + $0x2e8] sm:$0xff]
  %v3022 = vld [vmem:[%s5 + $0x2f0] sm:$0xff]
  %v3023 = vld [vmem:[%s5 + $0x2f8] sm:$0xff]
  %v3024 = vld [vmem:[%s5 + $0x300] sm:$0xff]
  %v3025 = vld [vmem:[%s5 + $0x308] sm:$0xff]
  %v3026 = vld [vmem:[%s5 + $0x310] sm:$0xff]
  %v3027 = vld [vmem:[%s5 + $0x318] sm:$0xff]
  %v3028 = vld [vmem:[%s5 + $0x320] sm:$0xff]
  %v3029 = vld [vmem:[%s5 + $0x328] sm:$0xff]
  %v3030 = vld [vmem:[%s5 + $0x330] sm:$0xff]
  %v3031 = vld [vmem:[%s5 + $0x338] sm:$0xff]
  %v3032 = vld [vmem:[%s5 + $0x340] sm:$0xff]
  %v3033 = vld [vmem:[%s5 + $0x348] sm:$0xff]
  %v3034 = vld [vmem:[%s5 + $0x350] sm:$0xff]
  %v3035 = vld [vmem:[%s5 + $0x358] sm:$0xff]
  %v3036 = vld [vmem:[%s5 + $0x360] sm:$0xff]
  %v3037 = vld [vmem:[%s5 + $0x368] sm:$0xff]
  %v3038 = vld [vmem:[%s5 + $0x370] sm:$0xff]
  %v3039 = vld [vmem:[%s5 + $0x378] sm:$0xff]
  %v3040 = vld [vmem:[%s5 + $0x380] sm:$0xff]
  %v3041 = vld [vmem:[%s5 + $0x388] sm:$0xff]
  %v3042 = vld [vmem:[%s5 + $0x390] sm:$0xff]
  %v3043 = vld [vmem:[%s5 + $0x398] sm:$0xff]
  %v3044 = vld [vmem:[%s5 + $0x3a0] sm:$0xff]
  %v3045 = vld [vmem:[%s5 + $0x3a8] sm:$0xff]
  %v3046 = vld [vmem:[%s5 + $0x3b0] sm:$0xff]
  %v3047 = vld [vmem:[%s5 + $0x3b8] sm:$0xff]
  %v3048 = vld [vmem:[%s5 + $0x3c0] sm:$0xff]
  %v3049 = vld [vmem:[%s5 + $0x3c8] sm:$0xff]
  %v3050 = vld [vmem:[%s5 + $0x3d0] sm:$0xff]
  %v3051 = vld [vmem:[%s5 + $0x3d8] sm:$0xff]
  %v3052 = vld [vmem:[%s5 + $0x3e0] sm:$0xff]
  %v3053 = vld [vmem:[%s5 + $0x3e8] sm:$0xff]
  %v3054 = vld [vmem:[%s5 + $0x3f0] sm:$0xff]
  %v3055 = vld [vmem:[%s5 + $0x3f8] sm:$0xff]
  %v3056 = vld [vmem:[%s5 + $0x400] sm:$0xff]
  %v3057 = vld [vmem:[%s5 + $0x408] sm:$0xff]
  %v3058 = vld [vmem:[%s5 + $0x410] sm:$0xff]
  %v3059 = vld [vmem:[%s5 + $0x418] sm:$0xff]
  %v3060 = vld [vmem:[%s5 + $0x420] sm:$0xff]
  %v3061 = vld [vmem:[%s5 + $0x428] sm:$0xff]
  %v3062 = vld [vmem:[%s5 + $0x430] sm:$0xff]
  %v3063 = vld [vmem:[%s5 + $0x438] sm:$0xff]
  %v3064 = vld [vmem:[%s5 + $0x440] sm:$0xff]
  %v3065 = vld [vmem:[%s5 + $0x448] sm:$0xff]
  %v3066 = vld [vmem:[%s5 + $0x450] sm:$0xff]
  %v3067 = vld [vmem:[%s5 + $0x458] sm:$0xff]
  %v3068 = vld [vmem:[%s5 + $0x460] sm:$0xff]
  %v3069 = vld [vmem:[%s5 + $0x468] sm:$0xff]
  %v3070 = vld [vmem:[%s5 + $0x470] sm:$0xff]
  %v3071 = vld [vmem:[%s5 + $0x478] sm:$0xff]
  %v3072 = vld [vmem:[%s5 + $0x480] sm:$0xff]
  %v3073 = vld [vmem:[%s5 + $0x488] sm:$0xff]
  %v3074 = vld [vmem:[%s5 + $0x490] sm:$0xff]
  %v3075 = vld [vmem:[%s5 + $0x498] sm:$0xff]
  %v3076 = vld [vmem:[%s5 + $0x4a0] sm:$0xff]
  %v3077 = vld [vmem:[%s5 + $0x4a8] sm:$0xff]
  %v3078 = vld [vmem:[%s5 + $0x4b0] sm:$0xff]
  %v3079 = vld [vmem:[%s5 + $0x4b8] sm:$0xff]
  %v3080 = vld [vmem:[%s5 + $0x4c0] sm:$0xff]
  %v3081 = vld [vmem:[%s5 + $0x4c8] sm:$0xff]
  %v3082 = vld [vmem:[%s5 + $0x4d0] sm:$0xff]
  %v3083 = vld [vmem:[%s5 + $0x4d8] sm:$0xff]
  %v3084 = vld [vmem:[%s5 + $0x4e0] sm:$0xff]
  %v3085 = vld [vmem:[%s5 + $0x4e8] sm:$0xff]
  %v3086 = vld [vmem:[%s5 + $0x4f0] sm:$0xff]
  %v3087 = vld [vmem:[%s5 + $0x4f8] sm:$0xff]
  %v3088 = vld [vmem:[%s5 + $0x500] sm:$0xff]
  %v3089 = vld [vmem:[%s5 + $0x508] sm:$0xff]
  %v3090 = vld [vmem:[%s5 + $0x510] sm:$0xff]
  %v3091 = vld [vmem:[%s5 + $0x518] sm:$0xff]
  %v3092 = vld [vmem:[%s5 + $0x520] sm:$0xff]
  %v3093 = vld [vmem:[%s5 + $0x528] sm:$0xff]
  %v3094 = vld [vmem:[%s5 + $0x530] sm:$0xff]
  %v3095 = vld [vmem:[%s5 + $0x538] sm:$0xff]
  %v3096 = vld [vmem:[%s5 + $0x540] sm:$0xff]
  %v3097 = vld [vmem:[%s5 + $0x548] sm:$0xff]
  %v3098 = vld [vmem:[%s5 + $0x550] sm:$0xff]
  %v3099 = vld [vmem:[%s5 + $0x558] sm:$0xff]
  %v3100 = vld [vmem:[%s5 + $0x560] sm:$0xff]
  %v3101 = vld [vmem:[%s5 + $0x568] sm:$0xff]
  %v3102 = vld [vmem:[%s5 + $0x570] sm:$0xff]
  %v3103 = vld [vmem:[%s5 + $0x578] sm:$0xff]
  %v3104 = vld [vmem:[%s5 + $0x580] sm:$0xff]
  %v3105 = vld [vmem:[%s5 + $0x588] sm:$0xff]
  %v3106 = vld [vmem:[%s5 + $0x590] sm:$0xff]
  %v3107 = vld [vmem:[%s5 + $0x598] sm:$0xff]
  %v3108 = vld [vmem:[%s5 + $0x5a0] sm:$0xff]
  %v3109 = vld [vmem:[%s5 + $0x5a8] sm:$0xff]
  %v3110 = vld [vmem:[%s5 + $0x5b0] sm:$0xff]
  %v3111 = vld [vmem:[%s5 + $0x5b8] sm:$0xff]
  %v3112 = vld [vmem:[%s5 + $0x5c0] sm:$0xff]
  %v3113 = vld [vmem:[%s5 + $0x5c8] sm:$0xff]
  %v3114 = vld [vmem:[%s5 + $0x5d0] sm:$0xff]
  %v3115 = vld [vmem:[%s5 + $0x5d8] sm:$0xff]
  %v3116 = vld [vmem:[%s5 + $0x5e0] sm:$0xff]
  %v3117 = vld [vmem:[%s5 + $0x5e8] sm:$0xff]
  %v3118 = vld [vmem:[%s5 + $0x5f0] sm:$0xff]
  %v3119 = vld [vmem:[%s5 + $0x5f8] sm:$0xff]
  %v3120 = vld [vmem:[%s5 + $0x600] sm:$0xff]
  %v3121 = vld [vmem:[%s5 + $0x608] sm:$0xff]
  %v3122 = vld [vmem:[%s5 + $0x610] sm:$0xff]
  %v3123 = vld [vmem:[%s5 + $0x618] sm:$0xff]
  %v3124 = vld [vmem:[%s5 + $0x620] sm:$0xff]
  %v3125 = vld [vmem:[%s5 + $0x628] sm:$0xff]
  %v3126 = vld [vmem:[%s5 + $0x630] sm:$0xff]
  %v3127 = vld [vmem:[%s5 + $0x638] sm:$0xff]
  %v3128 = vld [vmem:[%s5 + $0x640] sm:$0xff]
  %v3129 = vld [vmem:[%s5 + $0x648] sm:$0xff]
  %v3130 = vld [vmem:[%s5 + $0x650] sm:$0xff]
  %v3131 = vld [vmem:[%s5 + $0x658] sm:$0xff]
  %v3132 = vld [vmem:[%s5 + $0x660] sm:$0xff]
  %v3133 = vld [vmem:[%s5 + $0x668] sm:$0xff]
  %v3134 = vld [vmem:[%s5 + $0x670] sm:$0xff]
  %v3135 = vld [vmem:[%s5 + $0x678] sm:$0xff]
  %v3136 = vld [vmem:[%s5 + $0x680] sm:$0xff]
  %v3137 = vld [vmem:[%s5 + $0x688] sm:$0xff]
  %v3138 = vld [vmem:[%s5 + $0x690] sm:$0xff]
  %v3139 = vld [vmem:[%s5 + $0x698] sm:$0xff]
  %v3140 = vld [vmem:[%s5 + $0x6a0] sm:$0xff]
  %v3141 = vld [vmem:[%s5 + $0x6a8] sm:$0xff]
  %v3142 = vld [vmem:[%s5 + $0x6b0] sm:$0xff]
  %v3143 = vld [vmem:[%s5 + $0x6b8] sm:$0xff]
  %v3144 = vld [vmem:[%s5 + $0x6c0] sm:$0xff]
  %v3145 = vld [vmem:[%s5 + $0x6c8] sm:$0xff]
  %v3146 = vld [vmem:[%s5 + $0x6d0] sm:$0xff]
  %v3147 = vld [vmem:[%s5 + $0x6d8] sm:$0xff]
  %v3148 = vld [vmem:[%s5 + $0x6e0] sm:$0xff]
  %v3149 = vld [vmem:[%s5 + $0x6e8] sm:$0xff]
  %v3150 = vld [vmem:[%s5 + $0x6f0] sm:$0xff]
  %v3151 = vld [vmem:[%s5 + $0x6f8] sm:$0xff]
  %v3152 = vld [vmem:[%s5 + $0x700] sm:$0xff]
  %v3153 = vld [vmem:[%s5 + $0x708] sm:$0xff]
  %v3154 = vld [vmem:[%s5 + $0x710] sm:$0xff]
  %v3155 = vld [vmem:[%s5 + $0x718] sm:$0xff]
  %v3156 = vld [vmem:[%s5 + $0x720] sm:$0xff]
  %v3157 = vld [vmem:[%s5 + $0x728] sm:$0xff]
  %v3158 = vld [vmem:[%s5 + $0x730] sm:$0xff]
  %v3159 = vld [vmem:[%s5 + $0x738] sm:$0xff]
  %v3160 = vld [vmem:[%s5 + $0x740] sm:$0xff]
  %v3161 = vld [vmem:[%s5 + $0x748] sm:$0xff]
  %v3162 = vld [vmem:[%s5 + $0x750] sm:$0xff]
  %v3163 = vld [vmem:[%s5 + $0x758] sm:$0xff]
  %v3164 = vld [vmem:[%s5 + $0x760] sm:$0xff]
  %v3165 = vld [vmem:[%s5 + $0x768] sm:$0xff]
  %v3166 = vld [vmem:[%s5 + $0x770] sm:$0xff]
  %v3167 = vld [vmem:[%s5 + $0x778] sm:$0xff]
  %v3168 = vld [vmem:[%s5 + $0x780] sm:$0xff]
  %v3169 = vld [vmem:[%s5 + $0x788] sm:$0xff]
  %v3170 = vld [vmem:[%s5 + $0x790] sm:$0xff]
  %v3171 = vld [vmem:[%s5 + $0x798] sm:$0xff]
  %v3172 = vld [vmem:[%s5 + $0x7a0] sm:$0xff]
  %v3173 = vld [vmem:[%s5 + $0x7a8] sm:$0xff]
  %v3174 = vld [vmem:[%s5 + $0x7b0] sm:$0xff]
  %v3175 = vld [vmem:[%s5 + $0x7b8] sm:$0xff]
  %v3176 = vld [vmem:[%s5 + $0x7c0] sm:$0xff]
  %v3177 = vld [vmem:[%s5 + $0x7c8] sm:$0xff]
  %v3178 = vld [vmem:[%s5 + $0x7d0] sm:$0xff]
  %v3179 = vld [vmem:[%s5 + $0x7d8] sm:$0xff]
  %v3180 = vld [vmem:[%s5 + $0x7e0] sm:$0xff]
  %v3181 = vld [vmem:[%s5 + $0x7e8] sm:$0xff]
  %v3182 = vld [vmem:[%s5 + $0x7f0] sm:$0xff]
  %v3183 = vld [vmem:[%s5 + $0x7f8] sm:$0xff]
  %v3184 = vld [vmem:[%s5 + $0x800] sm:$0xff]
  %v3185 = vld [vmem:[%s5 + $0x808] sm:$0xff]
  %v3186 = vld [vmem:[%s5 + $0x810] sm:$0xff]
  %v3187 = vld [vmem:[%s5 + $0x818] sm:$0xff]
  %v3188 = vld [vmem:[%s5 + $0x820] sm:$0xff]
  %v3189 = vld [vmem:[%s5 + $0x828] sm:$0xff]
  %v3190 = vld [vmem:[%s5 + $0x830] sm:$0xff]
  %v3191 = vld [vmem:[%s5 + $0x838] sm:$0xff]
  %v3192 = vld [vmem:[%s5 + $0x840] sm:$0xff]
  %v3193 = vld [vmem:[%s5 + $0x848] sm:$0xff]
  %v3194 = vld [vmem:[%s5 + $0x850] sm:$0xff]
  %v3195 = vld [vmem:[%s5 + $0x858] sm:$0xff]
  %v3196 = vld [vmem:[%s5 + $0x860] sm:$0xff]
  %v3197 = vld [vmem:[%s5 + $0x868] sm:$0xff]
  %v3198 = vld [vmem:[%s5 + $0x870] sm:$0xff]
  %v3199 = vld [vmem:[%s5 + $0x878] sm:$0xff]
  %v3200 = vld [vmem:[%s5 + $0x880] sm:$0xff]
  %v3201 = vld [vmem:[%s5 + $0x888] sm:$0xff]
  %v3202 = vld [vmem:[%s5 + $0x890] sm:$0xff]
  %v3203 = vld [vmem:[%s5 + $0x898] sm:$0xff]
  %v3204 = vld [vmem:[%s5 + $0x8a0] sm:$0xff]
  %v3205 = vld [vmem:[%s5 + $0x8a8] sm:$0xff]
  %v3206 = vld [vmem:[%s5 + $0x8b0] sm:$0xff]
  %v3207 = vld [vmem:[%s5 + $0x8b8] sm:$0xff]
  %v3208 = vld [vmem:[%s5 + $0x8c0] sm:$0xff]
  %v3209 = vld [vmem:[%s5 + $0x8c8] sm:$0xff]
  %v3210 = vld [vmem:[%s5 + $0x8d0] sm:$0xff]
  %v3211 = vld [vmem:[%s5 + $0x8d8] sm:$0xff]
  %v3212 = vld [vmem:[%s5 + $0x8e0] sm:$0xff]
  %v3213 = vld [vmem:[%s5 + $0x8e8] sm:$0xff]
  %v3214 = vld [vmem:[%s5 + $0x8f0] sm:$0xff]
  %v3215 = vld [vmem:[%s5 + $0x8f8] sm:$0xff]
  %v3216 = vld [vmem:[%s5 + $0x900] sm:$0xff]
  %v3217 = vld [vmem:[%s5 + $0x908] sm:$0xff]
  %v3218 = vld [vmem:[%s5 + $0x910] sm:$0xff]
  %v3219 = vld [vmem:[%s5 + $0x918] sm:$0xff]
  %v3220 = vld [vmem:[%s5 + $0x920] sm:$0xff]
  %v3221 = vld [vmem:[%s5 + $0x928] sm:$0xff]
  %v3222 = vld [vmem:[%s5 + $0x930] sm:$0xff]
  %v3223 = vld [vmem:[%s5 + $0x938] sm:$0xff]
  %v3224 = vld [vmem:[%s5 + $0x940] sm:$0xff]
  %v3225 = vld [vmem:[%s5 + $0x948] sm:$0xff]
  %v3226 = vld [vmem:[%s5 + $0x950] sm:$0xff]
  %v3227 = vld [vmem:[%s5 + $0x958] sm:$0xff]
  %v3228 = vld [vmem:[%s5 + $0x960] sm:$0xff]
  %v3229 = vld [vmem:[%s5 + $0x968] sm:$0xff]
  %v3230 = vld [vmem:[%s5 + $0x970] sm:$0xff]
  %v3231 = vld [vmem:[%s5 + $0x978] sm:$0xff]
  %v3232 = vld [vmem:[%s5 + $0x980] sm:$0xff]
  %v3233 = vld [vmem:[%s5 + $0x988] sm:$0xff]
  %v3234 = vld [vmem:[%s5 + $0x990] sm:$0xff]
  %v3235 = vld [vmem:[%s5 + $0x998] sm:$0xff]
  %v3236 = vld [vmem:[%s5 + $0x9a0] sm:$0xff]
  %v3237 = vld [vmem:[%s5 + $0x9a8] sm:$0xff]
  %v3238 = vld [vmem:[%s5 + $0x9b0] sm:$0xff]
  %v3239 = vld [vmem:[%s5 + $0x9b8] sm:$0xff]
  %v3240 = vld [vmem:[%s5 + $0x9c0] sm:$0xff]
  %v3241 = vld [vmem:[%s5 + $0x9c8] sm:$0xff]
  %v3242 = vld [vmem:[%s5 + $0x9d0] sm:$0xff]
  %v3243 = vld [vmem:[%s5 + $0x9d8] sm:$0xff]
  %v3244 = vld [vmem:[%s5 + $0x9e0] sm:$0xff]
  %v3245 = vld [vmem:[%s5 + $0x9e8] sm:$0xff]
  %v3246 = vld [vmem:[%s5 + $0x9f0] sm:$0xff]
  %v3247 = vld [vmem:[%s5 + $0x9f8] sm:$0xff]
  %v3248 = vld [vmem:[%s5 + $0xa00] sm:$0xff]
  %v3249 = vld [vmem:[%s5 + $0xa08] sm:$0xff]
  %v3250 = vld [vmem:[%s5 + $0xa10] sm:$0xff]
  %v3251 = vld [vmem:[%s5 + $0xa18] sm:$0xff]
  %v3252 = vld [vmem:[%s5 + $0xa20] sm:$0xff]
  %v3253 = vld [vmem:[%s5 + $0xa28] sm:$0xff]
  %v3254 = vld [vmem:[%s5 + $0xa30] sm:$0xff]
  %v3255 = vld [vmem:[%s5 + $0xa38] sm:$0xff]
  %v3256 = vld [vmem:[%s5 + $0xa40] sm:$0xff]
  %v3257 = vld [vmem:[%s5 + $0xa48] sm:$0xff]
  %v3258 = vld [vmem:[%s5 + $0xa50] sm:$0xff]
  %v3259 = vld [vmem:[%s5 + $0xa58] sm:$0xff]
  %v3260 = vld [vmem:[%s5 + $0xa60] sm:$0xff]
  %v3261 = vld [vmem:[%s5 + $0xa68] sm:$0xff]
  %v3262 = vld [vmem:[%s5 + $0xa70] sm:$0xff]
  %v3263 = vld [vmem:[%s5 + $0xa78] sm:$0xff]
  %v3264 = vld [vmem:[%s5 + $0xa80] sm:$0xff]
  %v3265 = vld [vmem:[%s5 + $0xa88] sm:$0xff]
  %v3266 = vld [vmem:[%s5 + $0xa90] sm:$0xff]
  %v3267 = vld [vmem:[%s5 + $0xa98] sm:$0xff]
  %v3268 = vld [vmem:[%s5 + $0xaa0] sm:$0xff]
  %v3269 = vld [vmem:[%s5 + $0xaa8] sm:$0xff]
  %v3270 = vld [vmem:[%s5 + $0xab0] sm:$0xff]
  %v3271 = vld [vmem:[%s5 + $0xab8] sm:$0xff]
  %v3272 = vld [vmem:[%s5 + $0xac0] sm:$0xff]
  %v3273 = vld [vmem:[%s5 + $0xac8] sm:$0xff]
  %v3274 = vld [vmem:[%s5 + $0xad0] sm:$0xff]
  %v3275 = vld [vmem:[%s5 + $0xad8] sm:$0xff]
  %v3276 = vld [vmem:[%s5 + $0xae0] sm:$0xff]
  %v3277 = vld [vmem:[%s5 + $0xae8] sm:$0xff]
  %v3278 = vld [vmem:[%s5 + $0xaf0] sm:$0xff]
  %v3279 = vld [vmem:[%s5 + $0xaf8] sm:$0xff]
  %v3280 = vld [vmem:[%s5 + $0xb00] sm:$0xff]
  %v3281 = vld [vmem:[%s5 + $0xb08] sm:$0xff]
  %v3282 = vld [vmem:[%s5 + $0xb10] sm:$0xff]
  %v3283 = vld [vmem:[%s5 + $0xb18] sm:$0xff]
  %v3284 = vld [vmem:[%s5 + $0xb20] sm:$0xff]
  %v3285 = vld [vmem:[%s5 + $0xb28] sm:$0xff]
  %v3286 = vld [vmem:[%s5 + $0xb30] sm:$0xff]
  %v3287 = vld [vmem:[%s5 + $0xb38] sm:$0xff]
  %v3288 = vld [vmem:[%s5 + $0xb40] sm:$0xff]
  %v3289 = vld [vmem:[%s5 + $0xb48] sm:$0xff]
  %v3290 = vld [vmem:[%s5 + $0xb50] sm:$0xff]
  %v3291 = vld [vmem:[%s5 + $0xb58] sm:$0xff]
  %v3292 = vld [vmem:[%s5 + $0xb60] sm:$0xff]
  %v3293 = vld [vmem:[%s5 + $0xb68] sm:$0xff]
  %v3294 = vld [vmem:[%s5 + $0xb70] sm:$0xff]
  %v3295 = vld [vmem:[%s5 + $0xb78] sm:$0xff]
  %v3296 = vld [vmem:[%s5 + $0xb80] sm:$0xff]
  %v3297 = vld [vmem:[%s5 + $0xb88] sm:$0xff]
  %v3298 = vld [vmem:[%s5 + $0xb90] sm:$0xff]
  %v3299 = vld [vmem:[%s5 + $0xb98] sm:$0xff]
  %v3300 = vld [vmem:[%s5 + $0xba0] sm:$0xff]
  %v3301 = vld [vmem:[%s5 + $0xba8] sm:$0xff]
  %v3302 = vld [vmem:[%s5 + $0xbb0] sm:$0xff]
  %v3303 = vld [vmem:[%s5 + $0xbb8] sm:$0xff]
  %v3304 = vld [vmem:[%s5 + $0xbc0] sm:$0xff]
  %v3305 = vld [vmem:[%s5 + $0xbc8] sm:$0xff]
  %v3306 = vld [vmem:[%s5 + $0xbd0] sm:$0xff]
  %v3307 = vld [vmem:[%s5 + $0xbd8] sm:$0xff]
  %v3308 = vld [vmem:[%s5 + $0xbe0] sm:$0xff]
  %v3309 = vld [vmem:[%s5 + $0xbe8] sm:$0xff]
  %v3310 = vld [vmem:[%s5 + $0xbf0] sm:$0xff]
  %v3311 = vld [vmem:[%s5 + $0xbf8] sm:$0xff]
  %v3312 = vld [vmem:[%s5 + $0xc00] sm:$0xff]
  %v3313 = vld [vmem:[%s5 + $0xc08] sm:$0xff]
  %v3314 = vld [vmem:[%s5 + $0xc10] sm:$0xff]
  %v3315 = vld [vmem:[%s5 + $0xc18] sm:$0xff]
  %v3316 = vld [vmem:[%s5 + $0xc20] sm:$0xff]
  %v3317 = vld [vmem:[%s5 + $0xc28] sm:$0xff]
  %v3318 = vld [vmem:[%s5 + $0xc30] sm:$0xff]
  %v3319 = vld [vmem:[%s5 + $0xc38] sm:$0xff]
  %v3320 = vld [vmem:[%s5 + $0xc40] sm:$0xff]
  %v3321 = vld [vmem:[%s5 + $0xc48] sm:$0xff]
  %v3322 = vld [vmem:[%s5 + $0xc50] sm:$0xff]
  %v3323 = vld [vmem:[%s5 + $0xc58] sm:$0xff]
  %v3324 = vld [vmem:[%s5 + $0xc60] sm:$0xff]
  %v3325 = vld [vmem:[%s5 + $0xc68] sm:$0xff]
  %v3326 = vld [vmem:[%s5 + $0xc70] sm:$0xff]
  %v3327 = vld [vmem:[%s5 + $0xc78] sm:$0xff]
  %v3328 = vld [vmem:[%s5 + $0xc80] sm:$0xff]
  %v3329 = vld [vmem:[%s5 + $0xc88] sm:$0xff]
  %v3330 = vld [vmem:[%s5 + $0xc90] sm:$0xff]
  %v3331 = vld [vmem:[%s5 + $0xc98] sm:$0xff]
  %v3332 = vld [vmem:[%s5 + $0xca0] sm:$0xff]
  %v3333 = vld [vmem:[%s5 + $0xca8] sm:$0xff]
  %v3334 = vld [vmem:[%s5 + $0xcb0] sm:$0xff]
  %v3335 = vld [vmem:[%s5 + $0xcb8] sm:$0xff]
  %v3336 = vld [vmem:[%s5 + $0xcc0] sm:$0xff]
  %v3337 = vld [vmem:[%s5 + $0xcc8] sm:$0xff]
  %v3338 = vld [vmem:[%s5 + $0xcd0] sm:$0xff]
  %v3339 = vld [vmem:[%s5 + $0xcd8] sm:$0xff]
  %v3340 = vld [vmem:[%s5 + $0xce0] sm:$0xff]
  %v3341 = vld [vmem:[%s5 + $0xce8] sm:$0xff]
  %v3342 = vld [vmem:[%s5 + $0xcf0] sm:$0xff]
  %v3343 = vld [vmem:[%s5 + $0xcf8] sm:$0xff]
  %v3344 = vld [vmem:[%s5 + $0xd00] sm:$0xff]
  %v3345 = vld [vmem:[%s5 + $0xd08] sm:$0xff]
  %v3346 = vld [vmem:[%s5 + $0xd10] sm:$0xff]
  %v3347 = vld [vmem:[%s5 + $0xd18] sm:$0xff]
  %v3348 = vld [vmem:[%s5 + $0xd20] sm:$0xff]
  %v3349 = vld [vmem:[%s5 + $0xd28] sm:$0xff]
  %v3350 = vld [vmem:[%s5 + $0xd30] sm:$0xff]
  %v3351 = vld [vmem:[%s5 + $0xd38] sm:$0xff]
  %v3352 = vld [vmem:[%s5 + $0xd40] sm:$0xff]
  %v3353 = vld [vmem:[%s5 + $0xd48] sm:$0xff]
  %v3354 = vld [vmem:[%s5 + $0xd50] sm:$0xff]
  %v3355 = vld [vmem:[%s5 + $0xd58] sm:$0xff]
  %v3356 = vld [vmem:[%s5 + $0xd60] sm:$0xff]
  %v3357 = vld [vmem:[%s5 + $0xd68] sm:$0xff]
  %v3358 = vld [vmem:[%s5 + $0xd70] sm:$0xff]
  %v3359 = vld [vmem:[%s5 + $0xd78] sm:$0xff]
  %v3360 = vld [vmem:[%s5 + $0xd80] sm:$0xff]
  %v3361 = vld [vmem:[%s5 + $0xd88] sm:$0xff]
  %v3362 = vld [vmem:[%s5 + $0xd90] sm:$0xff]
  %v3363 = vld [vmem:[%s5 + $0xd98] sm:$0xff]
  %v3364 = vld [vmem:[%s5 + $0xda0] sm:$0xff]
  %v3365 = vld [vmem:[%s5 + $0xda8] sm:$0xff]
  %v3366 = vld [vmem:[%s5 + $0xdb0] sm:$0xff]
  %v3367 = vld [vmem:[%s5 + $0xdb8] sm:$0xff]
  %v3368 = vld [vmem:[%s5 + $0xdc0] sm:$0xff]
  %v3369 = vld [vmem:[%s5 + $0xdc8] sm:$0xff]
  %v3370 = vld [vmem:[%s5 + $0xdd0] sm:$0xff]
  %v3371 = vld [vmem:[%s5 + $0xdd8] sm:$0xff]
  %v3372 = vld [vmem:[%s5 + $0xde0] sm:$0xff]
  %v3373 = vld [vmem:[%s5 + $0xde8] sm:$0xff]
  %v3374 = vld [vmem:[%s5 + $0xdf0] sm:$0xff]
  %v3375 = vld [vmem:[%s5 + $0xdf8] sm:$0xff]
  %v3376 = vld [vmem:[%s5 + $0xe00] sm:$0xff]
  %v3377 = vld [vmem:[%s5 + $0xe08] sm:$0xff]
  %v3378 = vld [vmem:[%s5 + $0xe10] sm:$0xff]
  %v3379 = vld [vmem:[%s5 + $0xe18] sm:$0xff]
  %v3380 = vld [vmem:[%s5 + $0xe20] sm:$0xff]
  %v3381 = vld [vmem:[%s5 + $0xe28] sm:$0xff]
  %v3382 = vld [vmem:[%s5 + $0xe30] sm:$0xff]
  %v3383 = vld [vmem:[%s5 + $0xe38] sm:$0xff]
  %v3384 = vld [vmem:[%s5 + $0xe40] sm:$0xff]
  %v3385 = vld [vmem:[%s5 + $0xe48] sm:$0xff]
  %v3386 = vld [vmem:[%s5 + $0xe50] sm:$0xff]
  %v3387 = vld [vmem:[%s5 + $0xe58] sm:$0xff]
  %v3388 = vld [vmem:[%s5 + $0xe60] sm:$0xff]
  %v3389 = vld [vmem:[%s5 + $0xe68] sm:$0xff]
  %v3390 = vld [vmem:[%s5 + $0xe70] sm:$0xff]
  %v3391 = vld [vmem:[%s5 + $0xe78] sm:$0xff]
  %v3392 = vld [vmem:[%s5 + $0xe80] sm:$0xff]
  %v3393 = vld [vmem:[%s5 + $0xe88] sm:$0xff]
  %v3394 = vld [vmem:[%s5 + $0xe90] sm:$0xff]
  %v3395 = vld [vmem:[%s5 + $0xe98] sm:$0xff]
  %v3396 = vld [vmem:[%s5 + $0xea0] sm:$0xff]
  %v3397 = vld [vmem:[%s5 + $0xea8] sm:$0xff]
  %v3398 = vld [vmem:[%s5 + $0xeb0] sm:$0xff]
  %v3399 = vld [vmem:[%s5 + $0xeb8] sm:$0xff]
  %v3400 = vld [vmem:[%s5 + $0xec0] sm:$0xff]
  %v3401 = vld [vmem:[%s5 + $0xec8] sm:$0xff]
  %v3402 = vld [vmem:[%s5 + $0xed0] sm:$0xff]
  %v3403 = vld [vmem:[%s5 + $0xed8] sm:$0xff]
  %v3404 = vld [vmem:[%s5 + $0xee0] sm:$0xff]
  %v3405 = vld [vmem:[%s5 + $0xee8] sm:$0xff]
  %v3406 = vld [vmem:[%s5 + $0xef0] sm:$0xff]
  %v3407 = vld [vmem:[%s5 + $0xef8] sm:$0xff]
  %v3408 = vld [vmem:[%s5 + $0xf00] sm:$0xff]
  %v3409 = vld [vmem:[%s5 + $0xf08] sm:$0xff]
  %v3410 = vld [vmem:[%s5 + $0xf10] sm:$0xff]
  %v3411 = vld [vmem:[%s5 + $0xf18] sm:$0xff]
  %v3412 = vld [vmem:[%s5 + $0xf20] sm:$0xff]
  %v3413 = vld [vmem:[%s5 + $0xf28] sm:$0xff]
  %v3414 = vld [vmem:[%s5 + $0xf30] sm:$0xff]
  %v3415 = vld [vmem:[%s5 + $0xf38] sm:$0xff]
  %v3416 = vld [vmem:[%s5 + $0xf40] sm:$0xff]
  %v3417 = vld [vmem:[%s5 + $0xf48] sm:$0xff]
  %v3418 = vld [vmem:[%s5 + $0xf50] sm:$0xff]
  %v3419 = vld [vmem:[%s5 + $0xf58] sm:$0xff]
  %v3420 = vld [vmem:[%s5 + $0xf60] sm:$0xff]
  %v3421 = vld [vmem:[%s5 + $0xf68] sm:$0xff]
  %v3422 = vld [vmem:[%s5 + $0xf70] sm:$0xff]
  %v3423 = vld [vmem:[%s5 + $0xf78] sm:$0xff]
  %v3424 = vld [vmem:[%s5 + $0xf80] sm:$0xff]
  %v3425 = vld [vmem:[%s5 + $0xf88] sm:$0xff]
  %v3426 = vld [vmem:[%s5 + $0xf90] sm:$0xff]
  %v3427 = vld [vmem:[%s5 + $0xf98] sm:$0xff]
  %v3428 = vld [vmem:[%s5 + $0xfa0] sm:$0xff]
  %v3429 = vld [vmem:[%s5 + $0xfa8] sm:$0xff]
  %v3430 = vld [vmem:[%s5 + $0xfb0] sm:$0xff]
  %v3431 = vld [vmem:[%s5 + $0xfb8] sm:$0xff]
  %v3432 = vld [vmem:[%s5 + $0xfc0] sm:$0xff]
  %v3433 = vld [vmem:[%s5 + $0xfc8] sm:$0xff]
  %v3434 = vld [vmem:[%s5 + $0xfd0] sm:$0xff]
  %v3435 = vld [vmem:[%s5 + $0xfd8] sm:$0xff]
  %v3436 = vld [vmem:[%s5 + $0xfe0] sm:$0xff]
  %v3437 = vld [vmem:[%s5 + $0xfe8] sm:$0xff]
  %v3438 = vld [vmem:[%s5 + $0xff0] sm:$0xff]
  %v3439 = vld [vmem:[%s5 + $0xff8] sm:$0xff]
  %v3440 = vld [vmem:[%s5 + $0x1000] sm:$0xff]
  %v3441 = vld [vmem:[%s5 + $0x1008] sm:$0xff]
  %v3442 = vld [vmem:[%s5 + $0x1010] sm:$0xff]
  %v3443 = vld [vmem:[%s5 + $0x1018] sm:$0xff]
  %v3444 = vld [vmem:[%s5 + $0x1020] sm:$0xff]
  %v3445 = vld [vmem:[%s5 + $0x1028] sm:$0xff]
  %v3446 = vld [vmem:[%s5 + $0x1030] sm:$0xff]
  %v3447 = vld [vmem:[%s5 + $0x1038] sm:$0xff]
  %v3448 = vld [vmem:[%s5 + $0x1040] sm:$0xff]
  %v3449 = vld [vmem:[%s5 + $0x1048] sm:$0xff]
  %v3450 = vld [vmem:[%s5 + $0x1050] sm:$0xff]
  %v3451 = vld [vmem:[%s5 + $0x1058] sm:$0xff]
  %v3452 = vld [vmem:[%s5 + $0x1060] sm:$0xff]
  %v3453 = vld [vmem:[%s5 + $0x1068] sm:$0xff]
  %v3454 = vld [vmem:[%s5 + $0x1070] sm:$0xff]
  %v3455 = vld [vmem:[%s5 + $0x1078] sm:$0xff]
  %v3456 = vld [vmem:[%s5 + $0x1080] sm:$0xff]
  %v3457 = vld [vmem:[%s5 + $0x1088] sm:$0xff]
  %v3458 = vld [vmem:[%s5 + $0x1090] sm:$0xff]
  %v3459 = vld [vmem:[%s5 + $0x1098] sm:$0xff]
  %v3460 = vld [vmem:[%s5 + $0x10a0] sm:$0xff]
  %v3461 = vld [vmem:[%s5 + $0x10a8] sm:$0xff]
  %v3462 = vld [vmem:[%s5 + $0x10b0] sm:$0xff]
  %v3463 = vld [vmem:[%s5 + $0x10b8] sm:$0xff]
  %v3464 = vld [vmem:[%s5 + $0x10c0] sm:$0xff]
  %v3465 = vld [vmem:[%s5 + $0x10c8] sm:$0xff]
  %v3466 = vld [vmem:[%s5 + $0x10d0] sm:$0xff]
  %v3467 = vld [vmem:[%s5 + $0x10d8] sm:$0xff]
  %v3468 = vld [vmem:[%s5 + $0x10e0] sm:$0xff]
  %v3469 = vld [vmem:[%s5 + $0x10e8] sm:$0xff]
  %v3470 = vld [vmem:[%s5 + $0x10f0] sm:$0xff]
  %v3471 = vld [vmem:[%s5 + $0x10f8] sm:$0xff]
  %v3472 = vld [vmem:[%s5 + $0x1100] sm:$0xff]
  %v3473 = vld [vmem:[%s5 + $0x1108] sm:$0xff]
  %v3474 = vld [vmem:[%s5 + $0x1110] sm:$0xff]
  %v3475 = vld [vmem:[%s5 + $0x1118] sm:$0xff]
  %v3476 = vld [vmem:[%s5 + $0x1120] sm:$0xff]
  %v3477 = vld [vmem:[%s5 + $0x1128] sm:$0xff]
  %v3478 = vld [vmem:[%s5 + $0x1130] sm:$0xff]
  %v3479 = vld [vmem:[%s5 + $0x1138] sm:$0xff]
  %v3480 = vld [vmem:[%s5 + $0x1140] sm:$0xff]
  %v3481 = vld [vmem:[%s5 + $0x1148] sm:$0xff]
  %v3482 = vld [vmem:[%s5 + $0x1150] sm:$0xff]
  %v3483 = vld [vmem:[%s5 + $0x1158] sm:$0xff]
  %v3484 = vld [vmem:[%s5 + $0x1160] sm:$0xff]
  %v3485 = vld [vmem:[%s5 + $0x1168] sm:$0xff]
  %v3486 = vld [vmem:[%s5 + $0x1170] sm:$0xff]
  %v3487 = vld [vmem:[%s5 + $0x1178] sm:$0xff]
  %v3488 = vld [vmem:[%s5 + $0x1180] sm:$0xff]
  %v3489 = vld [vmem:[%s5 + $0x1188] sm:$0xff]
  %v3490 = vld [vmem:[%s5 + $0x1190] sm:$0xff]
  %v3491 = vld [vmem:[%s5 + $0x1198] sm:$0xff]
  %v3492 = vld [vmem:[%s5 + $0x11a0] sm:$0xff]
  %v3493 = vld [vmem:[%s5 + $0x11a8] sm:$0xff]
  %v3494 = vld [vmem:[%s5 + $0x11b0] sm:$0xff]
  %v3495 = vld [vmem:[%s5 + $0x11b8] sm:$0xff]
  %v3496 = vld [vmem:[%s5 + $0x11c0] sm:$0xff]
  %v3497 = vld [vmem:[%s5 + $0x11c8] sm:$0xff]
  %v3498 = vld [vmem:[%s5 + $0x11d0] sm:$0xff]
  %v3499 = vld [vmem:[%s5 + $0x11d8] sm:$0xff]
  %v3500 = vld [vmem:[%s5 + $0x11e0] sm:$0xff]
  %v3501 = vld [vmem:[%s5 + $0x11e8] sm:$0xff]
  %v3502 = vld [vmem:[%s5 + $0x11f0] sm:$0xff]
  %v3503 = vld [vmem:[%s5 + $0x11f8] sm:$0xff]
  %v3504 = vld [vmem:[%s5 + $0x1200] sm:$0xff]
  %v3505 = vld [vmem:[%s5 + $0x1208] sm:$0xff]
  %v3506 = vld [vmem:[%s5 + $0x1210] sm:$0xff]
  %v3507 = vld [vmem:[%s5 + $0x1218] sm:$0xff]
  %v3508 = vld [vmem:[%s5 + $0x1220] sm:$0xff]
  %v3509 = vld [vmem:[%s5 + $0x1228] sm:$0xff]
  %v3510 = vld [vmem:[%s5 + $0x1230] sm:$0xff]
  %v3511 = vld [vmem:[%s5 + $0x1238] sm:$0xff]
  %v3512 = vld [vmem:[%s5 + $0x1240] sm:$0xff]
  %v3513 = vld [vmem:[%s5 + $0x1248] sm:$0xff]
  %v3514 = vld [vmem:[%s5 + $0x1250] sm:$0xff]
  %v3515 = vld [vmem:[%s5 + $0x1258] sm:$0xff]
  %v3516 = vld [vmem:[%s5 + $0x1260] sm:$0xff]
  %v3517 = vld [vmem:[%s5 + $0x1268] sm:$0xff]
  %v3518 = vld [vmem:[%s5 + $0x1270] sm:$0xff]
  %v3519 = vld [vmem:[%s5 + $0x1278] sm:$0xff]
  %v3520 = vld [vmem:[%s5 + $0x1280] sm:$0xff]
  %v3521 = vld [vmem:[%s5 + $0x1288] sm:$0xff]
  %v3522 = vld [vmem:[%s5 + $0x1290] sm:$0xff]
  %v3523 = vld [vmem:[%s5 + $0x1298] sm:$0xff]
  %v3524 = vld [vmem:[%s5 + $0x12a0] sm:$0xff]
  %v3525 = vld [vmem:[%s5 + $0x12a8] sm:$0xff]
  %v3526 = vld [vmem:[%s5 + $0x12b0] sm:$0xff]
  %v3527 = vld [vmem:[%s5 + $0x12b8] sm:$0xff]
  %v3528 = vld [vmem:[%s5 + $0x12c0] sm:$0xff]
  %v3529 = vld [vmem:[%s5 + $0x12c8] sm:$0xff]
  %v3530 = vld [vmem:[%s5 + $0x12d0] sm:$0xff]
  %v3531 = vld [vmem:[%s5 + $0x12d8] sm:$0xff]
  %v3532 = vld [vmem:[%s5 + $0x12e0] sm:$0xff]
  %v3533 = vld [vmem:[%s5 + $0x12e8] sm:$0xff]
  %v3534 = vld [vmem:[%s5 + $0x12f0] sm:$0xff]
  %v3535 = vld [vmem:[%s5 + $0x12f8] sm:$0xff]
  %v3536 = vld [vmem:[%s5 + $0x1300] sm:$0xff]
  %v3537 = vld [vmem:[%s5 + $0x1308] sm:$0xff]
  %v3538 = vld [vmem:[%s5 + $0x1310] sm:$0xff]
  %v3539 = vld [vmem:[%s5 + $0x1318] sm:$0xff]
  %v3540 = vld [vmem:[%s5 + $0x1320] sm:$0xff]
  %v3541 = vld [vmem:[%s5 + $0x1328] sm:$0xff]
  %v3542 = vld [vmem:[%s5 + $0x1330] sm:$0xff]
  %v3543 = vld [vmem:[%s5 + $0x1338] sm:$0xff]
  %v3544 = vld [vmem:[%s5 + $0x1340] sm:$0xff]
  %v3545 = vld [vmem:[%s5 + $0x1348] sm:$0xff]
  %v3546 = vld [vmem:[%s5 + $0x1350] sm:$0xff]
  %v3547 = vld [vmem:[%s5 + $0x1358] sm:$0xff]
  %v3548 = vld [vmem:[%s5 + $0x1360] sm:$0xff]
  %v3549 = vld [vmem:[%s5 + $0x1368] sm:$0xff]
  %v3550 = vld [vmem:[%s5 + $0x1370] sm:$0xff]
  %v3551 = vld [vmem:[%s5 + $0x1378] sm:$0xff]
  %v3552 = vld [vmem:[%s5 + $0x1380] sm:$0xff]
  %v3553 = vld [vmem:[%s5 + $0x1388] sm:$0xff]
  %v3554 = vld [vmem:[%s5 + $0x1390] sm:$0xff]
  %v3555 = vld [vmem:[%s5 + $0x1398] sm:$0xff]
  %v3556 = vld [vmem:[%s5 + $0x13a0] sm:$0xff]
  %v3557 = vld [vmem:[%s5 + $0x13a8] sm:$0xff]
  %v3558 = vld [vmem:[%s5 + $0x13b0] sm:$0xff]
  %v3559 = vld [vmem:[%s5 + $0x13b8] sm:$0xff]
  %v3560 = vld [vmem:[%s5 + $0x13c0] sm:$0xff]
  %v3561 = vld [vmem:[%s5 + $0x13c8] sm:$0xff]
  %v3562 = vld [vmem:[%s5 + $0x13d0] sm:$0xff]
  %v3563 = vld [vmem:[%s5 + $0x13d8] sm:$0xff]
  %v3564 = vld [vmem:[%s5 + $0x13e0] sm:$0xff]
  %v3565 = vld [vmem:[%s5 + $0x13e8] sm:$0xff]
  %v3566 = vld [vmem:[%s5 + $0x13f0] sm:$0xff]
  %v3567 = vld [vmem:[%s5 + $0x13f8] sm:$0xff]
  %v3568 = vld [vmem:[%s5 + $0x1400] sm:$0xff]
  %v3569 = vld [vmem:[%s5 + $0x1408] sm:$0xff]
  %v3570 = vld [vmem:[%s5 + $0x1410] sm:$0xff]
  %v3571 = vld [vmem:[%s5 + $0x1418] sm:$0xff]
  %v3572 = vld [vmem:[%s5 + $0x1420] sm:$0xff]
  %v3573 = vld [vmem:[%s5 + $0x1428] sm:$0xff]
  %v3574 = vld [vmem:[%s5 + $0x1430] sm:$0xff]
  %v3575 = vld [vmem:[%s5 + $0x1438] sm:$0xff]
  %v3576 = vld [vmem:[%s5 + $0x1440] sm:$0xff]
  %v3577 = vld [vmem:[%s5 + $0x1448] sm:$0xff]
  %v3578 = vld [vmem:[%s5 + $0x1450] sm:$0xff]
  %v3579 = vld [vmem:[%s5 + $0x1458] sm:$0xff]
  %v3580 = vld [vmem:[%s5 + $0x1460] sm:$0xff]
  %v3581 = vld [vmem:[%s5 + $0x1468] sm:$0xff]
  %v3582 = vld [vmem:[%s5 + $0x1470] sm:$0xff]
  %v3583 = vld [vmem:[%s5 + $0x1478] sm:$0xff]
  %v3584 = vld [vmem:[%s5 + $0x1480] sm:$0xff]
  %v3585 = vld [vmem:[%s5 + $0x1488] sm:$0xff]
  %v3586 = vld [vmem:[%s5 + $0x1490] sm:$0xff]
  %v3587 = vld [vmem:[%s5 + $0x1498] sm:$0xff]
  %v3588 = vld [vmem:[%s5 + $0x14a0] sm:$0xff]
  %v3589 = vld [vmem:[%s5 + $0x14a8] sm:$0xff]
  %v3590 = vld [vmem:[%s5 + $0x14b0] sm:$0xff]
  %v3591 = vld [vmem:[%s5 + $0x14b8] sm:$0xff]
  %v3592 = vld [vmem:[%s5 + $0x14c0] sm:$0xff]
  %v3593 = vld [vmem:[%s5 + $0x14c8] sm:$0xff]
  %v3594 = vld [vmem:[%s5 + $0x14d0] sm:$0xff]
  %v3595 = vld [vmem:[%s5 + $0x14d8] sm:$0xff]
  %v3596 = vld [vmem:[%s5 + $0x14e0] sm:$0xff]
  %v3597 = vld [vmem:[%s5 + $0x14e8] sm:$0xff]
  %v3598 = vld [vmem:[%s5 + $0x14f0] sm:$0xff]
  %v3599 = vld [vmem:[%s5 + $0x14f8] sm:$0xff]
  %v3600 = vld [vmem:[%s5 + $0x1500] sm:$0xff]
  %v3601 = vld [vmem:[%s5 + $0x1508] sm:$0xff]
  %v3602 = vld [vmem:[%s5 + $0x1510] sm:$0xff]
  %v3603 = vld [vmem:[%s5 + $0x1518] sm:$0xff]
  %v3604 = vld [vmem:[%s5 + $0x1520] sm:$0xff]
  %v3605 = vld [vmem:[%s5 + $0x1528] sm:$0xff]
  %v3606 = vld [vmem:[%s5 + $0x1530] sm:$0xff]
  %v3607 = vld [vmem:[%s5 + $0x1538] sm:$0xff]
  %v3608 = vld [vmem:[%s5 + $0x1540] sm:$0xff]
  %v3609 = vld [vmem:[%s5 + $0x1548] sm:$0xff]
  %v3610 = vld [vmem:[%s5 + $0x1550] sm:$0xff]
  %v3611 = vld [vmem:[%s5 + $0x1558] sm:$0xff]
  %v3612 = vld [vmem:[%s5 + $0x1560] sm:$0xff]
  %v3613 = vld [vmem:[%s5 + $0x1568] sm:$0xff]
  %v3614 = vld [vmem:[%s5 + $0x1570] sm:$0xff]
  %v3615 = vld [vmem:[%s5 + $0x1578] sm:$0xff]
  %v3616 = vld [vmem:[%s5 + $0x1580] sm:$0xff]
  %v3617 = vld [vmem:[%s5 + $0x1588] sm:$0xff]
  %v3618 = vld [vmem:[%s5 + $0x1590] sm:$0xff]
  %v3619 = vld [vmem:[%s5 + $0x1598] sm:$0xff]
  %v3620 = vld [vmem:[%s5 + $0x15a0] sm:$0xff]
  %v3621 = vld [vmem:[%s5 + $0x15a8] sm:$0xff]
  %v3622 = vld [vmem:[%s5 + $0x15b0] sm:$0xff]
  %v3623 = vld [vmem:[%s5 + $0x15b8] sm:$0xff]
  %v3624 = vld [vmem:[%s5 + $0x15c0] sm:$0xff]
  %v3625 = vld [vmem:[%s5 + $0x15c8] sm:$0xff]
  %v3626 = vld [vmem:[%s5 + $0x15d0] sm:$0xff]
  %v3627 = vld [vmem:[%s5 + $0x15d8] sm:$0xff]
  %v3628 = vld [vmem:[%s5 + $0x15e0] sm:$0xff]
  %v3629 = vld [vmem:[%s5 + $0x15e8] sm:$0xff]
  %v3630 = vld [vmem:[%s5 + $0x15f0] sm:$0xff]
  %v3631 = vld [vmem:[%s5 + $0x15f8] sm:$0xff]
  %v3632 = vld [vmem:[%s5 + $0x1600] sm:$0xff]
  %v3633 = vld [vmem:[%s5 + $0x1608] sm:$0xff]
  %v3634 = vld [vmem:[%s5 + $0x1610] sm:$0xff]
  %v3635 = vld [vmem:[%s5 + $0x1618] sm:$0xff]
  %v3636 = vld [vmem:[%s5 + $0x1620] sm:$0xff]
  %v3637 = vld [vmem:[%s5 + $0x1628] sm:$0xff]
  %v3638 = vld [vmem:[%s5 + $0x1630] sm:$0xff]
  %v3639 = vld [vmem:[%s5 + $0x1638] sm:$0xff]
  %v3640 = vld [vmem:[%s5 + $0x1640] sm:$0xff]
  %v3641 = vld [vmem:[%s5 + $0x1648] sm:$0xff]
  %v3642 = vld [vmem:[%s5 + $0x1650] sm:$0xff]
  %v3643 = vld [vmem:[%s5 + $0x1658] sm:$0xff]
  %v3644 = vld [vmem:[%s5 + $0x1660] sm:$0xff]
  %v3645 = vld [vmem:[%s5 + $0x1668] sm:$0xff]
  %v3646 = vld [vmem:[%s5 + $0x1670] sm:$0xff]
  %v3647 = vld [vmem:[%s5 + $0x1678] sm:$0xff]
  %v3648 = vld [vmem:[%s5 + $0x1680] sm:$0xff]
  %v3649 = vld [vmem:[%s5 + $0x1688] sm:$0xff]
  %v3650 = vld [vmem:[%s5 + $0x1690] sm:$0xff]
  %v3651 = vld [vmem:[%s5 + $0x1698] sm:$0xff]
  %v3652 = vld [vmem:[%s5 + $0x16a0] sm:$0xff]
  %v3653 = vld [vmem:[%s5 + $0x16a8] sm:$0xff]
  %v3654 = vld [vmem:[%s5 + $0x16b0] sm:$0xff]
  %v3655 = vld [vmem:[%s5 + $0x16b8] sm:$0xff]
  %v3656 = vld [vmem:[%s5 + $0x16c0] sm:$0xff]
  %v3657 = vld [vmem:[%s5 + $0x16c8] sm:$0xff]
  %v3658 = vld [vmem:[%s5 + $0x16d0] sm:$0xff]
  %v3659 = vld [vmem:[%s5 + $0x16d8] sm:$0xff]
  %v3660 = vld [vmem:[%s5 + $0x16e0] sm:$0xff]
  %v3661 = vld [vmem:[%s5 + $0x16e8] sm:$0xff]
  %v3662 = vld [vmem:[%s5 + $0x16f0] sm:$0xff]
  %v3663 = vld [vmem:[%s5 + $0x16f8] sm:$0xff]
  %v3664 = vld [vmem:[%s5 + $0x1700] sm:$0xff]
  %v3665 = vld [vmem:[%s5 + $0x1708] sm:$0xff]
  %v3666 = vld [vmem:[%s5 + $0x1710] sm:$0xff]
  %v3667 = vld [vmem:[%s5 + $0x1718] sm:$0xff]
  %v3668 = vld [vmem:[%s5 + $0x1720] sm:$0xff]
  %v3669 = vld [vmem:[%s5 + $0x1728] sm:$0xff]
  %v3670 = vld [vmem:[%s5 + $0x1730] sm:$0xff]
  %v3671 = vld [vmem:[%s5 + $0x1738] sm:$0xff]
  %v3672 = vld [vmem:[%s5 + $0x1740] sm:$0xff]
  %v3673 = vld [vmem:[%s5 + $0x1748] sm:$0xff]
  %v3674 = vld [vmem:[%s5 + $0x1750] sm:$0xff]
  %v3675 = vld [vmem:[%s5 + $0x1758] sm:$0xff]
  %v3676 = vld [vmem:[%s5 + $0x1760] sm:$0xff]
  %v3677 = vld [vmem:[%s5 + $0x1768] sm:$0xff]
  %v3678 = vld [vmem:[%s5 + $0x1770] sm:$0xff]
  %v3679 = vld [vmem:[%s5 + $0x1778] sm:$0xff]
  %v3680 = vld [vmem:[%s5 + $0x1780] sm:$0xff]
  %v3681 = vld [vmem:[%s5 + $0x1788] sm:$0xff]
  %v3682 = vld [vmem:[%s5 + $0x1790] sm:$0xff]
  %v3683 = vld [vmem:[%s5 + $0x1798] sm:$0xff]
  %v3684 = vld [vmem:[%s5 + $0x17a0] sm:$0xff]
  %v3685 = vld [vmem:[%s5 + $0x17a8] sm:$0xff]
  %v3686 = vld [vmem:[%s5 + $0x17b0] sm:$0xff]
  %v3687 = vld [vmem:[%s5 + $0x17b8] sm:$0xff]
  %v3688 = vld [vmem:[%s5 + $0x17c0] sm:$0xff]
  %v3689 = vld [vmem:[%s5 + $0x17c8] sm:$0xff]
  %v3690 = vld [vmem:[%s5 + $0x17d0] sm:$0xff]
  %v3691 = vld [vmem:[%s5 + $0x17d8] sm:$0xff]
  %v3692 = vld [vmem:[%s5 + $0x17e0] sm:$0xff]
  %v3693 = vld [vmem:[%s5 + $0x17e8] sm:$0xff]
  %v3694 = vld [vmem:[%s5 + $0x17f0] sm:$0xff]
  %v3695 = vld [vmem:[%s5 + $0x17f8] sm:$0xff]
  %vm3696 = vcmask 523264
  %v3698 = vsel %vm3696, %v2832, 0
  %3700 = vmatpush.msra.mxu0 0.0
  %3701 = vmatpush.msra.mxu0 0.0
  %3702 = vmatpush.msra.mxu0 0.0
  %3703 = vmatpush.msra.mxu0 0.0
  %3704 = vmatpush.msra.mxu0 0.0
  %3705 = vmatpush.msra.mxu0 0.0
  %3706 = vmatpush.msra.mxu0 0.0
  %3707 = vmatpush.msra.mxu0 0.0
  %3708 = vmatpush.msra.mxu0 %v2935
  %3709 = vmatpush.msra.mxu0 %v2934
  %3710 = vmatpush.msra.mxu0 %v2933
  %3711 = vmatpush.msra.mxu0 %v2932
  %3712 = vmatpush.msra.mxu0 %v2931
  %3713 = vmatpush.msra.mxu0 %v2930
  %3714 = vmatpush.msra.mxu0 %v2929
  %3715 = vmatpush.msra.mxu0 %v2928
  %3716 = vmatmul.f32.gmra.mxu0 %v3698
  %v3717 = vpop.f32.mrf.mxu0
  %v3718 = vadd.f32 0.0, %v3717
  %3719 = vdwg.mxu0
  %v3721 = vsel %vm3696, %v2833, 0
  %3723 = vmatpush.msra.mxu0 0.0
  %3724 = vmatpush.msra.mxu0 0.0
  %3725 = vmatpush.msra.mxu0 0.0
  %3726 = vmatpush.msra.mxu0 0.0
  %3727 = vmatpush.msra.mxu0 0.0
  %3728 = vmatpush.msra.mxu0 0.0
  %3729 = vmatpush.msra.mxu0 0.0
  %3730 = vmatpush.msra.mxu0 0.0
  %3731 = vmatpush.msra.mxu0 %v2943
  %3732 = vmatpush.msra.mxu0 %v2942
  %3733 = vmatpush.msra.mxu0 %v2941
  %3734 = vmatpush.msra.mxu0 %v2940
  %3735 = vmatpush.msra.mxu0 %v2939
  %3736 = vmatpush.msra.mxu0 %v2938
  %3737 = vmatpush.msra.mxu0 %v2937
  %3738 = vmatpush.msra.mxu0 %v2936
  %3739 = vmatmul.f32.gmra.mxu0 %v3721
  %v3740 = vpop.f32.mrf.mxu0
  %v3741 = vadd.f32 0.0, %v3740
  %3742 = vdwg.mxu0
  %v3744 = vsel %vm3696, %v2834, 0
  %3746 = vmatpush.msra.mxu0 0.0
  %3747 = vmatpush.msra.mxu0 0.0
  %3748 = vmatpush.msra.mxu0 0.0
  %3749 = vmatpush.msra.mxu0 0.0
  %3750 = vmatpush.msra.mxu0 0.0
  %3751 = vmatpush.msra.mxu0 0.0
  %3752 = vmatpush.msra.mxu0 0.0
  %3753 = vmatpush.msra.mxu0 0.0
  %3754 = vmatpush.msra.mxu0 %v2951
  %3755 = vmatpush.msra.mxu0 %v2950
  %3756 = vmatpush.msra.mxu0 %v2949
  %3757 = vmatpush.msra.mxu0 %v2948
  %3758 = vmatpush.msra.mxu0 %v2947
  %3759 = vmatpush.msra.mxu0 %v2946
  %3760 = vmatpush.msra.mxu0 %v2945
  %3761 = vmatpush.msra.mxu0 %v2944
  %3762 = vmatmul.f32.gmra.mxu0 %v3744
  %v3763 = vpop.f32.mrf.mxu0
  %v3764 = vadd.f32 0.0, %v3763
  %3765 = vdwg.mxu0
  %v3767 = vsel %vm3696, %v2835, 0
  %3769 = vmatpush.msra.mxu0 0.0
  %3770 = vmatpush.msra.mxu0 0.0
  %3771 = vmatpush.msra.mxu0 0.0
  %3772 = vmatpush.msra.mxu0 0.0
  %3773 = vmatpush.msra.mxu0 0.0
  %3774 = vmatpush.msra.mxu0 0.0
  %3775 = vmatpush.msra.mxu0 0.0
  %3776 = vmatpush.msra.mxu0 0.0
  %3777 = vmatpush.msra.mxu0 %v2959
  %3778 = vmatpush.msra.mxu0 %v2958
  %3779 = vmatpush.msra.mxu0 %v2957
  %3780 = vmatpush.msra.mxu0 %v2956
  %3781 = vmatpush.msra.mxu0 %v2955
  %3782 = vmatpush.msra.mxu0 %v2954
  %3783 = vmatpush.msra.mxu0 %v2953
  %3784 = vmatpush.msra.mxu0 %v2952
  %3785 = vmatmul.f32.gmra.mxu0 %v3767
  %v3786 = vpop.f32.mrf.mxu0
  %v3787 = vadd.f32 0.0, %v3786
  %3788 = vdwg.mxu0
  %v3790 = vsel %vm3696, %v2836, 0
  %3792 = vmatpush.msra.mxu0 0.0
  %3793 = vmatpush.msra.mxu0 0.0
  %3794 = vmatpush.msra.mxu0 0.0
  %3795 = vmatpush.msra.mxu0 0.0
  %3796 = vmatpush.msra.mxu0 0.0
  %3797 = vmatpush.msra.mxu0 0.0
  %3798 = vmatpush.msra.mxu0 0.0
  %3799 = vmatpush.msra.mxu0 0.0
  %3800 = vmatpush.msra.mxu0 %v2967
  %3801 = vmatpush.msra.mxu0 %v2966
  %3802 = vmatpush.msra.mxu0 %v2965
  %3803 = vmatpush.msra.mxu0 %v2964
  %3804 = vmatpush.msra.mxu0 %v2963
  %3805 = vmatpush.msra.mxu0 %v2962
  %3806 = vmatpush.msra.mxu0 %v2961
  %3807 = vmatpush.msra.mxu0 %v2960
  %3808 = vmatmul.f32.gmra.mxu0 %v3790
  %v3809 = vpop.f32.mrf.mxu0
  %v3810 = vadd.f32 0.0, %v3809
  %3811 = vdwg.mxu0
  %v3813 = vsel %vm3696, %v2837, 0
  %3815 = vmatpush.msra.mxu0 0.0
  %3816 = vmatpush.msra.mxu0 0.0
  %3817 = vmatpush.msra.mxu0 0.0
  %3818 = vmatpush.msra.mxu0 0.0
  %3819 = vmatpush.msra.mxu0 0.0
  %3820 = vmatpush.msra.mxu0 0.0
  %3821 = vmatpush.msra.mxu0 0.0
  %3822 = vmatpush.msra.mxu0 0.0
  %3823 = vmatpush.msra.mxu0 %v2975
  %3824 = vmatpush.msra.mxu0 %v2974
  %3825 = vmatpush.msra.mxu0 %v2973
  %3826 = vmatpush.msra.mxu0 %v2972
  %3827 = vmatpush.msra.mxu0 %v2971
  %3828 = vmatpush.msra.mxu0 %v2970
  %3829 = vmatpush.msra.mxu0 %v2969
  %3830 = vmatpush.msra.mxu0 %v2968
  %3831 = vmatmul.f32.gmra.mxu0 %v3813
  %v3832 = vpop.f32.mrf.mxu0
  %v3833 = vadd.f32 0.0, %v3832
  %3834 = vdwg.mxu0
  %v3836 = vsel %vm3696, %v2838, 0
  %3838 = vmatpush.msra.mxu0 0.0
  %3839 = vmatpush.msra.mxu0 0.0
  %3840 = vmatpush.msra.mxu0 0.0
  %3841 = vmatpush.msra.mxu0 0.0
  %3842 = vmatpush.msra.mxu0 0.0
  %3843 = vmatpush.msra.mxu0 0.0
  %3844 = vmatpush.msra.mxu0 0.0
  %3845 = vmatpush.msra.mxu0 0.0
  %3846 = vmatpush.msra.mxu0 %v2983
  %3847 = vmatpush.msra.mxu0 %v2982
  %3848 = vmatpush.msra.mxu0 %v2981
  %3849 = vmatpush.msra.mxu0 %v2980
  %3850 = vmatpush.msra.mxu0 %v2979
  %3851 = vmatpush.msra.mxu0 %v2978
  %3852 = vmatpush.msra.mxu0 %v2977
  %3853 = vmatpush.msra.mxu0 %v2976
  %3854 = vmatmul.f32.gmra.mxu0 %v3836
  %v3855 = vpop.f32.mrf.mxu0
  %v3856 = vadd.f32 0.0, %v3855
  %3857 = vdwg.mxu0
  %v3859 = vsel %vm3696, %v2839, 0
  %3861 = vmatpush.msra.mxu0 0.0
  %3862 = vmatpush.msra.mxu0 0.0
  %3863 = vmatpush.msra.mxu0 0.0
  %3864 = vmatpush.msra.mxu0 0.0
  %3865 = vmatpush.msra.mxu0 0.0
  %3866 = vmatpush.msra.mxu0 0.0
  %3867 = vmatpush.msra.mxu0 0.0
  %3868 = vmatpush.msra.mxu0 0.0
  %3869 = vmatpush.msra.mxu0 %v2991
  %3870 = vmatpush.msra.mxu0 %v2990
  %3871 = vmatpush.msra.mxu0 %v2989
  %3872 = vmatpush.msra.mxu0 %v2988
  %3873 = vmatpush.msra.mxu0 %v2987
  %3874 = vmatpush.msra.mxu0 %v2986
  %3875 = vmatpush.msra.mxu0 %v2985
  %3876 = vmatpush.msra.mxu0 %v2984
  %3877 = vmatmul.f32.gmra.mxu0 %v3859
  %v3878 = vpop.f32.mrf.mxu0
  %v3879 = vadd.f32 0.0, %v3878
  %3880 = vdwg.mxu0
  %v3882 = vsel %vm3696, %v2840, 0
  %3884 = vmatpush.msra.mxu0 0.0
  %3885 = vmatpush.msra.mxu0 0.0
  %3886 = vmatpush.msra.mxu0 0.0
  %3887 = vmatpush.msra.mxu0 0.0
  %3888 = vmatpush.msra.mxu0 0.0
  %3889 = vmatpush.msra.mxu0 0.0
  %3890 = vmatpush.msra.mxu0 0.0
  %3891 = vmatpush.msra.mxu0 0.0
  %3892 = vmatpush.msra.mxu0 %v2999
  %3893 = vmatpush.msra.mxu0 %v2998
  %3894 = vmatpush.msra.mxu0 %v2997
  %3895 = vmatpush.msra.mxu0 %v2996
  %3896 = vmatpush.msra.mxu0 %v2995
  %3897 = vmatpush.msra.mxu0 %v2994
  %3898 = vmatpush.msra.mxu0 %v2993
  %3899 = vmatpush.msra.mxu0 %v2992
  %3900 = vmatmul.f32.gmra.mxu0 %v3882
  %v3901 = vpop.f32.mrf.mxu0
  %v3902 = vadd.f32 0.0, %v3901
  %3903 = vdwg.mxu0
  %v3905 = vsel %vm3696, %v2841, 0
  %3907 = vmatpush.msra.mxu0 0.0
  %3908 = vmatpush.msra.mxu0 0.0
  %3909 = vmatpush.msra.mxu0 0.0
  %3910 = vmatpush.msra.mxu0 0.0
  %3911 = vmatpush.msra.mxu0 0.0
  %3912 = vmatpush.msra.mxu0 0.0
  %3913 = vmatpush.msra.mxu0 0.0
  %3914 = vmatpush.msra.mxu0 0.0
  %3915 = vmatpush.msra.mxu0 %v3007
  %3916 = vmatpush.msra.mxu0 %v3006
  %3917 = vmatpush.msra.mxu0 %v3005
  %3918 = vmatpush.msra.mxu0 %v3004
  %3919 = vmatpush.msra.mxu0 %v3003
  %3920 = vmatpush.msra.mxu0 %v3002
  %3921 = vmatpush.msra.mxu0 %v3001
  %3922 = vmatpush.msra.mxu0 %v3000
  %3923 = vmatmul.f32.gmra.mxu0 %v3905
  %v3924 = vpop.f32.mrf.mxu0
  %v3925 = vadd.f32 0.0, %v3924
  %3926 = vdwg.mxu0
  %v3928 = vsel %vm3696, %v2842, 0
  %3930 = vmatpush.msra.mxu0 0.0
  %3931 = vmatpush.msra.mxu0 0.0
  %3932 = vmatpush.msra.mxu0 0.0
  %3933 = vmatpush.msra.mxu0 0.0
  %3934 = vmatpush.msra.mxu0 0.0
  %3935 = vmatpush.msra.mxu0 0.0
  %3936 = vmatpush.msra.mxu0 0.0
  %3937 = vmatpush.msra.mxu0 0.0
  %3938 = vmatpush.msra.mxu0 %v3015
  %3939 = vmatpush.msra.mxu0 %v3014
  %3940 = vmatpush.msra.mxu0 %v3013
  %3941 = vmatpush.msra.mxu0 %v3012
  %3942 = vmatpush.msra.mxu0 %v3011
  %3943 = vmatpush.msra.mxu0 %v3010
  %3944 = vmatpush.msra.mxu0 %v3009
  %3945 = vmatpush.msra.mxu0 %v3008
  %3946 = vmatmul.f32.gmra.mxu0 %v3928
  %v3947 = vpop.f32.mrf.mxu0
  %v3948 = vadd.f32 0.0, %v3947
  %3949 = vdwg.mxu0
  %v3951 = vsel %vm3696, %v2843, 0
  %3953 = vmatpush.msra.mxu0 0.0
  %3954 = vmatpush.msra.mxu0 0.0
  %3955 = vmatpush.msra.mxu0 0.0
  %3956 = vmatpush.msra.mxu0 0.0
  %3957 = vmatpush.msra.mxu0 0.0
  %3958 = vmatpush.msra.mxu0 0.0
  %3959 = vmatpush.msra.mxu0 0.0
  %3960 = vmatpush.msra.mxu0 0.0
  %3961 = vmatpush.msra.mxu0 %v3023
  %3962 = vmatpush.msra.mxu0 %v3022
  %3963 = vmatpush.msra.mxu0 %v3021
  %3964 = vmatpush.msra.mxu0 %v3020
  %3965 = vmatpush.msra.mxu0 %v3019
  %3966 = vmatpush.msra.mxu0 %v3018
  %3967 = vmatpush.msra.mxu0 %v3017
  %3968 = vmatpush.msra.mxu0 %v3016
  %3969 = vmatmul.f32.gmra.mxu0 %v3951
  %v3970 = vpop.f32.mrf.mxu0
  %v3971 = vadd.f32 0.0, %v3970
  %3972 = vdwg.mxu0
  %v3974 = vsel %vm3696, %v2844, 0
  %3976 = vmatpush.msra.mxu0 0.0
  %3977 = vmatpush.msra.mxu0 0.0
  %3978 = vmatpush.msra.mxu0 0.0
  %3979 = vmatpush.msra.mxu0 0.0
  %3980 = vmatpush.msra.mxu0 0.0
  %3981 = vmatpush.msra.mxu0 0.0
  %3982 = vmatpush.msra.mxu0 0.0
  %3983 = vmatpush.msra.mxu0 0.0
  %3984 = vmatpush.msra.mxu0 %v3031
  %3985 = vmatpush.msra.mxu0 %v3030
  %3986 = vmatpush.msra.mxu0 %v3029
  %3987 = vmatpush.msra.mxu0 %v3028
  %3988 = vmatpush.msra.mxu0 %v3027
  %3989 = vmatpush.msra.mxu0 %v3026
  %3990 = vmatpush.msra.mxu0 %v3025
  %3991 = vmatpush.msra.mxu0 %v3024
  %3992 = vmatmul.f32.gmra.mxu0 %v3974
  %v3993 = vpop.f32.mrf.mxu0
  %v3994 = vadd.f32 0.0, %v3993
  %3995 = vdwg.mxu0
  %v3997 = vsel %vm3696, %v2845, 0
  %3999 = vmatpush.msra.mxu0 0.0
  %4000 = vmatpush.msra.mxu0 0.0
  %4001 = vmatpush.msra.mxu0 0.0
  %4002 = vmatpush.msra.mxu0 0.0
  %4003 = vmatpush.msra.mxu0 0.0
  %4004 = vmatpush.msra.mxu0 0.0
  %4005 = vmatpush.msra.mxu0 0.0
  %4006 = vmatpush.msra.mxu0 0.0
  %4007 = vmatpush.msra.mxu0 %v3039
  %4008 = vmatpush.msra.mxu0 %v3038
  %4009 = vmatpush.msra.mxu0 %v3037
  %4010 = vmatpush.msra.mxu0 %v3036
  %4011 = vmatpush.msra.mxu0 %v3035
  %4012 = vmatpush.msra.mxu0 %v3034
  %4013 = vmatpush.msra.mxu0 %v3033
  %4014 = vmatpush.msra.mxu0 %v3032
  %4015 = vmatmul.f32.gmra.mxu0 %v3997
  %v4016 = vpop.f32.mrf.mxu0
  %v4017 = vadd.f32 0.0, %v4016
  %4018 = vdwg.mxu0
  %v4020 = vsel %vm3696, %v2846, 0
  %4022 = vmatpush.msra.mxu0 0.0
  %4023 = vmatpush.msra.mxu0 0.0
  %4024 = vmatpush.msra.mxu0 0.0
  %4025 = vmatpush.msra.mxu0 0.0
  %4026 = vmatpush.msra.mxu0 0.0
  %4027 = vmatpush.msra.mxu0 0.0
  %4028 = vmatpush.msra.mxu0 0.0
  %4029 = vmatpush.msra.mxu0 0.0
  %4030 = vmatpush.msra.mxu0 %v3047
  %4031 = vmatpush.msra.mxu0 %v3046
  %4032 = vmatpush.msra.mxu0 %v3045
  %4033 = vmatpush.msra.mxu0 %v3044
  %4034 = vmatpush.msra.mxu0 %v3043
  %4035 = vmatpush.msra.mxu0 %v3042
  %4036 = vmatpush.msra.mxu0 %v3041
  %4037 = vmatpush.msra.mxu0 %v3040
  %4038 = vmatmul.f32.gmra.mxu0 %v4020
  %v4039 = vpop.f32.mrf.mxu0
  %v4040 = vadd.f32 0.0, %v4039
  %4041 = vdwg.mxu0
  %v4043 = vsel %vm3696, %v2847, 0
  %4045 = vmatpush.msra.mxu0 0.0
  %4046 = vmatpush.msra.mxu0 0.0
  %4047 = vmatpush.msra.mxu0 0.0
  %4048 = vmatpush.msra.mxu0 0.0
  %4049 = vmatpush.msra.mxu0 0.0
  %4050 = vmatpush.msra.mxu0 0.0
  %4051 = vmatpush.msra.mxu0 0.0
  %4052 = vmatpush.msra.mxu0 0.0
  %4053 = vmatpush.msra.mxu0 %v3055
  %4054 = vmatpush.msra.mxu0 %v3054
  %4055 = vmatpush.msra.mxu0 %v3053
  %4056 = vmatpush.msra.mxu0 %v3052
  %4057 = vmatpush.msra.mxu0 %v3051
  %4058 = vmatpush.msra.mxu0 %v3050
  %4059 = vmatpush.msra.mxu0 %v3049
  %4060 = vmatpush.msra.mxu0 %v3048
  %4061 = vmatmul.f32.gmra.mxu0 %v4043
  %v4062 = vpop.f32.mrf.mxu0
  %v4063 = vadd.f32 0.0, %v4062
  %4064 = vdwg.mxu0
  %v4066 = vsel %vm3696, %v2848, 0
  %4068 = vmatpush.msra.mxu0 0.0
  %4069 = vmatpush.msra.mxu0 0.0
  %4070 = vmatpush.msra.mxu0 0.0
  %4071 = vmatpush.msra.mxu0 0.0
  %4072 = vmatpush.msra.mxu0 0.0
  %4073 = vmatpush.msra.mxu0 0.0
  %4074 = vmatpush.msra.mxu0 0.0
  %4075 = vmatpush.msra.mxu0 0.0
  %4076 = vmatpush.msra.mxu0 %v3063
  %4077 = vmatpush.msra.mxu0 %v3062
  %4078 = vmatpush.msra.mxu0 %v3061
  %4079 = vmatpush.msra.mxu0 %v3060
  %4080 = vmatpush.msra.mxu0 %v3059
  %4081 = vmatpush.msra.mxu0 %v3058
  %4082 = vmatpush.msra.mxu0 %v3057
  %4083 = vmatpush.msra.mxu0 %v3056
  %4084 = vmatmul.f32.gmra.mxu0 %v4066
  %v4085 = vpop.f32.mrf.mxu0
  %v4086 = vadd.f32 0.0, %v4085
  %4087 = vdwg.mxu0
  %v4089 = vsel %vm3696, %v2849, 0
  %4091 = vmatpush.msra.mxu0 0.0
  %4092 = vmatpush.msra.mxu0 0.0
  %4093 = vmatpush.msra.mxu0 0.0
  %4094 = vmatpush.msra.mxu0 0.0
  %4095 = vmatpush.msra.mxu0 0.0
  %4096 = vmatpush.msra.mxu0 0.0
  %4097 = vmatpush.msra.mxu0 0.0
  %4098 = vmatpush.msra.mxu0 0.0
  %4099 = vmatpush.msra.mxu0 %v3071
  %4100 = vmatpush.msra.mxu0 %v3070
  %4101 = vmatpush.msra.mxu0 %v3069
  %4102 = vmatpush.msra.mxu0 %v3068
  %4103 = vmatpush.msra.mxu0 %v3067
  %4104 = vmatpush.msra.mxu0 %v3066
  %4105 = vmatpush.msra.mxu0 %v3065
  %4106 = vmatpush.msra.mxu0 %v3064
  %4107 = vmatmul.f32.gmra.mxu0 %v4089
  %v4108 = vpop.f32.mrf.mxu0
  %v4109 = vadd.f32 0.0, %v4108
  %4110 = vdwg.mxu0
  %v4112 = vsel %vm3696, %v2850, 0
  %4114 = vmatpush.msra.mxu0 0.0
  %4115 = vmatpush.msra.mxu0 0.0
  %4116 = vmatpush.msra.mxu0 0.0
  %4117 = vmatpush.msra.mxu0 0.0
  %4118 = vmatpush.msra.mxu0 0.0
  %4119 = vmatpush.msra.mxu0 0.0
  %4120 = vmatpush.msra.mxu0 0.0
  %4121 = vmatpush.msra.mxu0 0.0
  %4122 = vmatpush.msra.mxu0 %v3079
  %4123 = vmatpush.msra.mxu0 %v3078
  %4124 = vmatpush.msra.mxu0 %v3077
  %4125 = vmatpush.msra.mxu0 %v3076
  %4126 = vmatpush.msra.mxu0 %v3075
  %4127 = vmatpush.msra.mxu0 %v3074
  %4128 = vmatpush.msra.mxu0 %v3073
  %4129 = vmatpush.msra.mxu0 %v3072
  %4130 = vmatmul.f32.gmra.mxu0 %v4112
  %v4131 = vpop.f32.mrf.mxu0
  %v4132 = vadd.f32 0.0, %v4131
  %4133 = vdwg.mxu0
  %v4135 = vsel %vm3696, %v2851, 0
  %4137 = vmatpush.msra.mxu0 0.0
  %4138 = vmatpush.msra.mxu0 0.0
  %4139 = vmatpush.msra.mxu0 0.0
  %4140 = vmatpush.msra.mxu0 0.0
  %4141 = vmatpush.msra.mxu0 0.0
  %4142 = vmatpush.msra.mxu0 0.0
  %4143 = vmatpush.msra.mxu0 0.0
  %4144 = vmatpush.msra.mxu0 0.0
  %4145 = vmatpush.msra.mxu0 %v3087
  %4146 = vmatpush.msra.mxu0 %v3086
  %4147 = vmatpush.msra.mxu0 %v3085
  %4148 = vmatpush.msra.mxu0 %v3084
  %4149 = vmatpush.msra.mxu0 %v3083
  %4150 = vmatpush.msra.mxu0 %v3082
  %4151 = vmatpush.msra.mxu0 %v3081
  %4152 = vmatpush.msra.mxu0 %v3080
  %4153 = vmatmul.f32.gmra.mxu0 %v4135
  %v4154 = vpop.f32.mrf.mxu0
  %v4155 = vadd.f32 0.0, %v4154
  %4156 = vdwg.mxu0
  %v4158 = vsel %vm3696, %v2852, 0
  %4160 = vmatpush.msra.mxu0 0.0
  %4161 = vmatpush.msra.mxu0 0.0
  %4162 = vmatpush.msra.mxu0 0.0
  %4163 = vmatpush.msra.mxu0 0.0
  %4164 = vmatpush.msra.mxu0 0.0
  %4165 = vmatpush.msra.mxu0 0.0
  %4166 = vmatpush.msra.mxu0 0.0
  %4167 = vmatpush.msra.mxu0 0.0
  %4168 = vmatpush.msra.mxu0 %v3095
  %4169 = vmatpush.msra.mxu0 %v3094
  %4170 = vmatpush.msra.mxu0 %v3093
  %4171 = vmatpush.msra.mxu0 %v3092
  %4172 = vmatpush.msra.mxu0 %v3091
  %4173 = vmatpush.msra.mxu0 %v3090
  %4174 = vmatpush.msra.mxu0 %v3089
  %4175 = vmatpush.msra.mxu0 %v3088
  %4176 = vmatmul.f32.gmra.mxu0 %v4158
  %v4177 = vpop.f32.mrf.mxu0
  %v4178 = vadd.f32 0.0, %v4177
  %4179 = vdwg.mxu0
  %v4181 = vsel %vm3696, %v2853, 0
  %4183 = vmatpush.msra.mxu0 0.0
  %4184 = vmatpush.msra.mxu0 0.0
  %4185 = vmatpush.msra.mxu0 0.0
  %4186 = vmatpush.msra.mxu0 0.0
  %4187 = vmatpush.msra.mxu0 0.0
  %4188 = vmatpush.msra.mxu0 0.0
  %4189 = vmatpush.msra.mxu0 0.0
  %4190 = vmatpush.msra.mxu0 0.0
  %4191 = vmatpush.msra.mxu0 %v3103
  %4192 = vmatpush.msra.mxu0 %v3102
  %4193 = vmatpush.msra.mxu0 %v3101
  %4194 = vmatpush.msra.mxu0 %v3100
  %4195 = vmatpush.msra.mxu0 %v3099
  %4196 = vmatpush.msra.mxu0 %v3098
  %4197 = vmatpush.msra.mxu0 %v3097
  %4198 = vmatpush.msra.mxu0 %v3096
  %4199 = vmatmul.f32.gmra.mxu0 %v4181
  %v4200 = vpop.f32.mrf.mxu0
  %v4201 = vadd.f32 0.0, %v4200
  %4202 = vdwg.mxu0
  %v4204 = vsel %vm3696, %v2854, 0
  %4206 = vmatpush.msra.mxu0 0.0
  %4207 = vmatpush.msra.mxu0 0.0
  %4208 = vmatpush.msra.mxu0 0.0
  %4209 = vmatpush.msra.mxu0 0.0
  %4210 = vmatpush.msra.mxu0 0.0
  %4211 = vmatpush.msra.mxu0 0.0
  %4212 = vmatpush.msra.mxu0 0.0
  %4213 = vmatpush.msra.mxu0 0.0
  %4214 = vmatpush.msra.mxu0 %v3111
  %4215 = vmatpush.msra.mxu0 %v3110
  %4216 = vmatpush.msra.mxu0 %v3109
  %4217 = vmatpush.msra.mxu0 %v3108
  %4218 = vmatpush.msra.mxu0 %v3107
  %4219 = vmatpush.msra.mxu0 %v3106
  %4220 = vmatpush.msra.mxu0 %v3105
  %4221 = vmatpush.msra.mxu0 %v3104
  %4222 = vmatmul.f32.gmra.mxu0 %v4204
  %v4223 = vpop.f32.mrf.mxu0
  %v4224 = vadd.f32 0.0, %v4223
  %4225 = vdwg.mxu0
  %v4227 = vsel %vm3696, %v2855, 0
  %4229 = vmatpush.msra.mxu0 0.0
  %4230 = vmatpush.msra.mxu0 0.0
  %4231 = vmatpush.msra.mxu0 0.0
  %4232 = vmatpush.msra.mxu0 0.0
  %4233 = vmatpush.msra.mxu0 0.0
  %4234 = vmatpush.msra.mxu0 0.0
  %4235 = vmatpush.msra.mxu0 0.0
  %4236 = vmatpush.msra.mxu0 0.0
  %4237 = vmatpush.msra.mxu0 %v3119
  %4238 = vmatpush.msra.mxu0 %v3118
  %4239 = vmatpush.msra.mxu0 %v3117
  %4240 = vmatpush.msra.mxu0 %v3116
  %4241 = vmatpush.msra.mxu0 %v3115
  %4242 = vmatpush.msra.mxu0 %v3114
  %4243 = vmatpush.msra.mxu0 %v3113
  %4244 = vmatpush.msra.mxu0 %v3112
  %4245 = vmatmul.f32.gmra.mxu0 %v4227
  %v4246 = vpop.f32.mrf.mxu0
  %v4247 = vadd.f32 0.0, %v4246
  %4248 = vdwg.mxu0
  %v4250 = vsel %vm3696, %v2856, 0
  %4252 = vmatpush.msra.mxu0 0.0
  %4253 = vmatpush.msra.mxu0 0.0
  %4254 = vmatpush.msra.mxu0 0.0
  %4255 = vmatpush.msra.mxu0 0.0
  %4256 = vmatpush.msra.mxu0 0.0
  %4257 = vmatpush.msra.mxu0 0.0
  %4258 = vmatpush.msra.mxu0 0.0
  %4259 = vmatpush.msra.mxu0 0.0
  %4260 = vmatpush.msra.mxu0 %v3127
  %4261 = vmatpush.msra.mxu0 %v3126
  %4262 = vmatpush.msra.mxu0 %v3125
  %4263 = vmatpush.msra.mxu0 %v3124
  %4264 = vmatpush.msra.mxu0 %v3123
  %4265 = vmatpush.msra.mxu0 %v3122
  %4266 = vmatpush.msra.mxu0 %v3121
  %4267 = vmatpush.msra.mxu0 %v3120
  %4268 = vmatmul.f32.gmra.mxu0 %v4250
  %v4269 = vpop.f32.mrf.mxu0
  %v4270 = vadd.f32 0.0, %v4269
  %4271 = vdwg.mxu0
  %v4273 = vsel %vm3696, %v2857, 0
  %4275 = vmatpush.msra.mxu0 0.0
  %4276 = vmatpush.msra.mxu0 0.0
  %4277 = vmatpush.msra.mxu0 0.0
  %4278 = vmatpush.msra.mxu0 0.0
  %4279 = vmatpush.msra.mxu0 0.0
  %4280 = vmatpush.msra.mxu0 0.0
  %4281 = vmatpush.msra.mxu0 0.0
  %4282 = vmatpush.msra.mxu0 0.0
  %4283 = vmatpush.msra.mxu0 %v3135
  %4284 = vmatpush.msra.mxu0 %v3134
  %4285 = vmatpush.msra.mxu0 %v3133
  %4286 = vmatpush.msra.mxu0 %v3132
  %4287 = vmatpush.msra.mxu0 %v3131
  %4288 = vmatpush.msra.mxu0 %v3130
  %4289 = vmatpush.msra.mxu0 %v3129
  %4290 = vmatpush.msra.mxu0 %v3128
  %4291 = vmatmul.f32.gmra.mxu0 %v4273
  %v4292 = vpop.f32.mrf.mxu0
  %v4293 = vadd.f32 0.0, %v4292
  %4294 = vdwg.mxu0
  %v4296 = vsel %vm3696, %v2858, 0
  %4298 = vmatpush.msra.mxu0 0.0
  %4299 = vmatpush.msra.mxu0 0.0
  %4300 = vmatpush.msra.mxu0 0.0
  %4301 = vmatpush.msra.mxu0 0.0
  %4302 = vmatpush.msra.mxu0 0.0
  %4303 = vmatpush.msra.mxu0 0.0
  %4304 = vmatpush.msra.mxu0 0.0
  %4305 = vmatpush.msra.mxu0 0.0
  %4306 = vmatpush.msra.mxu0 %v3143
  %4307 = vmatpush.msra.mxu0 %v3142
  %4308 = vmatpush.msra.mxu0 %v3141
  %4309 = vmatpush.msra.mxu0 %v3140
  %4310 = vmatpush.msra.mxu0 %v3139
  %4311 = vmatpush.msra.mxu0 %v3138
  %4312 = vmatpush.msra.mxu0 %v3137
  %4313 = vmatpush.msra.mxu0 %v3136
  %4314 = vmatmul.f32.gmra.mxu0 %v4296
  %v4315 = vpop.f32.mrf.mxu0
  %v4316 = vadd.f32 0.0, %v4315
  %4317 = vdwg.mxu0
  %v4319 = vsel %vm3696, %v2859, 0
  %4321 = vmatpush.msra.mxu0 0.0
  %4322 = vmatpush.msra.mxu0 0.0
  %4323 = vmatpush.msra.mxu0 0.0
  %4324 = vmatpush.msra.mxu0 0.0
  %4325 = vmatpush.msra.mxu0 0.0
  %4326 = vmatpush.msra.mxu0 0.0
  %4327 = vmatpush.msra.mxu0 0.0
  %4328 = vmatpush.msra.mxu0 0.0
  %4329 = vmatpush.msra.mxu0 %v3151
  %4330 = vmatpush.msra.mxu0 %v3150
  %4331 = vmatpush.msra.mxu0 %v3149
  %4332 = vmatpush.msra.mxu0 %v3148
  %4333 = vmatpush.msra.mxu0 %v3147
  %4334 = vmatpush.msra.mxu0 %v3146
  %4335 = vmatpush.msra.mxu0 %v3145
  %4336 = vmatpush.msra.mxu0 %v3144
  %4337 = vmatmul.f32.gmra.mxu0 %v4319
  %v4338 = vpop.f32.mrf.mxu0
  %v4339 = vadd.f32 0.0, %v4338
  %4340 = vdwg.mxu0
  %v4342 = vsel %vm3696, %v2860, 0
  %4344 = vmatpush.msra.mxu0 0.0
  %4345 = vmatpush.msra.mxu0 0.0
  %4346 = vmatpush.msra.mxu0 0.0
  %4347 = vmatpush.msra.mxu0 0.0
  %4348 = vmatpush.msra.mxu0 0.0
  %4349 = vmatpush.msra.mxu0 0.0
  %4350 = vmatpush.msra.mxu0 0.0
  %4351 = vmatpush.msra.mxu0 0.0
  %4352 = vmatpush.msra.mxu0 %v3159
  %4353 = vmatpush.msra.mxu0 %v3158
  %4354 = vmatpush.msra.mxu0 %v3157
  %4355 = vmatpush.msra.mxu0 %v3156
  %4356 = vmatpush.msra.mxu0 %v3155
  %4357 = vmatpush.msra.mxu0 %v3154
  %4358 = vmatpush.msra.mxu0 %v3153
  %4359 = vmatpush.msra.mxu0 %v3152
  %4360 = vmatmul.f32.gmra.mxu0 %v4342
  %v4361 = vpop.f32.mrf.mxu0
  %v4362 = vadd.f32 0.0, %v4361
  %4363 = vdwg.mxu0
  %v4365 = vsel %vm3696, %v2861, 0
  %4367 = vmatpush.msra.mxu0 0.0
  %4368 = vmatpush.msra.mxu0 0.0
  %4369 = vmatpush.msra.mxu0 0.0
  %4370 = vmatpush.msra.mxu0 0.0
  %4371 = vmatpush.msra.mxu0 0.0
  %4372 = vmatpush.msra.mxu0 0.0
  %4373 = vmatpush.msra.mxu0 0.0
  %4374 = vmatpush.msra.mxu0 0.0
  %4375 = vmatpush.msra.mxu0 %v3167
  %4376 = vmatpush.msra.mxu0 %v3166
  %4377 = vmatpush.msra.mxu0 %v3165
  %4378 = vmatpush.msra.mxu0 %v3164
  %4379 = vmatpush.msra.mxu0 %v3163
  %4380 = vmatpush.msra.mxu0 %v3162
  %4381 = vmatpush.msra.mxu0 %v3161
  %4382 = vmatpush.msra.mxu0 %v3160
  %4383 = vmatmul.f32.gmra.mxu0 %v4365
  %v4384 = vpop.f32.mrf.mxu0
  %v4385 = vadd.f32 0.0, %v4384
  %4386 = vdwg.mxu0
  %v4388 = vsel %vm3696, %v2862, 0
  %4390 = vmatpush.msra.mxu0 0.0
  %4391 = vmatpush.msra.mxu0 0.0
  %4392 = vmatpush.msra.mxu0 0.0
  %4393 = vmatpush.msra.mxu0 0.0
  %4394 = vmatpush.msra.mxu0 0.0
  %4395 = vmatpush.msra.mxu0 0.0
  %4396 = vmatpush.msra.mxu0 0.0
  %4397 = vmatpush.msra.mxu0 0.0
  %4398 = vmatpush.msra.mxu0 %v3175
  %4399 = vmatpush.msra.mxu0 %v3174
  %4400 = vmatpush.msra.mxu0 %v3173
  %4401 = vmatpush.msra.mxu0 %v3172
  %4402 = vmatpush.msra.mxu0 %v3171
  %4403 = vmatpush.msra.mxu0 %v3170
  %4404 = vmatpush.msra.mxu0 %v3169
  %4405 = vmatpush.msra.mxu0 %v3168
  %4406 = vmatmul.f32.gmra.mxu0 %v4388
  %v4407 = vpop.f32.mrf.mxu0
  %v4408 = vadd.f32 0.0, %v4407
  %4409 = vdwg.mxu0
  %v4411 = vsel %vm3696, %v2863, 0
  %4413 = vmatpush.msra.mxu0 0.0
  %4414 = vmatpush.msra.mxu0 0.0
  %4415 = vmatpush.msra.mxu0 0.0
  %4416 = vmatpush.msra.mxu0 0.0
  %4417 = vmatpush.msra.mxu0 0.0
  %4418 = vmatpush.msra.mxu0 0.0
  %4419 = vmatpush.msra.mxu0 0.0
  %4420 = vmatpush.msra.mxu0 0.0
  %4421 = vmatpush.msra.mxu0 %v3183
  %4422 = vmatpush.msra.mxu0 %v3182
  %4423 = vmatpush.msra.mxu0 %v3181
  %4424 = vmatpush.msra.mxu0 %v3180
  %4425 = vmatpush.msra.mxu0 %v3179
  %4426 = vmatpush.msra.mxu0 %v3178
  %4427 = vmatpush.msra.mxu0 %v3177
  %4428 = vmatpush.msra.mxu0 %v3176
  %4429 = vmatmul.f32.gmra.mxu0 %v4411
  %v4430 = vpop.f32.mrf.mxu0
  %v4431 = vadd.f32 0.0, %v4430
  %4432 = vdwg.mxu0
  %v4434 = vsel %vm3696, %v2864, 0
  %4436 = vmatpush.msra.mxu0 0.0
  %4437 = vmatpush.msra.mxu0 0.0
  %4438 = vmatpush.msra.mxu0 0.0
  %4439 = vmatpush.msra.mxu0 0.0
  %4440 = vmatpush.msra.mxu0 0.0
  %4441 = vmatpush.msra.mxu0 0.0
  %4442 = vmatpush.msra.mxu0 0.0
  %4443 = vmatpush.msra.mxu0 0.0
  %4444 = vmatpush.msra.mxu0 %v3191
  %4445 = vmatpush.msra.mxu0 %v3190
  %4446 = vmatpush.msra.mxu0 %v3189
  %4447 = vmatpush.msra.mxu0 %v3188
  %4448 = vmatpush.msra.mxu0 %v3187
  %4449 = vmatpush.msra.mxu0 %v3186
  %4450 = vmatpush.msra.mxu0 %v3185
  %4451 = vmatpush.msra.mxu0 %v3184
  %4452 = vmatmul.f32.gmra.mxu0 %v4434
  %v4453 = vpop.f32.mrf.mxu0
  %v4454 = vadd.f32 0.0, %v4453
  %4455 = vdwg.mxu0
  %v4457 = vsel %vm3696, %v2865, 0
  %4459 = vmatpush.msra.mxu0 0.0
  %4460 = vmatpush.msra.mxu0 0.0
  %4461 = vmatpush.msra.mxu0 0.0
  %4462 = vmatpush.msra.mxu0 0.0
  %4463 = vmatpush.msra.mxu0 0.0
  %4464 = vmatpush.msra.mxu0 0.0
  %4465 = vmatpush.msra.mxu0 0.0
  %4466 = vmatpush.msra.mxu0 0.0
  %4467 = vmatpush.msra.mxu0 %v3199
  %4468 = vmatpush.msra.mxu0 %v3198
  %4469 = vmatpush.msra.mxu0 %v3197
  %4470 = vmatpush.msra.mxu0 %v3196
  %4471 = vmatpush.msra.mxu0 %v3195
  %4472 = vmatpush.msra.mxu0 %v3194
  %4473 = vmatpush.msra.mxu0 %v3193
  %4474 = vmatpush.msra.mxu0 %v3192
  %4475 = vmatmul.f32.gmra.mxu0 %v4457
  %v4476 = vpop.f32.mrf.mxu0
  %v4477 = vadd.f32 0.0, %v4476
  %4478 = vdwg.mxu0
  %v4480 = vsel %vm3696, %v2866, 0
  %4482 = vmatpush.msra.mxu0 0.0
  %4483 = vmatpush.msra.mxu0 0.0
  %4484 = vmatpush.msra.mxu0 0.0
  %4485 = vmatpush.msra.mxu0 0.0
  %4486 = vmatpush.msra.mxu0 0.0
  %4487 = vmatpush.msra.mxu0 0.0
  %4488 = vmatpush.msra.mxu0 0.0
  %4489 = vmatpush.msra.mxu0 0.0
  %4490 = vmatpush.msra.mxu0 %v3207
  %4491 = vmatpush.msra.mxu0 %v3206
  %4492 = vmatpush.msra.mxu0 %v3205
  %4493 = vmatpush.msra.mxu0 %v3204
  %4494 = vmatpush.msra.mxu0 %v3203
  %4495 = vmatpush.msra.mxu0 %v3202
  %4496 = vmatpush.msra.mxu0 %v3201
  %4497 = vmatpush.msra.mxu0 %v3200
  %4498 = vmatmul.f32.gmra.mxu0 %v4480
  %v4499 = vpop.f32.mrf.mxu0
  %v4500 = vadd.f32 0.0, %v4499
  %4501 = vdwg.mxu0
  %v4503 = vsel %vm3696, %v2867, 0
  %4505 = vmatpush.msra.mxu0 0.0
  %4506 = vmatpush.msra.mxu0 0.0
  %4507 = vmatpush.msra.mxu0 0.0
  %4508 = vmatpush.msra.mxu0 0.0
  %4509 = vmatpush.msra.mxu0 0.0
  %4510 = vmatpush.msra.mxu0 0.0
  %4511 = vmatpush.msra.mxu0 0.0
  %4512 = vmatpush.msra.mxu0 0.0
  %4513 = vmatpush.msra.mxu0 %v3215
  %4514 = vmatpush.msra.mxu0 %v3214
  %4515 = vmatpush.msra.mxu0 %v3213
  %4516 = vmatpush.msra.mxu0 %v3212
  %4517 = vmatpush.msra.mxu0 %v3211
  %4518 = vmatpush.msra.mxu0 %v3210
  %4519 = vmatpush.msra.mxu0 %v3209
  %4520 = vmatpush.msra.mxu0 %v3208
  %4521 = vmatmul.f32.gmra.mxu0 %v4503
  %v4522 = vpop.f32.mrf.mxu0
  %v4523 = vadd.f32 0.0, %v4522
  %4524 = vdwg.mxu0
  %v4526 = vsel %vm3696, %v2868, 0
  %4528 = vmatpush.msra.mxu0 0.0
  %4529 = vmatpush.msra.mxu0 0.0
  %4530 = vmatpush.msra.mxu0 0.0
  %4531 = vmatpush.msra.mxu0 0.0
  %4532 = vmatpush.msra.mxu0 0.0
  %4533 = vmatpush.msra.mxu0 0.0
  %4534 = vmatpush.msra.mxu0 0.0
  %4535 = vmatpush.msra.mxu0 0.0
  %4536 = vmatpush.msra.mxu0 %v3223
  %4537 = vmatpush.msra.mxu0 %v3222
  %4538 = vmatpush.msra.mxu0 %v3221
  %4539 = vmatpush.msra.mxu0 %v3220
  %4540 = vmatpush.msra.mxu0 %v3219
  %4541 = vmatpush.msra.mxu0 %v3218
  %4542 = vmatpush.msra.mxu0 %v3217
  %4543 = vmatpush.msra.mxu0 %v3216
  %4544 = vmatmul.f32.gmra.mxu0 %v4526
  %v4545 = vpop.f32.mrf.mxu0
  %v4546 = vadd.f32 0.0, %v4545
  %4547 = vdwg.mxu0
  %v4549 = vsel %vm3696, %v2869, 0
  %4551 = vmatpush.msra.mxu0 0.0
  %4552 = vmatpush.msra.mxu0 0.0
  %4553 = vmatpush.msra.mxu0 0.0
  %4554 = vmatpush.msra.mxu0 0.0
  %4555 = vmatpush.msra.mxu0 0.0
  %4556 = vmatpush.msra.mxu0 0.0
  %4557 = vmatpush.msra.mxu0 0.0
  %4558 = vmatpush.msra.mxu0 0.0
  %4559 = vmatpush.msra.mxu0 %v3231
  %4560 = vmatpush.msra.mxu0 %v3230
  %4561 = vmatpush.msra.mxu0 %v3229
  %4562 = vmatpush.msra.mxu0 %v3228
  %4563 = vmatpush.msra.mxu0 %v3227
  %4564 = vmatpush.msra.mxu0 %v3226
  %4565 = vmatpush.msra.mxu0 %v3225
  %4566 = vmatpush.msra.mxu0 %v3224
  %4567 = vmatmul.f32.gmra.mxu0 %v4549
  %v4568 = vpop.f32.mrf.mxu0
  %v4569 = vadd.f32 0.0, %v4568
  %4570 = vdwg.mxu0
  %v4572 = vsel %vm3696, %v2870, 0
  %4574 = vmatpush.msra.mxu0 0.0
  %4575 = vmatpush.msra.mxu0 0.0
  %4576 = vmatpush.msra.mxu0 0.0
  %4577 = vmatpush.msra.mxu0 0.0
  %4578 = vmatpush.msra.mxu0 0.0
  %4579 = vmatpush.msra.mxu0 0.0
  %4580 = vmatpush.msra.mxu0 0.0
  %4581 = vmatpush.msra.mxu0 0.0
  %4582 = vmatpush.msra.mxu0 %v3239
  %4583 = vmatpush.msra.mxu0 %v3238
  %4584 = vmatpush.msra.mxu0 %v3237
  %4585 = vmatpush.msra.mxu0 %v3236
  %4586 = vmatpush.msra.mxu0 %v3235
  %4587 = vmatpush.msra.mxu0 %v3234
  %4588 = vmatpush.msra.mxu0 %v3233
  %4589 = vmatpush.msra.mxu0 %v3232
  %4590 = vmatmul.f32.gmra.mxu0 %v4572
  %v4591 = vpop.f32.mrf.mxu0
  %v4592 = vadd.f32 0.0, %v4591
  %4593 = vdwg.mxu0
  %v4595 = vsel %vm3696, %v2871, 0
  %4597 = vmatpush.msra.mxu0 0.0
  %4598 = vmatpush.msra.mxu0 0.0
  %4599 = vmatpush.msra.mxu0 0.0
  %4600 = vmatpush.msra.mxu0 0.0
  %4601 = vmatpush.msra.mxu0 0.0
  %4602 = vmatpush.msra.mxu0 0.0
  %4603 = vmatpush.msra.mxu0 0.0
  %4604 = vmatpush.msra.mxu0 0.0
  %4605 = vmatpush.msra.mxu0 %v3247
  %4606 = vmatpush.msra.mxu0 %v3246
  %4607 = vmatpush.msra.mxu0 %v3245
  %4608 = vmatpush.msra.mxu0 %v3244
  %4609 = vmatpush.msra.mxu0 %v3243
  %4610 = vmatpush.msra.mxu0 %v3242
  %4611 = vmatpush.msra.mxu0 %v3241
  %4612 = vmatpush.msra.mxu0 %v3240
  %4613 = vmatmul.f32.gmra.mxu0 %v4595
  %v4614 = vpop.f32.mrf.mxu0
  %v4615 = vadd.f32 0.0, %v4614
  %4616 = vdwg.mxu0
  %v4618 = vsel %vm3696, %v2872, 0
  %4620 = vmatpush.msra.mxu0 0.0
  %4621 = vmatpush.msra.mxu0 0.0
  %4622 = vmatpush.msra.mxu0 0.0
  %4623 = vmatpush.msra.mxu0 0.0
  %4624 = vmatpush.msra.mxu0 0.0
  %4625 = vmatpush.msra.mxu0 0.0
  %4626 = vmatpush.msra.mxu0 0.0
  %4627 = vmatpush.msra.mxu0 0.0
  %4628 = vmatpush.msra.mxu0 %v3255
  %4629 = vmatpush.msra.mxu0 %v3254
  %4630 = vmatpush.msra.mxu0 %v3253
  %4631 = vmatpush.msra.mxu0 %v3252
  %4632 = vmatpush.msra.mxu0 %v3251
  %4633 = vmatpush.msra.mxu0 %v3250
  %4634 = vmatpush.msra.mxu0 %v3249
  %4635 = vmatpush.msra.mxu0 %v3248
  %4636 = vmatmul.f32.gmra.mxu0 %v4618
  %v4637 = vpop.f32.mrf.mxu0
  %v4638 = vadd.f32 0.0, %v4637
  %4639 = vdwg.mxu0
  %v4641 = vsel %vm3696, %v2873, 0
  %4643 = vmatpush.msra.mxu0 0.0
  %4644 = vmatpush.msra.mxu0 0.0
  %4645 = vmatpush.msra.mxu0 0.0
  %4646 = vmatpush.msra.mxu0 0.0
  %4647 = vmatpush.msra.mxu0 0.0
  %4648 = vmatpush.msra.mxu0 0.0
  %4649 = vmatpush.msra.mxu0 0.0
  %4650 = vmatpush.msra.mxu0 0.0
  %4651 = vmatpush.msra.mxu0 %v3263
  %4652 = vmatpush.msra.mxu0 %v3262
  %4653 = vmatpush.msra.mxu0 %v3261
  %4654 = vmatpush.msra.mxu0 %v3260
  %4655 = vmatpush.msra.mxu0 %v3259
  %4656 = vmatpush.msra.mxu0 %v3258
  %4657 = vmatpush.msra.mxu0 %v3257
  %4658 = vmatpush.msra.mxu0 %v3256
  %4659 = vmatmul.f32.gmra.mxu0 %v4641
  %v4660 = vpop.f32.mrf.mxu0
  %v4661 = vadd.f32 0.0, %v4660
  %4662 = vdwg.mxu0
  %v4664 = vsel %vm3696, %v2874, 0
  %4666 = vmatpush.msra.mxu0 0.0
  %4667 = vmatpush.msra.mxu0 0.0
  %4668 = vmatpush.msra.mxu0 0.0
  %4669 = vmatpush.msra.mxu0 0.0
  %4670 = vmatpush.msra.mxu0 0.0
  %4671 = vmatpush.msra.mxu0 0.0
  %4672 = vmatpush.msra.mxu0 0.0
  %4673 = vmatpush.msra.mxu0 0.0
  %4674 = vmatpush.msra.mxu0 %v3271
  %4675 = vmatpush.msra.mxu0 %v3270
  %4676 = vmatpush.msra.mxu0 %v3269
  %4677 = vmatpush.msra.mxu0 %v3268
  %4678 = vmatpush.msra.mxu0 %v3267
  %4679 = vmatpush.msra.mxu0 %v3266
  %4680 = vmatpush.msra.mxu0 %v3265
  %4681 = vmatpush.msra.mxu0 %v3264
  %4682 = vmatmul.f32.gmra.mxu0 %v4664
  %v4683 = vpop.f32.mrf.mxu0
  %v4684 = vadd.f32 0.0, %v4683
  %4685 = vdwg.mxu0
  %v4687 = vsel %vm3696, %v2875, 0
  %4689 = vmatpush.msra.mxu0 0.0
  %4690 = vmatpush.msra.mxu0 0.0
  %4691 = vmatpush.msra.mxu0 0.0
  %4692 = vmatpush.msra.mxu0 0.0
  %4693 = vmatpush.msra.mxu0 0.0
  %4694 = vmatpush.msra.mxu0 0.0
  %4695 = vmatpush.msra.mxu0 0.0
  %4696 = vmatpush.msra.mxu0 0.0
  %4697 = vmatpush.msra.mxu0 %v3279
  %4698 = vmatpush.msra.mxu0 %v3278
  %4699 = vmatpush.msra.mxu0 %v3277
  %4700 = vmatpush.msra.mxu0 %v3276
  %4701 = vmatpush.msra.mxu0 %v3275
  %4702 = vmatpush.msra.mxu0 %v3274
  %4703 = vmatpush.msra.mxu0 %v3273
  %4704 = vmatpush.msra.mxu0 %v3272
  %4705 = vmatmul.f32.gmra.mxu0 %v4687
  %v4706 = vpop.f32.mrf.mxu0
  %v4707 = vadd.f32 0.0, %v4706
  %4708 = vdwg.mxu0
  %v4710 = vsel %vm3696, %v2876, 0
  %4712 = vmatpush.msra.mxu0 0.0
  %4713 = vmatpush.msra.mxu0 0.0
  %4714 = vmatpush.msra.mxu0 0.0
  %4715 = vmatpush.msra.mxu0 0.0
  %4716 = vmatpush.msra.mxu0 0.0
  %4717 = vmatpush.msra.mxu0 0.0
  %4718 = vmatpush.msra.mxu0 0.0
  %4719 = vmatpush.msra.mxu0 0.0
  %4720 = vmatpush.msra.mxu0 %v3287
  %4721 = vmatpush.msra.mxu0 %v3286
  %4722 = vmatpush.msra.mxu0 %v3285
  %4723 = vmatpush.msra.mxu0 %v3284
  %4724 = vmatpush.msra.mxu0 %v3283
  %4725 = vmatpush.msra.mxu0 %v3282
  %4726 = vmatpush.msra.mxu0 %v3281
  %4727 = vmatpush.msra.mxu0 %v3280
  %4728 = vmatmul.f32.gmra.mxu0 %v4710
  %v4729 = vpop.f32.mrf.mxu0
  %v4730 = vadd.f32 0.0, %v4729
  %4731 = vdwg.mxu0
  %v4733 = vsel %vm3696, %v2877, 0
  %4735 = vmatpush.msra.mxu0 0.0
  %4736 = vmatpush.msra.mxu0 0.0
  %4737 = vmatpush.msra.mxu0 0.0
  %4738 = vmatpush.msra.mxu0 0.0
  %4739 = vmatpush.msra.mxu0 0.0
  %4740 = vmatpush.msra.mxu0 0.0
  %4741 = vmatpush.msra.mxu0 0.0
  %4742 = vmatpush.msra.mxu0 0.0
  %4743 = vmatpush.msra.mxu0 %v3295
  %4744 = vmatpush.msra.mxu0 %v3294
  %4745 = vmatpush.msra.mxu0 %v3293
  %4746 = vmatpush.msra.mxu0 %v3292
  %4747 = vmatpush.msra.mxu0 %v3291
  %4748 = vmatpush.msra.mxu0 %v3290
  %4749 = vmatpush.msra.mxu0 %v3289
  %4750 = vmatpush.msra.mxu0 %v3288
  %4751 = vmatmul.f32.gmra.mxu0 %v4733
  %v4752 = vpop.f32.mrf.mxu0
  %v4753 = vadd.f32 0.0, %v4752
  %4754 = vdwg.mxu0
  %v4756 = vsel %vm3696, %v2878, 0
  %4758 = vmatpush.msra.mxu0 0.0
  %4759 = vmatpush.msra.mxu0 0.0
  %4760 = vmatpush.msra.mxu0 0.0
  %4761 = vmatpush.msra.mxu0 0.0
  %4762 = vmatpush.msra.mxu0 0.0
  %4763 = vmatpush.msra.mxu0 0.0
  %4764 = vmatpush.msra.mxu0 0.0
  %4765 = vmatpush.msra.mxu0 0.0
  %4766 = vmatpush.msra.mxu0 %v3303
  %4767 = vmatpush.msra.mxu0 %v3302
  %4768 = vmatpush.msra.mxu0 %v3301
  %4769 = vmatpush.msra.mxu0 %v3300
  %4770 = vmatpush.msra.mxu0 %v3299
  %4771 = vmatpush.msra.mxu0 %v3298
  %4772 = vmatpush.msra.mxu0 %v3297
  %4773 = vmatpush.msra.mxu0 %v3296
  %4774 = vmatmul.f32.gmra.mxu0 %v4756
  %v4775 = vpop.f32.mrf.mxu0
  %v4776 = vadd.f32 0.0, %v4775
  %4777 = vdwg.mxu0
  %v4779 = vsel %vm3696, %v2879, 0
  %4781 = vmatpush.msra.mxu0 0.0
  %4782 = vmatpush.msra.mxu0 0.0
  %4783 = vmatpush.msra.mxu0 0.0
  %4784 = vmatpush.msra.mxu0 0.0
  %4785 = vmatpush.msra.mxu0 0.0
  %4786 = vmatpush.msra.mxu0 0.0
  %4787 = vmatpush.msra.mxu0 0.0
  %4788 = vmatpush.msra.mxu0 0.0
  %4789 = vmatpush.msra.mxu0 %v3311
  %4790 = vmatpush.msra.mxu0 %v3310
  %4791 = vmatpush.msra.mxu0 %v3309
  %4792 = vmatpush.msra.mxu0 %v3308
  %4793 = vmatpush.msra.mxu0 %v3307
  %4794 = vmatpush.msra.mxu0 %v3306
  %4795 = vmatpush.msra.mxu0 %v3305
  %4796 = vmatpush.msra.mxu0 %v3304
  %4797 = vmatmul.f32.gmra.mxu0 %v4779
  %v4798 = vpop.f32.mrf.mxu0
  %v4799 = vadd.f32 0.0, %v4798
  %4800 = vdwg.mxu0
  %v4802 = vsel %vm3696, %v2880, 0
  %4804 = vmatpush.msra.mxu0 0.0
  %4805 = vmatpush.msra.mxu0 0.0
  %4806 = vmatpush.msra.mxu0 0.0
  %4807 = vmatpush.msra.mxu0 0.0
  %4808 = vmatpush.msra.mxu0 0.0
  %4809 = vmatpush.msra.mxu0 0.0
  %4810 = vmatpush.msra.mxu0 0.0
  %4811 = vmatpush.msra.mxu0 0.0
  %4812 = vmatpush.msra.mxu0 %v3319
  %4813 = vmatpush.msra.mxu0 %v3318
  %4814 = vmatpush.msra.mxu0 %v3317
  %4815 = vmatpush.msra.mxu0 %v3316
  %4816 = vmatpush.msra.mxu0 %v3315
  %4817 = vmatpush.msra.mxu0 %v3314
  %4818 = vmatpush.msra.mxu0 %v3313
  %4819 = vmatpush.msra.mxu0 %v3312
  %4820 = vmatmul.f32.gmra.mxu0 %v4802
  %v4821 = vpop.f32.mrf.mxu0
  %v4822 = vadd.f32 0.0, %v4821
  %4823 = vdwg.mxu0
  %v4825 = vsel %vm3696, %v2881, 0
  %4827 = vmatpush.msra.mxu0 0.0
  %4828 = vmatpush.msra.mxu0 0.0
  %4829 = vmatpush.msra.mxu0 0.0
  %4830 = vmatpush.msra.mxu0 0.0
  %4831 = vmatpush.msra.mxu0 0.0
  %4832 = vmatpush.msra.mxu0 0.0
  %4833 = vmatpush.msra.mxu0 0.0
  %4834 = vmatpush.msra.mxu0 0.0
  %4835 = vmatpush.msra.mxu0 %v3327
  %4836 = vmatpush.msra.mxu0 %v3326
  %4837 = vmatpush.msra.mxu0 %v3325
  %4838 = vmatpush.msra.mxu0 %v3324
  %4839 = vmatpush.msra.mxu0 %v3323
  %4840 = vmatpush.msra.mxu0 %v3322
  %4841 = vmatpush.msra.mxu0 %v3321
  %4842 = vmatpush.msra.mxu0 %v3320
  %4843 = vmatmul.f32.gmra.mxu0 %v4825
  %v4844 = vpop.f32.mrf.mxu0
  %v4845 = vadd.f32 0.0, %v4844
  %4846 = vdwg.mxu0
  %v4848 = vsel %vm3696, %v2882, 0
  %4850 = vmatpush.msra.mxu0 0.0
  %4851 = vmatpush.msra.mxu0 0.0
  %4852 = vmatpush.msra.mxu0 0.0
  %4853 = vmatpush.msra.mxu0 0.0
  %4854 = vmatpush.msra.mxu0 0.0
  %4855 = vmatpush.msra.mxu0 0.0
  %4856 = vmatpush.msra.mxu0 0.0
  %4857 = vmatpush.msra.mxu0 0.0
  %4858 = vmatpush.msra.mxu0 %v3335
  %4859 = vmatpush.msra.mxu0 %v3334
  %4860 = vmatpush.msra.mxu0 %v3333
  %4861 = vmatpush.msra.mxu0 %v3332
  %4862 = vmatpush.msra.mxu0 %v3331
  %4863 = vmatpush.msra.mxu0 %v3330
  %4864 = vmatpush.msra.mxu0 %v3329
  %4865 = vmatpush.msra.mxu0 %v3328
  %4866 = vmatmul.f32.gmra.mxu0 %v4848
  %v4867 = vpop.f32.mrf.mxu0
  %v4868 = vadd.f32 0.0, %v4867
  %4869 = vdwg.mxu0
  %v4871 = vsel %vm3696, %v2883, 0
  %4873 = vmatpush.msra.mxu0 0.0
  %4874 = vmatpush.msra.mxu0 0.0
  %4875 = vmatpush.msra.mxu0 0.0
  %4876 = vmatpush.msra.mxu0 0.0
  %4877 = vmatpush.msra.mxu0 0.0
  %4878 = vmatpush.msra.mxu0 0.0
  %4879 = vmatpush.msra.mxu0 0.0
  %4880 = vmatpush.msra.mxu0 0.0
  %4881 = vmatpush.msra.mxu0 %v3343
  %4882 = vmatpush.msra.mxu0 %v3342
  %4883 = vmatpush.msra.mxu0 %v3341
  %4884 = vmatpush.msra.mxu0 %v3340
  %4885 = vmatpush.msra.mxu0 %v3339
  %4886 = vmatpush.msra.mxu0 %v3338
  %4887 = vmatpush.msra.mxu0 %v3337
  %4888 = vmatpush.msra.mxu0 %v3336
  %4889 = vmatmul.f32.gmra.mxu0 %v4871
  %v4890 = vpop.f32.mrf.mxu0
  %v4891 = vadd.f32 0.0, %v4890
  %4892 = vdwg.mxu0
  %v4894 = vsel %vm3696, %v2884, 0
  %4896 = vmatpush.msra.mxu0 0.0
  %4897 = vmatpush.msra.mxu0 0.0
  %4898 = vmatpush.msra.mxu0 0.0
  %4899 = vmatpush.msra.mxu0 0.0
  %4900 = vmatpush.msra.mxu0 0.0
  %4901 = vmatpush.msra.mxu0 0.0
  %4902 = vmatpush.msra.mxu0 0.0
  %4903 = vmatpush.msra.mxu0 0.0
  %4904 = vmatpush.msra.mxu0 %v3351
  %4905 = vmatpush.msra.mxu0 %v3350
  %4906 = vmatpush.msra.mxu0 %v3349
  %4907 = vmatpush.msra.mxu0 %v3348
  %4908 = vmatpush.msra.mxu0 %v3347
  %4909 = vmatpush.msra.mxu0 %v3346
  %4910 = vmatpush.msra.mxu0 %v3345
  %4911 = vmatpush.msra.mxu0 %v3344
  %4912 = vmatmul.f32.gmra.mxu0 %v4894
  %v4913 = vpop.f32.mrf.mxu0
  %v4914 = vadd.f32 0.0, %v4913
  %4915 = vdwg.mxu0
  %v4917 = vsel %vm3696, %v2885, 0
  %4919 = vmatpush.msra.mxu0 0.0
  %4920 = vmatpush.msra.mxu0 0.0
  %4921 = vmatpush.msra.mxu0 0.0
  %4922 = vmatpush.msra.mxu0 0.0
  %4923 = vmatpush.msra.mxu0 0.0
  %4924 = vmatpush.msra.mxu0 0.0
  %4925 = vmatpush.msra.mxu0 0.0
  %4926 = vmatpush.msra.mxu0 0.0
  %4927 = vmatpush.msra.mxu0 %v3359
  %4928 = vmatpush.msra.mxu0 %v3358
  %4929 = vmatpush.msra.mxu0 %v3357
  %4930 = vmatpush.msra.mxu0 %v3356
  %4931 = vmatpush.msra.mxu0 %v3355
  %4932 = vmatpush.msra.mxu0 %v3354
  %4933 = vmatpush.msra.mxu0 %v3353
  %4934 = vmatpush.msra.mxu0 %v3352
  %4935 = vmatmul.f32.gmra.mxu0 %v4917
  %v4936 = vpop.f32.mrf.mxu0
  %v4937 = vadd.f32 0.0, %v4936
  %4938 = vdwg.mxu0
  %v4940 = vsel %vm3696, %v2886, 0
  %4942 = vmatpush.msra.mxu0 0.0
  %4943 = vmatpush.msra.mxu0 0.0
  %4944 = vmatpush.msra.mxu0 0.0
  %4945 = vmatpush.msra.mxu0 0.0
  %4946 = vmatpush.msra.mxu0 0.0
  %4947 = vmatpush.msra.mxu0 0.0
  %4948 = vmatpush.msra.mxu0 0.0
  %4949 = vmatpush.msra.mxu0 0.0
  %4950 = vmatpush.msra.mxu0 %v3367
  %4951 = vmatpush.msra.mxu0 %v3366
  %4952 = vmatpush.msra.mxu0 %v3365
  %4953 = vmatpush.msra.mxu0 %v3364
  %4954 = vmatpush.msra.mxu0 %v3363
  %4955 = vmatpush.msra.mxu0 %v3362
  %4956 = vmatpush.msra.mxu0 %v3361
  %4957 = vmatpush.msra.mxu0 %v3360
  %4958 = vmatmul.f32.gmra.mxu0 %v4940
  %v4959 = vpop.f32.mrf.mxu0
  %v4960 = vadd.f32 0.0, %v4959
  %4961 = vdwg.mxu0
  %v4963 = vsel %vm3696, %v2887, 0
  %4965 = vmatpush.msra.mxu0 0.0
  %4966 = vmatpush.msra.mxu0 0.0
  %4967 = vmatpush.msra.mxu0 0.0
  %4968 = vmatpush.msra.mxu0 0.0
  %4969 = vmatpush.msra.mxu0 0.0
  %4970 = vmatpush.msra.mxu0 0.0
  %4971 = vmatpush.msra.mxu0 0.0
  %4972 = vmatpush.msra.mxu0 0.0
  %4973 = vmatpush.msra.mxu0 %v3375
  %4974 = vmatpush.msra.mxu0 %v3374
  %4975 = vmatpush.msra.mxu0 %v3373
  %4976 = vmatpush.msra.mxu0 %v3372
  %4977 = vmatpush.msra.mxu0 %v3371
  %4978 = vmatpush.msra.mxu0 %v3370
  %4979 = vmatpush.msra.mxu0 %v3369
  %4980 = vmatpush.msra.mxu0 %v3368
  %4981 = vmatmul.f32.gmra.mxu0 %v4963
  %v4982 = vpop.f32.mrf.mxu0
  %v4983 = vadd.f32 0.0, %v4982
  %4984 = vdwg.mxu0
  %v4986 = vsel %vm3696, %v2888, 0
  %4988 = vmatpush.msra.mxu0 0.0
  %4989 = vmatpush.msra.mxu0 0.0
  %4990 = vmatpush.msra.mxu0 0.0
  %4991 = vmatpush.msra.mxu0 0.0
  %4992 = vmatpush.msra.mxu0 0.0
  %4993 = vmatpush.msra.mxu0 0.0
  %4994 = vmatpush.msra.mxu0 0.0
  %4995 = vmatpush.msra.mxu0 0.0
  %4996 = vmatpush.msra.mxu0 %v3383
  %4997 = vmatpush.msra.mxu0 %v3382
  %4998 = vmatpush.msra.mxu0 %v3381
  %4999 = vmatpush.msra.mxu0 %v3380
  %5000 = vmatpush.msra.mxu0 %v3379
  %5001 = vmatpush.msra.mxu0 %v3378
  %5002 = vmatpush.msra.mxu0 %v3377
  %5003 = vmatpush.msra.mxu0 %v3376
  %5004 = vmatmul.f32.gmra.mxu0 %v4986
  %v5005 = vpop.f32.mrf.mxu0
  %v5006 = vadd.f32 0.0, %v5005
  %5007 = vdwg.mxu0
  %v5009 = vsel %vm3696, %v2889, 0
  %5011 = vmatpush.msra.mxu0 0.0
  %5012 = vmatpush.msra.mxu0 0.0
  %5013 = vmatpush.msra.mxu0 0.0
  %5014 = vmatpush.msra.mxu0 0.0
  %5015 = vmatpush.msra.mxu0 0.0
  %5016 = vmatpush.msra.mxu0 0.0
  %5017 = vmatpush.msra.mxu0 0.0
  %5018 = vmatpush.msra.mxu0 0.0
  %5019 = vmatpush.msra.mxu0 %v3391
  %5020 = vmatpush.msra.mxu0 %v3390
  %5021 = vmatpush.msra.mxu0 %v3389
  %5022 = vmatpush.msra.mxu0 %v3388
  %5023 = vmatpush.msra.mxu0 %v3387
  %5024 = vmatpush.msra.mxu0 %v3386
  %5025 = vmatpush.msra.mxu0 %v3385
  %5026 = vmatpush.msra.mxu0 %v3384
  %5027 = vmatmul.f32.gmra.mxu0 %v5009
  %v5028 = vpop.f32.mrf.mxu0
  %v5029 = vadd.f32 0.0, %v5028
  %5030 = vdwg.mxu0
  %v5032 = vsel %vm3696, %v2890, 0
  %5034 = vmatpush.msra.mxu0 0.0
  %5035 = vmatpush.msra.mxu0 0.0
  %5036 = vmatpush.msra.mxu0 0.0
  %5037 = vmatpush.msra.mxu0 0.0
  %5038 = vmatpush.msra.mxu0 0.0
  %5039 = vmatpush.msra.mxu0 0.0
  %5040 = vmatpush.msra.mxu0 0.0
  %5041 = vmatpush.msra.mxu0 0.0
  %5042 = vmatpush.msra.mxu0 %v3399
  %5043 = vmatpush.msra.mxu0 %v3398
  %5044 = vmatpush.msra.mxu0 %v3397
  %5045 = vmatpush.msra.mxu0 %v3396
  %5046 = vmatpush.msra.mxu0 %v3395
  %5047 = vmatpush.msra.mxu0 %v3394
  %5048 = vmatpush.msra.mxu0 %v3393
  %5049 = vmatpush.msra.mxu0 %v3392
  %5050 = vmatmul.f32.gmra.mxu0 %v5032
  %v5051 = vpop.f32.mrf.mxu0
  %v5052 = vadd.f32 0.0, %v5051
  %5053 = vdwg.mxu0
  %v5055 = vsel %vm3696, %v2891, 0
  %5057 = vmatpush.msra.mxu0 0.0
  %5058 = vmatpush.msra.mxu0 0.0
  %5059 = vmatpush.msra.mxu0 0.0
  %5060 = vmatpush.msra.mxu0 0.0
  %5061 = vmatpush.msra.mxu0 0.0
  %5062 = vmatpush.msra.mxu0 0.0
  %5063 = vmatpush.msra.mxu0 0.0
  %5064 = vmatpush.msra.mxu0 0.0
  %5065 = vmatpush.msra.mxu0 %v3407
  %5066 = vmatpush.msra.mxu0 %v3406
  %5067 = vmatpush.msra.mxu0 %v3405
  %5068 = vmatpush.msra.mxu0 %v3404
  %5069 = vmatpush.msra.mxu0 %v3403
  %5070 = vmatpush.msra.mxu0 %v3402
  %5071 = vmatpush.msra.mxu0 %v3401
  %5072 = vmatpush.msra.mxu0 %v3400
  %5073 = vmatmul.f32.gmra.mxu0 %v5055
  %v5074 = vpop.f32.mrf.mxu0
  %v5075 = vadd.f32 0.0, %v5074
  %5076 = vdwg.mxu0
  %v5078 = vsel %vm3696, %v2892, 0
  %5080 = vmatpush.msra.mxu0 0.0
  %5081 = vmatpush.msra.mxu0 0.0
  %5082 = vmatpush.msra.mxu0 0.0
  %5083 = vmatpush.msra.mxu0 0.0
  %5084 = vmatpush.msra.mxu0 0.0
  %5085 = vmatpush.msra.mxu0 0.0
  %5086 = vmatpush.msra.mxu0 0.0
  %5087 = vmatpush.msra.mxu0 0.0
  %5088 = vmatpush.msra.mxu0 %v3415
  %5089 = vmatpush.msra.mxu0 %v3414
  %5090 = vmatpush.msra.mxu0 %v3413
  %5091 = vmatpush.msra.mxu0 %v3412
  %5092 = vmatpush.msra.mxu0 %v3411
  %5093 = vmatpush.msra.mxu0 %v3410
  %5094 = vmatpush.msra.mxu0 %v3409
  %5095 = vmatpush.msra.mxu0 %v3408
  %5096 = vmatmul.f32.gmra.mxu0 %v5078
  %v5097 = vpop.f32.mrf.mxu0
  %v5098 = vadd.f32 0.0, %v5097
  %5099 = vdwg.mxu0
  %v5101 = vsel %vm3696, %v2893, 0
  %5103 = vmatpush.msra.mxu0 0.0
  %5104 = vmatpush.msra.mxu0 0.0
  %5105 = vmatpush.msra.mxu0 0.0
  %5106 = vmatpush.msra.mxu0 0.0
  %5107 = vmatpush.msra.mxu0 0.0
  %5108 = vmatpush.msra.mxu0 0.0
  %5109 = vmatpush.msra.mxu0 0.0
  %5110 = vmatpush.msra.mxu0 0.0
  %5111 = vmatpush.msra.mxu0 %v3423
  %5112 = vmatpush.msra.mxu0 %v3422
  %5113 = vmatpush.msra.mxu0 %v3421
  %5114 = vmatpush.msra.mxu0 %v3420
  %5115 = vmatpush.msra.mxu0 %v3419
  %5116 = vmatpush.msra.mxu0 %v3418
  %5117 = vmatpush.msra.mxu0 %v3417
  %5118 = vmatpush.msra.mxu0 %v3416
  %5119 = vmatmul.f32.gmra.mxu0 %v5101
  %v5120 = vpop.f32.mrf.mxu0
  %v5121 = vadd.f32 0.0, %v5120
  %5122 = vdwg.mxu0
  %v5124 = vsel %vm3696, %v2894, 0
  %5126 = vmatpush.msra.mxu0 0.0
  %5127 = vmatpush.msra.mxu0 0.0
  %5128 = vmatpush.msra.mxu0 0.0
  %5129 = vmatpush.msra.mxu0 0.0
  %5130 = vmatpush.msra.mxu0 0.0
  %5131 = vmatpush.msra.mxu0 0.0
  %5132 = vmatpush.msra.mxu0 0.0
  %5133 = vmatpush.msra.mxu0 0.0
  %5134 = vmatpush.msra.mxu0 %v3431
  %5135 = vmatpush.msra.mxu0 %v3430
  %5136 = vmatpush.msra.mxu0 %v3429
  %5137 = vmatpush.msra.mxu0 %v3428
  %5138 = vmatpush.msra.mxu0 %v3427
  %5139 = vmatpush.msra.mxu0 %v3426
  %5140 = vmatpush.msra.mxu0 %v3425
  %5141 = vmatpush.msra.mxu0 %v3424
  %5142 = vmatmul.f32.gmra.mxu0 %v5124
  %v5143 = vpop.f32.mrf.mxu0
  %v5144 = vadd.f32 0.0, %v5143
  %5145 = vdwg.mxu0
  %v5147 = vsel %vm3696, %v2895, 0
  %5149 = vmatpush.msra.mxu0 0.0
  %5150 = vmatpush.msra.mxu0 0.0
  %5151 = vmatpush.msra.mxu0 0.0
  %5152 = vmatpush.msra.mxu0 0.0
  %5153 = vmatpush.msra.mxu0 0.0
  %5154 = vmatpush.msra.mxu0 0.0
  %5155 = vmatpush.msra.mxu0 0.0
  %5156 = vmatpush.msra.mxu0 0.0
  %5157 = vmatpush.msra.mxu0 %v3439
  %5158 = vmatpush.msra.mxu0 %v3438
  %5159 = vmatpush.msra.mxu0 %v3437
  %5160 = vmatpush.msra.mxu0 %v3436
  %5161 = vmatpush.msra.mxu0 %v3435
  %5162 = vmatpush.msra.mxu0 %v3434
  %5163 = vmatpush.msra.mxu0 %v3433
  %5164 = vmatpush.msra.mxu0 %v3432
  %5165 = vmatmul.f32.gmra.mxu0 %v5147
  %v5166 = vpop.f32.mrf.mxu0
  %v5167 = vadd.f32 0.0, %v5166
  %5168 = vdwg.mxu0
  %v5170 = vsel %vm3696, %v2896, 0
  %5172 = vmatpush.msra.mxu0 0.0
  %5173 = vmatpush.msra.mxu0 0.0
  %5174 = vmatpush.msra.mxu0 0.0
  %5175 = vmatpush.msra.mxu0 0.0
  %5176 = vmatpush.msra.mxu0 0.0
  %5177 = vmatpush.msra.mxu0 0.0
  %5178 = vmatpush.msra.mxu0 0.0
  %5179 = vmatpush.msra.mxu0 0.0
  %5180 = vmatpush.msra.mxu0 %v3447
  %5181 = vmatpush.msra.mxu0 %v3446
  %5182 = vmatpush.msra.mxu0 %v3445
  %5183 = vmatpush.msra.mxu0 %v3444
  %5184 = vmatpush.msra.mxu0 %v3443
  %5185 = vmatpush.msra.mxu0 %v3442
  %5186 = vmatpush.msra.mxu0 %v3441
  %5187 = vmatpush.msra.mxu0 %v3440
  %5188 = vmatmul.f32.gmra.mxu0 %v5170
  %v5189 = vpop.f32.mrf.mxu0
  %v5190 = vadd.f32 0.0, %v5189
  %5191 = vdwg.mxu0
  %v5193 = vsel %vm3696, %v2897, 0
  %5195 = vmatpush.msra.mxu0 0.0
  %5196 = vmatpush.msra.mxu0 0.0
  %5197 = vmatpush.msra.mxu0 0.0
  %5198 = vmatpush.msra.mxu0 0.0
  %5199 = vmatpush.msra.mxu0 0.0
  %5200 = vmatpush.msra.mxu0 0.0
  %5201 = vmatpush.msra.mxu0 0.0
  %5202 = vmatpush.msra.mxu0 0.0
  %5203 = vmatpush.msra.mxu0 %v3455
  %5204 = vmatpush.msra.mxu0 %v3454
  %5205 = vmatpush.msra.mxu0 %v3453
  %5206 = vmatpush.msra.mxu0 %v3452
  %5207 = vmatpush.msra.mxu0 %v3451
  %5208 = vmatpush.msra.mxu0 %v3450
  %5209 = vmatpush.msra.mxu0 %v3449
  %5210 = vmatpush.msra.mxu0 %v3448
  %5211 = vmatmul.f32.gmra.mxu0 %v5193
  %v5212 = vpop.f32.mrf.mxu0
  %v5213 = vadd.f32 0.0, %v5212
  %5214 = vdwg.mxu0
  %v5216 = vsel %vm3696, %v2898, 0
  %5218 = vmatpush.msra.mxu0 0.0
  %5219 = vmatpush.msra.mxu0 0.0
  %5220 = vmatpush.msra.mxu0 0.0
  %5221 = vmatpush.msra.mxu0 0.0
  %5222 = vmatpush.msra.mxu0 0.0
  %5223 = vmatpush.msra.mxu0 0.0
  %5224 = vmatpush.msra.mxu0 0.0
  %5225 = vmatpush.msra.mxu0 0.0
  %5226 = vmatpush.msra.mxu0 %v3463
  %5227 = vmatpush.msra.mxu0 %v3462
  %5228 = vmatpush.msra.mxu0 %v3461
  %5229 = vmatpush.msra.mxu0 %v3460
  %5230 = vmatpush.msra.mxu0 %v3459
  %5231 = vmatpush.msra.mxu0 %v3458
  %5232 = vmatpush.msra.mxu0 %v3457
  %5233 = vmatpush.msra.mxu0 %v3456
  %5234 = vmatmul.f32.gmra.mxu0 %v5216
  %v5235 = vpop.f32.mrf.mxu0
  %v5236 = vadd.f32 0.0, %v5235
  %5237 = vdwg.mxu0
  %v5239 = vsel %vm3696, %v2899, 0
  %5241 = vmatpush.msra.mxu0 0.0
  %5242 = vmatpush.msra.mxu0 0.0
  %5243 = vmatpush.msra.mxu0 0.0
  %5244 = vmatpush.msra.mxu0 0.0
  %5245 = vmatpush.msra.mxu0 0.0
  %5246 = vmatpush.msra.mxu0 0.0
  %5247 = vmatpush.msra.mxu0 0.0
  %5248 = vmatpush.msra.mxu0 0.0
  %5249 = vmatpush.msra.mxu0 %v3471
  %5250 = vmatpush.msra.mxu0 %v3470
  %5251 = vmatpush.msra.mxu0 %v3469
  %5252 = vmatpush.msra.mxu0 %v3468
  %5253 = vmatpush.msra.mxu0 %v3467
  %5254 = vmatpush.msra.mxu0 %v3466
  %5255 = vmatpush.msra.mxu0 %v3465
  %5256 = vmatpush.msra.mxu0 %v3464
  %5257 = vmatmul.f32.gmra.mxu0 %v5239
  %v5258 = vpop.f32.mrf.mxu0
  %v5259 = vadd.f32 0.0, %v5258
  %5260 = vdwg.mxu0
  %v5262 = vsel %vm3696, %v2900, 0
  %5264 = vmatpush.msra.mxu0 0.0
  %5265 = vmatpush.msra.mxu0 0.0
  %5266 = vmatpush.msra.mxu0 0.0
  %5267 = vmatpush.msra.mxu0 0.0
  %5268 = vmatpush.msra.mxu0 0.0
  %5269 = vmatpush.msra.mxu0 0.0
  %5270 = vmatpush.msra.mxu0 0.0
  %5271 = vmatpush.msra.mxu0 0.0
  %5272 = vmatpush.msra.mxu0 %v3479
  %5273 = vmatpush.msra.mxu0 %v3478
  %5274 = vmatpush.msra.mxu0 %v3477
  %5275 = vmatpush.msra.mxu0 %v3476
  %5276 = vmatpush.msra.mxu0 %v3475
  %5277 = vmatpush.msra.mxu0 %v3474
  %5278 = vmatpush.msra.mxu0 %v3473
  %5279 = vmatpush.msra.mxu0 %v3472
  %5280 = vmatmul.f32.gmra.mxu0 %v5262
  %v5281 = vpop.f32.mrf.mxu0
  %v5282 = vadd.f32 0.0, %v5281
  %5283 = vdwg.mxu0
  %v5285 = vsel %vm3696, %v2901, 0
  %5287 = vmatpush.msra.mxu0 0.0
  %5288 = vmatpush.msra.mxu0 0.0
  %5289 = vmatpush.msra.mxu0 0.0
  %5290 = vmatpush.msra.mxu0 0.0
  %5291 = vmatpush.msra.mxu0 0.0
  %5292 = vmatpush.msra.mxu0 0.0
  %5293 = vmatpush.msra.mxu0 0.0
  %5294 = vmatpush.msra.mxu0 0.0
  %5295 = vmatpush.msra.mxu0 %v3487
  %5296 = vmatpush.msra.mxu0 %v3486
  %5297 = vmatpush.msra.mxu0 %v3485
  %5298 = vmatpush.msra.mxu0 %v3484
  %5299 = vmatpush.msra.mxu0 %v3483
  %5300 = vmatpush.msra.mxu0 %v3482
  %5301 = vmatpush.msra.mxu0 %v3481
  %5302 = vmatpush.msra.mxu0 %v3480
  %5303 = vmatmul.f32.gmra.mxu0 %v5285
  %v5304 = vpop.f32.mrf.mxu0
  %v5305 = vadd.f32 0.0, %v5304
  %5306 = vdwg.mxu0
  %v5308 = vsel %vm3696, %v2902, 0
  %5310 = vmatpush.msra.mxu0 0.0
  %5311 = vmatpush.msra.mxu0 0.0
  %5312 = vmatpush.msra.mxu0 0.0
  %5313 = vmatpush.msra.mxu0 0.0
  %5314 = vmatpush.msra.mxu0 0.0
  %5315 = vmatpush.msra.mxu0 0.0
  %5316 = vmatpush.msra.mxu0 0.0
  %5317 = vmatpush.msra.mxu0 0.0
  %5318 = vmatpush.msra.mxu0 %v3495
  %5319 = vmatpush.msra.mxu0 %v3494
  %5320 = vmatpush.msra.mxu0 %v3493
  %5321 = vmatpush.msra.mxu0 %v3492
  %5322 = vmatpush.msra.mxu0 %v3491
  %5323 = vmatpush.msra.mxu0 %v3490
  %5324 = vmatpush.msra.mxu0 %v3489
  %5325 = vmatpush.msra.mxu0 %v3488
  %5326 = vmatmul.f32.gmra.mxu0 %v5308
  %v5327 = vpop.f32.mrf.mxu0
  %v5328 = vadd.f32 0.0, %v5327
  %5329 = vdwg.mxu0
  %v5331 = vsel %vm3696, %v2903, 0
  %5333 = vmatpush.msra.mxu0 0.0
  %5334 = vmatpush.msra.mxu0 0.0
  %5335 = vmatpush.msra.mxu0 0.0
  %5336 = vmatpush.msra.mxu0 0.0
  %5337 = vmatpush.msra.mxu0 0.0
  %5338 = vmatpush.msra.mxu0 0.0
  %5339 = vmatpush.msra.mxu0 0.0
  %5340 = vmatpush.msra.mxu0 0.0
  %5341 = vmatpush.msra.mxu0 %v3503
  %5342 = vmatpush.msra.mxu0 %v3502
  %5343 = vmatpush.msra.mxu0 %v3501
  %5344 = vmatpush.msra.mxu0 %v3500
  %5345 = vmatpush.msra.mxu0 %v3499
  %5346 = vmatpush.msra.mxu0 %v3498
  %5347 = vmatpush.msra.mxu0 %v3497
  %5348 = vmatpush.msra.mxu0 %v3496
  %5349 = vmatmul.f32.gmra.mxu0 %v5331
  %v5350 = vpop.f32.mrf.mxu0
  %v5351 = vadd.f32 0.0, %v5350
  %5352 = vdwg.mxu0
  %v5354 = vsel %vm3696, %v2904, 0
  %5356 = vmatpush.msra.mxu0 0.0
  %5357 = vmatpush.msra.mxu0 0.0
  %5358 = vmatpush.msra.mxu0 0.0
  %5359 = vmatpush.msra.mxu0 0.0
  %5360 = vmatpush.msra.mxu0 0.0
  %5361 = vmatpush.msra.mxu0 0.0
  %5362 = vmatpush.msra.mxu0 0.0
  %5363 = vmatpush.msra.mxu0 0.0
  %5364 = vmatpush.msra.mxu0 %v3511
  %5365 = vmatpush.msra.mxu0 %v3510
  %5366 = vmatpush.msra.mxu0 %v3509
  %5367 = vmatpush.msra.mxu0 %v3508
  %5368 = vmatpush.msra.mxu0 %v3507
  %5369 = vmatpush.msra.mxu0 %v3506
  %5370 = vmatpush.msra.mxu0 %v3505
  %5371 = vmatpush.msra.mxu0 %v3504
  %5372 = vmatmul.f32.gmra.mxu0 %v5354
  %v5373 = vpop.f32.mrf.mxu0
  %v5374 = vadd.f32 0.0, %v5373
  %5375 = vdwg.mxu0
  %v5377 = vsel %vm3696, %v2905, 0
  %5379 = vmatpush.msra.mxu0 0.0
  %5380 = vmatpush.msra.mxu0 0.0
  %5381 = vmatpush.msra.mxu0 0.0
  %5382 = vmatpush.msra.mxu0 0.0
  %5383 = vmatpush.msra.mxu0 0.0
  %5384 = vmatpush.msra.mxu0 0.0
  %5385 = vmatpush.msra.mxu0 0.0
  %5386 = vmatpush.msra.mxu0 0.0
  %5387 = vmatpush.msra.mxu0 %v3519
  %5388 = vmatpush.msra.mxu0 %v3518
  %5389 = vmatpush.msra.mxu0 %v3517
  %5390 = vmatpush.msra.mxu0 %v3516
  %5391 = vmatpush.msra.mxu0 %v3515
  %5392 = vmatpush.msra.mxu0 %v3514
  %5393 = vmatpush.msra.mxu0 %v3513
  %5394 = vmatpush.msra.mxu0 %v3512
  %5395 = vmatmul.f32.gmra.mxu0 %v5377
  %v5396 = vpop.f32.mrf.mxu0
  %v5397 = vadd.f32 0.0, %v5396
  %5398 = vdwg.mxu0
  %v5400 = vsel %vm3696, %v2906, 0
  %5402 = vmatpush.msra.mxu0 0.0
  %5403 = vmatpush.msra.mxu0 0.0
  %5404 = vmatpush.msra.mxu0 0.0
  %5405 = vmatpush.msra.mxu0 0.0
  %5406 = vmatpush.msra.mxu0 0.0
  %5407 = vmatpush.msra.mxu0 0.0
  %5408 = vmatpush.msra.mxu0 0.0
  %5409 = vmatpush.msra.mxu0 0.0
  %5410 = vmatpush.msra.mxu0 %v3527
  %5411 = vmatpush.msra.mxu0 %v3526
  %5412 = vmatpush.msra.mxu0 %v3525
  %5413 = vmatpush.msra.mxu0 %v3524
  %5414 = vmatpush.msra.mxu0 %v3523
  %5415 = vmatpush.msra.mxu0 %v3522
  %5416 = vmatpush.msra.mxu0 %v3521
  %5417 = vmatpush.msra.mxu0 %v3520
  %5418 = vmatmul.f32.gmra.mxu0 %v5400
  %v5419 = vpop.f32.mrf.mxu0
  %v5420 = vadd.f32 0.0, %v5419
  %5421 = vdwg.mxu0
  %v5423 = vsel %vm3696, %v2907, 0
  %5425 = vmatpush.msra.mxu0 0.0
  %5426 = vmatpush.msra.mxu0 0.0
  %5427 = vmatpush.msra.mxu0 0.0
  %5428 = vmatpush.msra.mxu0 0.0
  %5429 = vmatpush.msra.mxu0 0.0
  %5430 = vmatpush.msra.mxu0 0.0
  %5431 = vmatpush.msra.mxu0 0.0
  %5432 = vmatpush.msra.mxu0 0.0
  %5433 = vmatpush.msra.mxu0 %v3535
  %5434 = vmatpush.msra.mxu0 %v3534
  %5435 = vmatpush.msra.mxu0 %v3533
  %5436 = vmatpush.msra.mxu0 %v3532
  %5437 = vmatpush.msra.mxu0 %v3531
  %5438 = vmatpush.msra.mxu0 %v3530
  %5439 = vmatpush.msra.mxu0 %v3529
  %5440 = vmatpush.msra.mxu0 %v3528
  %5441 = vmatmul.f32.gmra.mxu0 %v5423
  %v5442 = vpop.f32.mrf.mxu0
  %v5443 = vadd.f32 0.0, %v5442
  %5444 = vdwg.mxu0
  %v5446 = vsel %vm3696, %v2908, 0
  %5448 = vmatpush.msra.mxu0 0.0
  %5449 = vmatpush.msra.mxu0 0.0
  %5450 = vmatpush.msra.mxu0 0.0
  %5451 = vmatpush.msra.mxu0 0.0
  %5452 = vmatpush.msra.mxu0 0.0
  %5453 = vmatpush.msra.mxu0 0.0
  %5454 = vmatpush.msra.mxu0 0.0
  %5455 = vmatpush.msra.mxu0 0.0
  %5456 = vmatpush.msra.mxu0 %v3543
  %5457 = vmatpush.msra.mxu0 %v3542
  %5458 = vmatpush.msra.mxu0 %v3541
  %5459 = vmatpush.msra.mxu0 %v3540
  %5460 = vmatpush.msra.mxu0 %v3539
  %5461 = vmatpush.msra.mxu0 %v3538
  %5462 = vmatpush.msra.mxu0 %v3537
  %5463 = vmatpush.msra.mxu0 %v3536
  %5464 = vmatmul.f32.gmra.mxu0 %v5446
  %v5465 = vpop.f32.mrf.mxu0
  %v5466 = vadd.f32 0.0, %v5465
  %5467 = vdwg.mxu0
  %v5469 = vsel %vm3696, %v2909, 0
  %5471 = vmatpush.msra.mxu0 0.0
  %5472 = vmatpush.msra.mxu0 0.0
  %5473 = vmatpush.msra.mxu0 0.0
  %5474 = vmatpush.msra.mxu0 0.0
  %5475 = vmatpush.msra.mxu0 0.0
  %5476 = vmatpush.msra.mxu0 0.0
  %5477 = vmatpush.msra.mxu0 0.0
  %5478 = vmatpush.msra.mxu0 0.0
  %5479 = vmatpush.msra.mxu0 %v3551
  %5480 = vmatpush.msra.mxu0 %v3550
  %5481 = vmatpush.msra.mxu0 %v3549
  %5482 = vmatpush.msra.mxu0 %v3548
  %5483 = vmatpush.msra.mxu0 %v3547
  %5484 = vmatpush.msra.mxu0 %v3546
  %5485 = vmatpush.msra.mxu0 %v3545
  %5486 = vmatpush.msra.mxu0 %v3544
  %5487 = vmatmul.f32.gmra.mxu0 %v5469
  %v5488 = vpop.f32.mrf.mxu0
  %v5489 = vadd.f32 0.0, %v5488
  %5490 = vdwg.mxu0
  %v5492 = vsel %vm3696, %v2910, 0
  %5494 = vmatpush.msra.mxu0 0.0
  %5495 = vmatpush.msra.mxu0 0.0
  %5496 = vmatpush.msra.mxu0 0.0
  %5497 = vmatpush.msra.mxu0 0.0
  %5498 = vmatpush.msra.mxu0 0.0
  %5499 = vmatpush.msra.mxu0 0.0
  %5500 = vmatpush.msra.mxu0 0.0
  %5501 = vmatpush.msra.mxu0 0.0
  %5502 = vmatpush.msra.mxu0 %v3559
  %5503 = vmatpush.msra.mxu0 %v3558
  %5504 = vmatpush.msra.mxu0 %v3557
  %5505 = vmatpush.msra.mxu0 %v3556
  %5506 = vmatpush.msra.mxu0 %v3555
  %5507 = vmatpush.msra.mxu0 %v3554
  %5508 = vmatpush.msra.mxu0 %v3553
  %5509 = vmatpush.msra.mxu0 %v3552
  %5510 = vmatmul.f32.gmra.mxu0 %v5492
  %v5511 = vpop.f32.mrf.mxu0
  %v5512 = vadd.f32 0.0, %v5511
  %5513 = vdwg.mxu0
  %v5515 = vsel %vm3696, %v2911, 0
  %5517 = vmatpush.msra.mxu0 0.0
  %5518 = vmatpush.msra.mxu0 0.0
  %5519 = vmatpush.msra.mxu0 0.0
  %5520 = vmatpush.msra.mxu0 0.0
  %5521 = vmatpush.msra.mxu0 0.0
  %5522 = vmatpush.msra.mxu0 0.0
  %5523 = vmatpush.msra.mxu0 0.0
  %5524 = vmatpush.msra.mxu0 0.0
  %5525 = vmatpush.msra.mxu0 %v3567
  %5526 = vmatpush.msra.mxu0 %v3566
  %5527 = vmatpush.msra.mxu0 %v3565
  %5528 = vmatpush.msra.mxu0 %v3564
  %5529 = vmatpush.msra.mxu0 %v3563
  %5530 = vmatpush.msra.mxu0 %v3562
  %5531 = vmatpush.msra.mxu0 %v3561
  %5532 = vmatpush.msra.mxu0 %v3560
  %5533 = vmatmul.f32.gmra.mxu0 %v5515
  %v5534 = vpop.f32.mrf.mxu0
  %v5535 = vadd.f32 0.0, %v5534
  %5536 = vdwg.mxu0
  %v5538 = vsel %vm3696, %v2912, 0
  %5540 = vmatpush.msra.mxu0 0.0
  %5541 = vmatpush.msra.mxu0 0.0
  %5542 = vmatpush.msra.mxu0 0.0
  %5543 = vmatpush.msra.mxu0 0.0
  %5544 = vmatpush.msra.mxu0 0.0
  %5545 = vmatpush.msra.mxu0 0.0
  %5546 = vmatpush.msra.mxu0 0.0
  %5547 = vmatpush.msra.mxu0 0.0
  %5548 = vmatpush.msra.mxu0 %v3575
  %5549 = vmatpush.msra.mxu0 %v3574
  %5550 = vmatpush.msra.mxu0 %v3573
  %5551 = vmatpush.msra.mxu0 %v3572
  %5552 = vmatpush.msra.mxu0 %v3571
  %5553 = vmatpush.msra.mxu0 %v3570
  %5554 = vmatpush.msra.mxu0 %v3569
  %5555 = vmatpush.msra.mxu0 %v3568
  %5556 = vmatmul.f32.gmra.mxu0 %v5538
  %v5557 = vpop.f32.mrf.mxu0
  %v5558 = vadd.f32 0.0, %v5557
  %5559 = vdwg.mxu0
  %v5561 = vsel %vm3696, %v2913, 0
  %5563 = vmatpush.msra.mxu0 0.0
  %5564 = vmatpush.msra.mxu0 0.0
  %5565 = vmatpush.msra.mxu0 0.0
  %5566 = vmatpush.msra.mxu0 0.0
  %5567 = vmatpush.msra.mxu0 0.0
  %5568 = vmatpush.msra.mxu0 0.0
  %5569 = vmatpush.msra.mxu0 0.0
  %5570 = vmatpush.msra.mxu0 0.0
  %5571 = vmatpush.msra.mxu0 %v3583
  %5572 = vmatpush.msra.mxu0 %v3582
  %5573 = vmatpush.msra.mxu0 %v3581
  %5574 = vmatpush.msra.mxu0 %v3580
  %5575 = vmatpush.msra.mxu0 %v3579
  %5576 = vmatpush.msra.mxu0 %v3578
  %5577 = vmatpush.msra.mxu0 %v3577
  %5578 = vmatpush.msra.mxu0 %v3576
  %5579 = vmatmul.f32.gmra.mxu0 %v5561
  %v5580 = vpop.f32.mrf.mxu0
  %v5581 = vadd.f32 0.0, %v5580
  %5582 = vdwg.mxu0
  %v5584 = vsel %vm3696, %v2914, 0
  %5586 = vmatpush.msra.mxu0 0.0
  %5587 = vmatpush.msra.mxu0 0.0
  %5588 = vmatpush.msra.mxu0 0.0
  %5589 = vmatpush.msra.mxu0 0.0
  %5590 = vmatpush.msra.mxu0 0.0
  %5591 = vmatpush.msra.mxu0 0.0
  %5592 = vmatpush.msra.mxu0 0.0
  %5593 = vmatpush.msra.mxu0 0.0
  %5594 = vmatpush.msra.mxu0 %v3591
  %5595 = vmatpush.msra.mxu0 %v3590
  %5596 = vmatpush.msra.mxu0 %v3589
  %5597 = vmatpush.msra.mxu0 %v3588
  %5598 = vmatpush.msra.mxu0 %v3587
  %5599 = vmatpush.msra.mxu0 %v3586
  %5600 = vmatpush.msra.mxu0 %v3585
  %5601 = vmatpush.msra.mxu0 %v3584
  %5602 = vmatmul.f32.gmra.mxu0 %v5584
  %v5603 = vpop.f32.mrf.mxu0
  %v5604 = vadd.f32 0.0, %v5603
  %5605 = vdwg.mxu0
  %v5607 = vsel %vm3696, %v2915, 0
  %5609 = vmatpush.msra.mxu0 0.0
  %5610 = vmatpush.msra.mxu0 0.0
  %5611 = vmatpush.msra.mxu0 0.0
  %5612 = vmatpush.msra.mxu0 0.0
  %5613 = vmatpush.msra.mxu0 0.0
  %5614 = vmatpush.msra.mxu0 0.0
  %5615 = vmatpush.msra.mxu0 0.0
  %5616 = vmatpush.msra.mxu0 0.0
  %5617 = vmatpush.msra.mxu0 %v3599
  %5618 = vmatpush.msra.mxu0 %v3598
  %5619 = vmatpush.msra.mxu0 %v3597
  %5620 = vmatpush.msra.mxu0 %v3596
  %5621 = vmatpush.msra.mxu0 %v3595
  %5622 = vmatpush.msra.mxu0 %v3594
  %5623 = vmatpush.msra.mxu0 %v3593
  %5624 = vmatpush.msra.mxu0 %v3592
  %5625 = vmatmul.f32.gmra.mxu0 %v5607
  %v5626 = vpop.f32.mrf.mxu0
  %v5627 = vadd.f32 0.0, %v5626
  %5628 = vdwg.mxu0
  %v5630 = vsel %vm3696, %v2916, 0
  %5632 = vmatpush.msra.mxu0 0.0
  %5633 = vmatpush.msra.mxu0 0.0
  %5634 = vmatpush.msra.mxu0 0.0
  %5635 = vmatpush.msra.mxu0 0.0
  %5636 = vmatpush.msra.mxu0 0.0
  %5637 = vmatpush.msra.mxu0 0.0
  %5638 = vmatpush.msra.mxu0 0.0
  %5639 = vmatpush.msra.mxu0 0.0
  %5640 = vmatpush.msra.mxu0 %v3607
  %5641 = vmatpush.msra.mxu0 %v3606
  %5642 = vmatpush.msra.mxu0 %v3605
  %5643 = vmatpush.msra.mxu0 %v3604
  %5644 = vmatpush.msra.mxu0 %v3603
  %5645 = vmatpush.msra.mxu0 %v3602
  %5646 = vmatpush.msra.mxu0 %v3601
  %5647 = vmatpush.msra.mxu0 %v3600
  %5648 = vmatmul.f32.gmra.mxu0 %v5630
  %v5649 = vpop.f32.mrf.mxu0
  %v5650 = vadd.f32 0.0, %v5649
  %5651 = vdwg.mxu0
  %v5653 = vsel %vm3696, %v2917, 0
  %5655 = vmatpush.msra.mxu0 0.0
  %5656 = vmatpush.msra.mxu0 0.0
  %5657 = vmatpush.msra.mxu0 0.0
  %5658 = vmatpush.msra.mxu0 0.0
  %5659 = vmatpush.msra.mxu0 0.0
  %5660 = vmatpush.msra.mxu0 0.0
  %5661 = vmatpush.msra.mxu0 0.0
  %5662 = vmatpush.msra.mxu0 0.0
  %5663 = vmatpush.msra.mxu0 %v3615
  %5664 = vmatpush.msra.mxu0 %v3614
  %5665 = vmatpush.msra.mxu0 %v3613
  %5666 = vmatpush.msra.mxu0 %v3612
  %5667 = vmatpush.msra.mxu0 %v3611
  %5668 = vmatpush.msra.mxu0 %v3610
  %5669 = vmatpush.msra.mxu0 %v3609
  %5670 = vmatpush.msra.mxu0 %v3608
  %5671 = vmatmul.f32.gmra.mxu0 %v5653
  %v5672 = vpop.f32.mrf.mxu0
  %v5673 = vadd.f32 0.0, %v5672
  %5674 = vdwg.mxu0
  %v5676 = vsel %vm3696, %v2918, 0
  %5678 = vmatpush.msra.mxu0 0.0
  %5679 = vmatpush.msra.mxu0 0.0
  %5680 = vmatpush.msra.mxu0 0.0
  %5681 = vmatpush.msra.mxu0 0.0
  %5682 = vmatpush.msra.mxu0 0.0
  %5683 = vmatpush.msra.mxu0 0.0
  %5684 = vmatpush.msra.mxu0 0.0
  %5685 = vmatpush.msra.mxu0 0.0
  %5686 = vmatpush.msra.mxu0 %v3623
  %5687 = vmatpush.msra.mxu0 %v3622
  %5688 = vmatpush.msra.mxu0 %v3621
  %5689 = vmatpush.msra.mxu0 %v3620
  %5690 = vmatpush.msra.mxu0 %v3619
  %5691 = vmatpush.msra.mxu0 %v3618
  %5692 = vmatpush.msra.mxu0 %v3617
  %5693 = vmatpush.msra.mxu0 %v3616
  %5694 = vmatmul.f32.gmra.mxu0 %v5676
  %v5695 = vpop.f32.mrf.mxu0
  %v5696 = vadd.f32 0.0, %v5695
  %5697 = vdwg.mxu0
  %v5699 = vsel %vm3696, %v2919, 0
  %5701 = vmatpush.msra.mxu0 0.0
  %5702 = vmatpush.msra.mxu0 0.0
  %5703 = vmatpush.msra.mxu0 0.0
  %5704 = vmatpush.msra.mxu0 0.0
  %5705 = vmatpush.msra.mxu0 0.0
  %5706 = vmatpush.msra.mxu0 0.0
  %5707 = vmatpush.msra.mxu0 0.0
  %5708 = vmatpush.msra.mxu0 0.0
  %5709 = vmatpush.msra.mxu0 %v3631
  %5710 = vmatpush.msra.mxu0 %v3630
  %5711 = vmatpush.msra.mxu0 %v3629
  %5712 = vmatpush.msra.mxu0 %v3628
  %5713 = vmatpush.msra.mxu0 %v3627
  %5714 = vmatpush.msra.mxu0 %v3626
  %5715 = vmatpush.msra.mxu0 %v3625
  %5716 = vmatpush.msra.mxu0 %v3624
  %5717 = vmatmul.f32.gmra.mxu0 %v5699
  %v5718 = vpop.f32.mrf.mxu0
  %v5719 = vadd.f32 0.0, %v5718
  %5720 = vdwg.mxu0
  %v5722 = vsel %vm3696, %v2920, 0
  %5724 = vmatpush.msra.mxu0 0.0
  %5725 = vmatpush.msra.mxu0 0.0
  %5726 = vmatpush.msra.mxu0 0.0
  %5727 = vmatpush.msra.mxu0 0.0
  %5728 = vmatpush.msra.mxu0 0.0
  %5729 = vmatpush.msra.mxu0 0.0
  %5730 = vmatpush.msra.mxu0 0.0
  %5731 = vmatpush.msra.mxu0 0.0
  %5732 = vmatpush.msra.mxu0 %v3639
  %5733 = vmatpush.msra.mxu0 %v3638
  %5734 = vmatpush.msra.mxu0 %v3637
  %5735 = vmatpush.msra.mxu0 %v3636
  %5736 = vmatpush.msra.mxu0 %v3635
  %5737 = vmatpush.msra.mxu0 %v3634
  %5738 = vmatpush.msra.mxu0 %v3633
  %5739 = vmatpush.msra.mxu0 %v3632
  %5740 = vmatmul.f32.gmra.mxu0 %v5722
  %v5741 = vpop.f32.mrf.mxu0
  %v5742 = vadd.f32 0.0, %v5741
  %5743 = vdwg.mxu0
  %v5745 = vsel %vm3696, %v2921, 0
  %5747 = vmatpush.msra.mxu0 0.0
  %5748 = vmatpush.msra.mxu0 0.0
  %5749 = vmatpush.msra.mxu0 0.0
  %5750 = vmatpush.msra.mxu0 0.0
  %5751 = vmatpush.msra.mxu0 0.0
  %5752 = vmatpush.msra.mxu0 0.0
  %5753 = vmatpush.msra.mxu0 0.0
  %5754 = vmatpush.msra.mxu0 0.0
  %5755 = vmatpush.msra.mxu0 %v3647
  %5756 = vmatpush.msra.mxu0 %v3646
  %5757 = vmatpush.msra.mxu0 %v3645
  %5758 = vmatpush.msra.mxu0 %v3644
  %5759 = vmatpush.msra.mxu0 %v3643
  %5760 = vmatpush.msra.mxu0 %v3642
  %5761 = vmatpush.msra.mxu0 %v3641
  %5762 = vmatpush.msra.mxu0 %v3640
  %5763 = vmatmul.f32.gmra.mxu0 %v5745
  %v5764 = vpop.f32.mrf.mxu0
  %v5765 = vadd.f32 0.0, %v5764
  %5766 = vdwg.mxu0
  %v5768 = vsel %vm3696, %v2922, 0
  %5770 = vmatpush.msra.mxu0 0.0
  %5771 = vmatpush.msra.mxu0 0.0
  %5772 = vmatpush.msra.mxu0 0.0
  %5773 = vmatpush.msra.mxu0 0.0
  %5774 = vmatpush.msra.mxu0 0.0
  %5775 = vmatpush.msra.mxu0 0.0
  %5776 = vmatpush.msra.mxu0 0.0
  %5777 = vmatpush.msra.mxu0 0.0
  %5778 = vmatpush.msra.mxu0 %v3655
  %5779 = vmatpush.msra.mxu0 %v3654
  %5780 = vmatpush.msra.mxu0 %v3653
  %5781 = vmatpush.msra.mxu0 %v3652
  %5782 = vmatpush.msra.mxu0 %v3651
  %5783 = vmatpush.msra.mxu0 %v3650
  %5784 = vmatpush.msra.mxu0 %v3649
  %5785 = vmatpush.msra.mxu0 %v3648
  %5786 = vmatmul.f32.gmra.mxu0 %v5768
  %v5787 = vpop.f32.mrf.mxu0
  %v5788 = vadd.f32 0.0, %v5787
  %5789 = vdwg.mxu0
  %v5791 = vsel %vm3696, %v2923, 0
  %5793 = vmatpush.msra.mxu0 0.0
  %5794 = vmatpush.msra.mxu0 0.0
  %5795 = vmatpush.msra.mxu0 0.0
  %5796 = vmatpush.msra.mxu0 0.0
  %5797 = vmatpush.msra.mxu0 0.0
  %5798 = vmatpush.msra.mxu0 0.0
  %5799 = vmatpush.msra.mxu0 0.0
  %5800 = vmatpush.msra.mxu0 0.0
  %5801 = vmatpush.msra.mxu0 %v3663
  %5802 = vmatpush.msra.mxu0 %v3662
  %5803 = vmatpush.msra.mxu0 %v3661
  %5804 = vmatpush.msra.mxu0 %v3660
  %5805 = vmatpush.msra.mxu0 %v3659
  %5806 = vmatpush.msra.mxu0 %v3658
  %5807 = vmatpush.msra.mxu0 %v3657
  %5808 = vmatpush.msra.mxu0 %v3656
  %5809 = vmatmul.f32.gmra.mxu0 %v5791
  %v5810 = vpop.f32.mrf.mxu0
  %v5811 = vadd.f32 0.0, %v5810
  %5812 = vdwg.mxu0
  %v5814 = vsel %vm3696, %v2924, 0
  %5816 = vmatpush.msra.mxu0 0.0
  %5817 = vmatpush.msra.mxu0 0.0
  %5818 = vmatpush.msra.mxu0 0.0
  %5819 = vmatpush.msra.mxu0 0.0
  %5820 = vmatpush.msra.mxu0 0.0
  %5821 = vmatpush.msra.mxu0 0.0
  %5822 = vmatpush.msra.mxu0 0.0
  %5823 = vmatpush.msra.mxu0 0.0
  %5824 = vmatpush.msra.mxu0 %v3671
  %5825 = vmatpush.msra.mxu0 %v3670
  %5826 = vmatpush.msra.mxu0 %v3669
  %5827 = vmatpush.msra.mxu0 %v3668
  %5828 = vmatpush.msra.mxu0 %v3667
  %5829 = vmatpush.msra.mxu0 %v3666
  %5830 = vmatpush.msra.mxu0 %v3665
  %5831 = vmatpush.msra.mxu0 %v3664
  %5832 = vmatmul.f32.gmra.mxu0 %v5814
  %v5833 = vpop.f32.mrf.mxu0
  %v5834 = vadd.f32 0.0, %v5833
  %5835 = vdwg.mxu0
  %v5837 = vsel %vm3696, %v2925, 0
  %5839 = vmatpush.msra.mxu0 0.0
  %5840 = vmatpush.msra.mxu0 0.0
  %5841 = vmatpush.msra.mxu0 0.0
  %5842 = vmatpush.msra.mxu0 0.0
  %5843 = vmatpush.msra.mxu0 0.0
  %5844 = vmatpush.msra.mxu0 0.0
  %5845 = vmatpush.msra.mxu0 0.0
  %5846 = vmatpush.msra.mxu0 0.0
  %5847 = vmatpush.msra.mxu0 %v3679
  %5848 = vmatpush.msra.mxu0 %v3678
  %5849 = vmatpush.msra.mxu0 %v3677
  %5850 = vmatpush.msra.mxu0 %v3676
  %5851 = vmatpush.msra.mxu0 %v3675
  %5852 = vmatpush.msra.mxu0 %v3674
  %5853 = vmatpush.msra.mxu0 %v3673
  %5854 = vmatpush.msra.mxu0 %v3672
  %5855 = vmatmul.f32.gmra.mxu0 %v5837
  %v5856 = vpop.f32.mrf.mxu0
  %v5857 = vadd.f32 0.0, %v5856
  %5858 = vdwg.mxu0
  %v5860 = vsel %vm3696, %v2926, 0
  %5862 = vmatpush.msra.mxu0 0.0
  %5863 = vmatpush.msra.mxu0 0.0
  %5864 = vmatpush.msra.mxu0 0.0
  %5865 = vmatpush.msra.mxu0 0.0
  %5866 = vmatpush.msra.mxu0 0.0
  %5867 = vmatpush.msra.mxu0 0.0
  %5868 = vmatpush.msra.mxu0 0.0
  %5869 = vmatpush.msra.mxu0 0.0
  %5870 = vmatpush.msra.mxu0 %v3687
  %5871 = vmatpush.msra.mxu0 %v3686
  %5872 = vmatpush.msra.mxu0 %v3685
  %5873 = vmatpush.msra.mxu0 %v3684
  %5874 = vmatpush.msra.mxu0 %v3683
  %5875 = vmatpush.msra.mxu0 %v3682
  %5876 = vmatpush.msra.mxu0 %v3681
  %5877 = vmatpush.msra.mxu0 %v3680
  %5878 = vmatmul.f32.gmra.mxu0 %v5860
  %v5879 = vpop.f32.mrf.mxu0
  %v5880 = vadd.f32 0.0, %v5879
  %5881 = vdwg.mxu0
  %v5883 = vsel %vm3696, %v2927, 0
  %5885 = vmatpush.msra.mxu0 0.0
  %5886 = vmatpush.msra.mxu0 0.0
  %5887 = vmatpush.msra.mxu0 0.0
  %5888 = vmatpush.msra.mxu0 0.0
  %5889 = vmatpush.msra.mxu0 0.0
  %5890 = vmatpush.msra.mxu0 0.0
  %5891 = vmatpush.msra.mxu0 0.0
  %5892 = vmatpush.msra.mxu0 0.0
  %5893 = vmatpush.msra.mxu0 %v3695
  %5894 = vmatpush.msra.mxu0 %v3694
  %5895 = vmatpush.msra.mxu0 %v3693
  %5896 = vmatpush.msra.mxu0 %v3692
  %5897 = vmatpush.msra.mxu0 %v3691
  %5898 = vmatpush.msra.mxu0 %v3690
  %5899 = vmatpush.msra.mxu0 %v3689
  %5900 = vmatpush.msra.mxu0 %v3688
  %5901 = vmatmul.f32.gmra.mxu0 %v5883
  %v5902 = vpop.f32.mrf.mxu0
  %v5903 = vadd.f32 0.0, %v5902
  %5904 = vdwg.mxu0
  %v5905 = vsel %vm3696, %v3718, 0.0
  %v5906 = vsel %vm3696, %v3741, 0.0
  %v5907 = vadd.f32 %v5905, %v5906
  %v5908 = vsel %vm3696, %v3764, 0.0
  %v5909 = vadd.f32 %v5907, %v5908
  %v5910 = vsel %vm3696, %v3787, 0.0
  %v5911 = vadd.f32 %v5909, %v5910
  %v5912 = vsel %vm3696, %v3810, 0.0
  %v5913 = vadd.f32 %v5911, %v5912
  %v5914 = vsel %vm3696, %v3833, 0.0
  %v5915 = vadd.f32 %v5913, %v5914
  %v5916 = vsel %vm3696, %v3856, 0.0
  %v5917 = vadd.f32 %v5915, %v5916
  %v5918 = vsel %vm3696, %v3879, 0.0
  %v5919 = vadd.f32 %v5917, %v5918
  %v5920 = vsel %vm3696, %v3902, 0.0
  %v5921 = vadd.f32 %v5919, %v5920
  %v5922 = vsel %vm3696, %v3925, 0.0
  %v5923 = vadd.f32 %v5921, %v5922
  %v5924 = vsel %vm3696, %v3948, 0.0
  %v5925 = vadd.f32 %v5923, %v5924
  %v5926 = vsel %vm3696, %v3971, 0.0
  %v5927 = vadd.f32 %v5925, %v5926
  %v5928 = vsel %vm3696, %v3994, 0.0
  %v5929 = vadd.f32 %v5927, %v5928
  %v5930 = vsel %vm3696, %v4017, 0.0
  %v5931 = vadd.f32 %v5929, %v5930
  %v5932 = vsel %vm3696, %v4040, 0.0
  %v5933 = vadd.f32 %v5931, %v5932
  %v5934 = vsel %vm3696, %v4063, 0.0
  %v5935 = vadd.f32 %v5933, %v5934
  %v5936 = vsel %vm3696, %v4086, 0.0
  %v5937 = vadd.f32 %v5935, %v5936
  %v5938 = vsel %vm3696, %v4109, 0.0
  %v5939 = vadd.f32 %v5937, %v5938
  %v5940 = vsel %vm3696, %v4132, 0.0
  %v5941 = vadd.f32 %v5939, %v5940
  %v5942 = vsel %vm3696, %v4155, 0.0
  %v5943 = vadd.f32 %v5941, %v5942
  %v5944 = vsel %vm3696, %v4178, 0.0
  %v5945 = vadd.f32 %v5943, %v5944
  %v5946 = vsel %vm3696, %v4201, 0.0
  %v5947 = vadd.f32 %v5945, %v5946
  %v5948 = vsel %vm3696, %v4224, 0.0
  %v5949 = vadd.f32 %v5947, %v5948
  %v5950 = vsel %vm3696, %v4247, 0.0
  %v5951 = vadd.f32 %v5949, %v5950
  %v5952 = vsel %vm3696, %v4270, 0.0
  %v5953 = vadd.f32 %v5951, %v5952
  %v5954 = vsel %vm3696, %v4293, 0.0
  %v5955 = vadd.f32 %v5953, %v5954
  %v5956 = vsel %vm3696, %v4316, 0.0
  %v5957 = vadd.f32 %v5955, %v5956
  %v5958 = vsel %vm3696, %v4339, 0.0
  %v5959 = vadd.f32 %v5957, %v5958
  %v5960 = vsel %vm3696, %v4362, 0.0
  %v5961 = vadd.f32 %v5959, %v5960
  %v5962 = vsel %vm3696, %v4385, 0.0
  %v5963 = vadd.f32 %v5961, %v5962
  %v5964 = vsel %vm3696, %v4408, 0.0
  %v5965 = vadd.f32 %v5963, %v5964
  %v5966 = vsel %vm3696, %v4431, 0.0
  %v5967 = vadd.f32 %v5965, %v5966
  %v5968 = vsel %vm3696, %v4454, 0.0
  %v5969 = vadd.f32 %v5967, %v5968
  %v5970 = vsel %vm3696, %v4477, 0.0
  %v5971 = vadd.f32 %v5969, %v5970
  %v5972 = vsel %vm3696, %v4500, 0.0
  %v5973 = vadd.f32 %v5971, %v5972
  %v5974 = vsel %vm3696, %v4523, 0.0
  %v5975 = vadd.f32 %v5973, %v5974
  %v5976 = vsel %vm3696, %v4546, 0.0
  %v5977 = vadd.f32 %v5975, %v5976
  %v5978 = vsel %vm3696, %v4569, 0.0
  %v5979 = vadd.f32 %v5977, %v5978
  %v5980 = vsel %vm3696, %v4592, 0.0
  %v5981 = vadd.f32 %v5979, %v5980
  %v5982 = vsel %vm3696, %v4615, 0.0
  %v5983 = vadd.f32 %v5981, %v5982
  %v5984 = vsel %vm3696, %v4638, 0.0
  %v5985 = vadd.f32 %v5983, %v5984
  %v5986 = vsel %vm3696, %v4661, 0.0
  %v5987 = vadd.f32 %v5985, %v5986
  %v5988 = vsel %vm3696, %v4684, 0.0
  %v5989 = vadd.f32 %v5987, %v5988
  %v5990 = vsel %vm3696, %v4707, 0.0
  %v5991 = vadd.f32 %v5989, %v5990
  %v5992 = vsel %vm3696, %v4730, 0.0
  %v5993 = vadd.f32 %v5991, %v5992
  %v5994 = vsel %vm3696, %v4753, 0.0
  %v5995 = vadd.f32 %v5993, %v5994
  %v5996 = vsel %vm3696, %v4776, 0.0
  %v5997 = vadd.f32 %v5995, %v5996
  %v5998 = vsel %vm3696, %v4799, 0.0
  %v5999 = vadd.f32 %v5997, %v5998
  %v6000 = vsel %vm3696, %v4822, 0.0
  %v6001 = vadd.f32 %v5999, %v6000
  %v6002 = vsel %vm3696, %v4845, 0.0
  %v6003 = vadd.f32 %v6001, %v6002
  %v6004 = vsel %vm3696, %v4868, 0.0
  %v6005 = vadd.f32 %v6003, %v6004
  %v6006 = vsel %vm3696, %v4891, 0.0
  %v6007 = vadd.f32 %v6005, %v6006
  %v6008 = vsel %vm3696, %v4914, 0.0
  %v6009 = vadd.f32 %v6007, %v6008
  %v6010 = vsel %vm3696, %v4937, 0.0
  %v6011 = vadd.f32 %v6009, %v6010
  %v6012 = vsel %vm3696, %v4960, 0.0
  %v6013 = vadd.f32 %v6011, %v6012
  %v6014 = vsel %vm3696, %v4983, 0.0
  %v6015 = vadd.f32 %v6013, %v6014
  %v6016 = vsel %vm3696, %v5006, 0.0
  %v6017 = vadd.f32 %v6015, %v6016
  %v6018 = vsel %vm3696, %v5029, 0.0
  %v6019 = vadd.f32 %v6017, %v6018
  %v6020 = vsel %vm3696, %v5052, 0.0
  %v6021 = vadd.f32 %v6019, %v6020
  %v6022 = vsel %vm3696, %v5075, 0.0
  %v6023 = vadd.f32 %v6021, %v6022
  %v6024 = vsel %vm3696, %v5098, 0.0
  %v6025 = vadd.f32 %v6023, %v6024
  %v6026 = vsel %vm3696, %v5121, 0.0
  %v6027 = vadd.f32 %v6025, %v6026
  %v6028 = vsel %vm3696, %v5144, 0.0
  %v6029 = vadd.f32 %v6027, %v6028
  %v6030 = vsel %vm3696, %v5167, 0.0
  %v6031 = vadd.f32 %v6029, %v6030
  %v6032 = vsel %vm3696, %v5190, 0.0
  %v6033 = vadd.f32 %v6031, %v6032
  %v6034 = vsel %vm3696, %v5213, 0.0
  %v6035 = vadd.f32 %v6033, %v6034
  %v6036 = vsel %vm3696, %v5236, 0.0
  %v6037 = vadd.f32 %v6035, %v6036
  %v6038 = vsel %vm3696, %v5259, 0.0
  %v6039 = vadd.f32 %v6037, %v6038
  %v6040 = vsel %vm3696, %v5282, 0.0
  %v6041 = vadd.f32 %v6039, %v6040
  %v6042 = vsel %vm3696, %v5305, 0.0
  %v6043 = vadd.f32 %v6041, %v6042
  %v6044 = vsel %vm3696, %v5328, 0.0
  %v6045 = vadd.f32 %v6043, %v6044
  %v6046 = vsel %vm3696, %v5351, 0.0
  %v6047 = vadd.f32 %v6045, %v6046
  %v6048 = vsel %vm3696, %v5374, 0.0
  %v6049 = vadd.f32 %v6047, %v6048
  %v6050 = vsel %vm3696, %v5397, 0.0
  %v6051 = vadd.f32 %v6049, %v6050
  %v6052 = vsel %vm3696, %v5420, 0.0
  %v6053 = vadd.f32 %v6051, %v6052
  %v6054 = vsel %vm3696, %v5443, 0.0
  %v6055 = vadd.f32 %v6053, %v6054
  %v6056 = vsel %vm3696, %v5466, 0.0
  %v6057 = vadd.f32 %v6055, %v6056
  %v6058 = vsel %vm3696, %v5489, 0.0
  %v6059 = vadd.f32 %v6057, %v6058
  %v6060 = vsel %vm3696, %v5512, 0.0
  %v6061 = vadd.f32 %v6059, %v6060
  %v6062 = vsel %vm3696, %v5535, 0.0
  %v6063 = vadd.f32 %v6061, %v6062
  %v6064 = vsel %vm3696, %v5558, 0.0
  %v6065 = vadd.f32 %v6063, %v6064
  %v6066 = vsel %vm3696, %v5581, 0.0
  %v6067 = vadd.f32 %v6065, %v6066
  %v6068 = vsel %vm3696, %v5604, 0.0
  %v6069 = vadd.f32 %v6067, %v6068
  %v6070 = vsel %vm3696, %v5627, 0.0
  %v6071 = vadd.f32 %v6069, %v6070
  %v6072 = vsel %vm3696, %v5650, 0.0
  %v6073 = vadd.f32 %v6071, %v6072
  %v6074 = vsel %vm3696, %v5673, 0.0
  %v6075 = vadd.f32 %v6073, %v6074
  %v6076 = vsel %vm3696, %v5696, 0.0
  %v6077 = vadd.f32 %v6075, %v6076
  %v6078 = vsel %vm3696, %v5719, 0.0
  %v6079 = vadd.f32 %v6077, %v6078
  %v6080 = vsel %vm3696, %v5742, 0.0
  %v6081 = vadd.f32 %v6079, %v6080
  %v6082 = vsel %vm3696, %v5765, 0.0
  %v6083 = vadd.f32 %v6081, %v6082
  %v6084 = vsel %vm3696, %v5788, 0.0
  %v6085 = vadd.f32 %v6083, %v6084
  %v6086 = vsel %vm3696, %v5811, 0.0
  %v6087 = vadd.f32 %v6085, %v6086
  %v6088 = vsel %vm3696, %v5834, 0.0
  %v6089 = vadd.f32 %v6087, %v6088
  %v6090 = vsel %vm3696, %v5857, 0.0
  %v6091 = vadd.f32 %v6089, %v6090
  %v6092 = vsel %vm3696, %v5880, 0.0
  %v6093 = vadd.f32 %v6091, %v6092
  %v6094 = vsel %vm3696, %v5903, 0.0
  %v6095 = vadd.f32 %v6093, %v6094
  %v6096 = vld [vmem:[%s6] sm:$0x1]
  %v6098 = vperm.slane %v6096, 0
  %v6100 = vadd.f32 %v6095, %v6098
  %v6101 = vmax.f32 %v6100, 0.0
  %v6102 = vld [vmem:[%s7] sm:$0xff]
  %v6103 = vld [vmem:[%s7 + $0x8] sm:$0xff]
  %v6104 = vld [vmem:[%s7 + $0x10] sm:$0xff]
  %v6105 = vld [vmem:[%s7 + $0x18] sm:$0xff]
  %v6106 = vld [vmem:[%s7 + $0x20] sm:$0xff]
  %v6107 = vld [vmem:[%s7 + $0x28] sm:$0xff]
  %v6108 = vld [vmem:[%s7 + $0x30] sm:$0xff]
  %v6109 = vld [vmem:[%s7 + $0x38] sm:$0xff]
  %v6110 = vld [vmem:[#allocation2] sm:$0x1]
  %v6112 = vperm.slane %v6110, 0
  %v6115 = vsel %vm3696, %v6101, 0
  %6117 = vmatpush.msra.mxu0 0.0
  %6118 = vmatpush.msra.mxu0 0.0
  %6119 = vmatpush.msra.mxu0 0.0
  %6120 = vmatpush.msra.mxu0 0.0
  %6121 = vmatpush.msra.mxu0 0.0
  %6122 = vmatpush.msra.mxu0 0.0
  %6123 = vmatpush.msra.mxu0 0.0
  %6124 = vmatpush.msra.mxu0 0.0
  %6125 = vmatpush.msra.mxu0 %v6109
  %6126 = vmatpush.msra.mxu0 %v6108
  %6127 = vmatpush.msra.mxu0 %v6107
  %6128 = vmatpush.msra.mxu0 %v6106
  %6129 = vmatpush.msra.mxu0 %v6105
  %6130 = vmatpush.msra.mxu0 %v6104
  %6131 = vmatpush.msra.mxu0 %v6103
  %6132 = vmatpush.msra.mxu0 %v6102
  %6133 = vmatmul.f32.gmra.mxu0 %v6115
  %v6134 = vpop.f32.mrf.mxu0
  %v6135 = vadd.f32 %v6112, %v6134
  %6136 = vdwg.mxu0
  %v6137 = vxor.u32 %v6135, 2147483648
  %v6138 = vmul.f32 %v6137, 1.442695
  %v6139 = vpow.pop %v6138
  %v6140 = vadd.f32 %v6139, 1.0
  %v6141 = vrcp.pop %v6140
  %v6142 = vmul.f32 %v6140, %v6141
  %v6143 = vsub.f32 1.0, %v6142
  %v6144 = vmul.f32 %v6141, %v6143
  %v6145 = vadd.f32 %v6141, %v6144
  %vm6146 = vweird.f32 %v6140
  %vm6147 = vweird.f32 %v6141
  %vm6148 = vmor %vm6146, %vm6147
  %v6149 = vsel %vm6148, %v6141, %v6145
  %v6150 = vand.u32 2147483647, %v6140
  %vm6151 = vcmp.eq.f32.partialorder %v6150, 8.507059e+37
  %v6152 = vand.u32 %v6140, 2147483648
  %v6153 = vor.u32 1.1754944e-38, %v6152
  %v6154 = vsel %vm6151, %v6153, %v6149
  %v6155 = vmul.f32 1.0, %v6154
  %vm6156 = vcmask 7168
  %6157 = vst.msk [vmem:[%s9] sm:$0xff] %vm6156, %v6155
  // Predicated region
  $region38: #{tpu_custom_call.1} parent=0 // pred_check
    _
  $region39: #{tpu_custom_call.1} parent=0 // pred_check_branch
    %6159 = sbr.rel (0) target = $region41
  $region40: #{tpu_custom_call.1} parent=0 // pred_region
    _
  $region41: #{tpu_custom_call.1} parent=0 // pred_fallthru
    _
  // Predicated region
  $region42: #{tpu_custom_call.1} parent=0 // pred_check
    _
  $region43: #{tpu_custom_call.1} parent=0 // pred_check_branch
    %6161 = sbr.rel (0) target = $region45
  $region44: #{tpu_custom_call.1} parent=0 // pred_region
    _
  $region45: #{tpu_custom_call.1} parent=0 // pred_fallthru
    _

</llo_original>
